<compile_context>
chip_gen: v5e
topology: v5e:2x2
jax: 0.10.0
libtpu: 0.0.40
codegen_flags: <defaults>
</compile_context>

<pallas_src>
import functools

import jax
import jax.numpy as jnp
from jax.experimental import pallas as pl
from jax.experimental.pallas import tpu as pltpu


OUT_SIZE = 4096        # nn.UpsamplingNearest2d(size=(4096, 4096))
ROWS_PER_TILE = 512    # output rows per grid step: 512*4096*4B = 8 MiB per buffer


def _mratt_fused_kernel(x_ref, a_ref, ecol_ref, out_ref, att_x_ref, *,
                        rep, src_per_tile):
    """Attention + global softmax + fused nearest-neighbour upsample.

    x_ref:     (1, HW, C+1)  augmented tokens [x_i, 1]
    a_ref:     (C+1, C+1)    folded bilinear form A_aug
    ecol_ref:  (HW, 4096)    0/1 column-expansion matrix E[j, c] = (c // rep == j)
    out_ref:   (1, ROWS_PER_TILE, 4096) lane-dense output slab
    att_x_ref: (HW, 4096)    VMEM scratch, column-expanded attention (per batch)
    """
    t = pl.program_id(1)

    @pl.when(t == 0)
    def _():
        xa = x_ref[0]                                                 # (HW, C+1)
        z = jnp.dot(xa, a_ref[...], preferred_element_type=jnp.float32)  # X @ A_aug
        # energy[i, j] = sum_c z[i, c] * xa[j, c]  ==  (x_i Wq + bq) . (x_j Wk + bk)
        energy = jax.lax.dot_general(
            z, xa, (((1,), (1,)), ((), ())),
            preferred_element_type=jnp.float32)                       # (HW, HW)
        # Global softmax over all HW*HW energies of this batch element
        # (PyTorch nn.Softmax(dim=None) applied to energy.view(B, -1)).
        m = jnp.max(energy)
        e = jnp.exp(energy - m)
        inv = 1.0 / jnp.sum(e)          # single divide, then multiplies
        att = e * inv                                                 # (HW, HW)
        # Column expansion att[i, j] -> att[i, c // rep] as one MXU matmul.
        att_x_ref[...] = jnp.dot(att, ecol_ref[...],
                                 preferred_element_type=jnp.float32)  # (HW, 4096)

    # Row expansion for this output tile: each of the src_per_tile source rows
    # is broadcast to `rep` consecutive output rows; stores are full 4096-lane
    # unmasked slabs.
    base = pl.multiple_of(t * src_per_tile, src_per_tile)
    blk = att_x_ref[pl.ds(base, src_per_tile), :]                     # (src, 4096)
    out_w = out_ref.shape[2]
    for g in range(src_per_tile):                                     # static unroll
        out_ref[0, pl.ds(g * rep, rep), :] = jnp.broadcast_to(
            blk[g:g + 1, :], (rep, out_w))


def _fold_params(x_nchw, wq, bq, wk, bk):
    """Fold 1x1 convs + biases into augmented tokens and a bilinear form."""
    B, C, H, W = x_nchw.shape
    HW = H * W
    x_tok = x_nchw.reshape(B, C, HW).transpose(0, 2, 1).astype(jnp.float32)  # (B,HW,C)
    x_aug = jnp.concatenate(
        [x_tok, jnp.ones((B, HW, 1), jnp.float32)], axis=2)                  # (B,HW,C+1)

    c00 = wq @ wk.T                          # (C, C)
    c01 = (wq @ bk)[:, None]                 # (C, 1)   row-bias generator
    c10 = (wk @ bq)[None, :]                 # (1, C)   col-bias generator
    c11 = jnp.sum(bq * bk)[None, None]       # (1, 1)   constant bias
    a_aug = jnp.concatenate(
        [jnp.concatenate([c00, c01], axis=1),
         jnp.concatenate([c10, c11], axis=1)], axis=0).astype(jnp.float32)   # (C+1,C+1)
    return x_aug, a_aug


def _mratt_fused(x_aug, a_aug, rep):
    """Pallas: softmax(x Wq+bq . x Wk+bk) globally, upsampled to (4096, 4096)."""
    B, HW, Ca = x_aug.shape
    n_tiles = OUT_SIZE // ROWS_PER_TILE
    src_per_tile = ROWS_PER_TILE // rep

    # 0/1 expansion matrix for nearest-neighbour column repeat (fetched once).
    col_src = jnp.arange(OUT_SIZE) // rep
    ecol = (col_src[None, :] == jnp.arange(HW)[:, None]).astype(jnp.float32)  # (HW,4096)

    kernel = functools.partial(_mratt_fused_kernel, rep=rep,
                               src_per_tile=src_per_tile)
    return pl.pallas_call(
        kernel,
        out_shape=jax.ShapeDtypeStruct((B, OUT_SIZE, OUT_SIZE), jnp.float32),
        grid_spec=pltpu.PrefetchScalarGridSpec(
            num_scalar_prefetch=0,
            grid=(B, n_tiles),
            in_specs=[
                pl.BlockSpec((1, HW, Ca), lambda b, t: (b, 0, 0)),
                pl.BlockSpec((Ca, Ca), lambda b, t: (0, 0)),
                pl.BlockSpec((HW, OUT_SIZE), lambda b, t: (0, 0)),
            ],
            out_specs=pl.BlockSpec((1, ROWS_PER_TILE, OUT_SIZE),
                                   lambda b, t: (b, t, 0)),
            scratch_shapes=[pltpu.VMEM((HW, OUT_SIZE), jnp.float32)],
        ),
        compiler_params=pltpu.CompilerParams(
            dimension_semantics=("parallel", "arbitrary"),
            vmem_limit_bytes=32 * 1024 * 1024,
        ),
    )(x_aug, a_aug, ecol)


def _attention_jax(x_aug, a_aug):
    """Plain-JAX attention (fallback paths only)."""
    energy = jnp.einsum('bic,cd,bjd->bij', x_aug, a_aug, x_aug)
    B, HW, _ = energy.shape
    att = jax.nn.softmax(energy.reshape(B, -1), axis=-1)
    return att.reshape(B, HW, HW)


def _upsample_nearest(att, out_h, out_w):
    # nn.UpsamplingNearest2d: src = (dst * in_size) // out_size
    B, in_h, in_w = att.shape
    rows = (jnp.arange(out_h) * in_h) // out_h
    cols = (jnp.arange(out_w) * in_w) // out_w
    return att[:, rows, :][:, :, cols]


def mratt_forward(x_nchw, wq, bq, wk, bk):
    B, C, H, W = x_nchw.shape
    HW = H * W
    x_aug, a_aug = _fold_params(x_nchw, wq, bq, wk, bk)

    if H < 64:
        rep = OUT_SIZE // HW if OUT_SIZE % HW == 0 else 0
        if rep and rep <= ROWS_PER_TILE and ROWS_PER_TILE % rep == 0:
            return _mratt_fused(x_aug, a_aug, rep)
        # TODO(synk): H*W not dividing 4096 -> plain-JAX floor-index upsample fallback.
        return _upsample_nearest(_attention_jax(x_aug, a_aug), OUT_SIZE, OUT_SIZE)

    # TODO(synk): H >= 64 (HW >= 4096, no upsample) needs a tiled two-pass global
    # softmax kernel; plain-JAX fallback keeps the module semantics.
    return _attention_jax(x_aug, a_aug)


if __name__ == "__main__":
    key = jax.random.PRNGKey(0)
    B, C, H, W = 2, 8, 8, 8            # in_dim = 8 -> query/key channels = 2
    C4 = C // 4
    HW = H * W

    k1, k2, k3, k4, k5 = jax.random.split(key, 5)
    x = jax.random.normal(k1, (B, C, H, W), jnp.float32)
    # Conv2d 1x1 weights stored as (C_in, C_out).
    wq = jax.random.normal(k2, (C, C4), jnp.float32) * 0.1
    bq = jax.random.normal(k3, (C4,), jnp.float32) * 0.1
    wk = jax.random.normal(k4, (C, C4), jnp.float32) * 0.1
    bk = jax.random.normal(k5, (C4,), jnp.float32) * 0.1

    out = jax.block_until_ready(jax.jit(mratt_forward)(x, wq, bq, wk, bk))
    assert out.shape == (B, OUT_SIZE, OUT_SIZE)

    # Pure-JAX reference of the PyTorch module's math.
    xt = x.reshape(B, C, HW)
    q_ref = jnp.einsum('bci,co->bio', xt, wq) + bq          # proj_query (B, HW, C/4)
    k_ref = jnp.einsum('bci,co->bio', xt, wk) + bk          # proj_key   (B, HW, C/4)
    energy = jnp.einsum('bio,bjo->bij', q_ref, k_ref).reshape(B, -1)
    att_ref = jax.nn.softmax(energy, axis=-1).reshape(B, HW, HW)
    rep = OUT_SIZE // HW
    ref_up = jnp.repeat(jnp.repeat(att_ref, rep, axis=1), rep, axis=2)
    assert jnp.allclose(out, ref_up, atol=1e-5, rtol=1e-5), "kernel mismatch vs reference"

    print("KERNEL_OK")
</pallas_src>

<mosaic_0001>
module attributes {stable_mosaic.version = 11 : i64} {
  func.func @_mratt_fused_kernel(%arg0: i32, %arg1: i32, %arg2: memref<1x64x9xf32, #tpu.memory_space<vmem>>, %arg3: memref<9x9xf32, #tpu.memory_space<vmem>>, %arg4: memref<64x4096xf32, #tpu.memory_space<vmem>>, %arg5: memref<1x512x4096xf32, #tpu.memory_space<vmem>>, %arg6: memref<64x4096xf32, #tpu.memory_space<vmem>>) attributes {dimension_semantics = [#tpu.dimension_semantics<parallel>, #tpu.dimension_semantics<arbitrary>], iteration_bounds = array<i64: 2, 8>, scalar_prefetch = 0 : i64, scratch_operands = 1 : i64, tpu.core_type = #tpu.core_type<tc>, window_params = [{transform_indices = @transform_0, window_bounds = array<i64: 1, 64, 9>}, {pipeline_mode = #tpu.pipeline_mode<synchronous>, transform_indices = @transform_1, window_bounds = array<i64: 9, 9>}, {pipeline_mode = #tpu.pipeline_mode<synchronous>, transform_indices = @transform_2, window_bounds = array<i64: 64, 4096>}, {transform_indices = @transform_3, window_bounds = array<i64: 1, 512, 4096>}]} {
    %c0_i32 = arith.constant 0 : i32
    %0 = arith.cmpi eq, %arg1, %c0_i32 : i32
    %1 = arith.extui %0 : i1 to i32
    %c0_i32_0 = arith.constant 0 : i32
    %2 = arith.cmpi ne, %1, %c0_i32_0 : i32
    scf.if %2 {
      %c0_18 = arith.constant 0 : index
      %c0_19 = arith.constant 0 : index
      %c0_20 = arith.constant 0 : index
      %55 = vector.load %arg2[%c0_18, %c0_19, %c0_20] : memref<1x64x9xf32, #tpu.memory_space<vmem>>, vector<1x64x9xf32>
      %56 = vector.shape_cast %55 : vector<1x64x9xf32> to vector<64x9xf32>
      %c0_21 = arith.constant 0 : index
      %c0_22 = arith.constant 0 : index
      %57 = vector.load %arg3[%c0_21, %c0_22] : memref<9x9xf32, #tpu.memory_space<vmem>>, vector<9x9xf32>
      %cst = arith.constant dense<0.000000e+00> : vector<64x9xf32>
      %58 = tpu.matmul %56, %57, %cst {dimension_numbers = #tpu.dot_dimension_numbers<[1], [0], [0], [1], [0, 0, 1, 1], [], []>} : vector<64x9xf32>, vector<9x9xf32>, vector<64x9xf32> -> vector<64x9xf32>
      %cst_23 = arith.constant dense<0.000000e+00> : vector<64x64xf32>
      %59 = tpu.matmul %58, %56, %cst_23 {dimension_numbers = #tpu.dot_dimension_numbers<[1], [1], [0], [0], [0, 0, 1, 0], [], []>} : vector<64x9xf32>, vector<64x9xf32>, vector<64x64xf32> -> vector<64x64xf32>
      %60 = vector.shape_cast %59 : vector<64x64xf32> to vector<1x64x64xf32>
      %cst_24 = arith.constant dense<0xFF800000> : vector<1xf32>
      %61 = vector.multi_reduction <maximumf>, %60, %cst_24 [1, 2] : vector<1x64x64xf32> to vector<1xf32>
      %62 = vector.shape_cast %61 : vector<1xf32> to vector<1x1x1xf32>
      %63 = vector.extract %62[0, 0, 0] : f32 from vector<1x1x1xf32>
      %64 = vector.broadcast %63 : f32 to vector<64x64xf32>
      %65 = arith.subf %59, %64 : vector<64x64xf32>
      %66 = math.exp %65 : vector<64x64xf32>
      %67 = vector.shape_cast %66 : vector<64x64xf32> to vector<1x64x64xf32>
      %cst_25 = arith.constant dense<0.000000e+00> : vector<1xf32>
      %68 = vector.multi_reduction <add>, %67, %cst_25 [1, 2] : vector<1x64x64xf32> to vector<1xf32>
      %69 = vector.shape_cast %68 : vector<1xf32> to vector<1x1x1xf32>
      %70 = vector.extract %69[0, 0, 0] : f32 from vector<1x1x1xf32>
      %cst_26 = arith.constant 1.000000e+00 : f32
      %71 = arith.divf %cst_26, %70 : f32
      %72 = vector.broadcast %71 : f32 to vector<64x64xf32>
      %73 = arith.mulf %66, %72 : vector<64x64xf32>
      %c0_27 = arith.constant 0 : index
      %c0_28 = arith.constant 0 : index
      %74 = vector.load %arg4[%c0_27, %c0_28] : memref<64x4096xf32, #tpu.memory_space<vmem>>, vector<64x4096xf32>
      %cst_29 = arith.constant dense<0.000000e+00> : vector<64x4096xf32>
      %75 = tpu.matmul %73, %74, %cst_29 {dimension_numbers = #tpu.dot_dimension_numbers<[1], [0], [0], [1], [0, 0, 1, 1], [], []>} : vector<64x64xf32>, vector<64x4096xf32>, vector<64x4096xf32> -> vector<64x4096xf32>
      %c0_30 = arith.constant 0 : index
      %c0_31 = arith.constant 0 : index
      %76 = vector.load %arg6[%c0_30, %c0_31] : memref<64x4096xf32, #tpu.memory_space<vmem>>, vector<64x4096xf32>
      tpu.vector_store %arg6[%c0_30, %c0_31], %75 {strides = array<i32>} : memref<64x4096xf32, #tpu.memory_space<vmem>>, vector<64x4096xf32>,
    } else {
    }
    %c8_i32 = arith.constant 8 : i32
    %3 = arith.muli %arg1, %c8_i32 : i32
    %4 = tpu.assume_multiple %3, 8 : i32
    %5 = arith.index_cast %4 : i32 to index
    %c0 = arith.constant 0 : index
    %6 = vector.load %arg6[%5, %c0] : memref<64x4096xf32, #tpu.memory_space<vmem>>, vector<8x4096xf32>
    %7 = vector.extract_strided_slice %6 {offsets = [0, 0], sizes = [1, 4096], strides = [1, 1]} : vector<8x4096xf32> to vector<1x4096xf32>
    %8 = vector.shape_cast %7 : vector<1x4096xf32> to vector<1x4096xf32>
    %9 = vector.broadcast %8 : vector<1x4096xf32> to vector<64x4096xf32>
    %c0_1 = arith.constant 0 : index
    %c0_2 = arith.constant 0 : index
    %c0_3 = arith.constant 0 : index
    %10 = vector.load %arg5[%c0_1, %c0_2, %c0_3] : memref<1x512x4096xf32, #tpu.memory_space<vmem>>, vector<1x64x4096xf32>
    %11 = vector.shape_cast %10 : vector<1x64x4096xf32> to vector<64x4096xf32>
    %12 = vector.shape_cast %9 : vector<64x4096xf32> to vector<1x64x4096xf32>
    tpu.vector_store %arg5[%c0_1, %c0_2, %c0_3], %12 {strides = array<i32>} : memref<1x512x4096xf32, #tpu.memory_space<vmem>>, vector<1x64x4096xf32>,
    %13 = vector.extract_strided_slice %6 {offsets = [1, 0], sizes = [1, 4096], strides = [1, 1]} : vector<8x4096xf32> to vector<1x4096xf32>
    %14 = vector.shape_cast %13 : vector<1x4096xf32> to vector<1x4096xf32>
    %15 = vector.broadcast %14 : vector<1x4096xf32> to vector<64x4096xf32>
    %c0_4 = arith.constant 0 : index
    %c64 = arith.constant 64 : index
    %c0_5 = arith.constant 0 : index
    %16 = vector.load %arg5[%c0_4, %c64, %c0_5] : memref<1x512x4096xf32, #tpu.memory_space<vmem>>, vector<1x64x4096xf32>
    %17 = vector.shape_cast %16 : vector<1x64x4096xf32> to vector<64x4096xf32>
    %18 = vector.shape_cast %15 : vector<64x4096xf32> to vector<1x64x4096xf32>
    tpu.vector_store %arg5[%c0_4, %c64, %c0_5], %18 {strides = array<i32>} : memref<1x512x4096xf32, #tpu.memory_space<vmem>>, vector<1x64x4096xf32>,
    %19 = vector.extract_strided_slice %6 {offsets = [2, 0], sizes = [1, 4096], strides = [1, 1]} : vector<8x4096xf32> to vector<1x4096xf32>
    %20 = vector.shape_cast %19 : vector<1x4096xf32> to vector<1x4096xf32>
    %21 = vector.broadcast %20 : vector<1x4096xf32> to vector<64x4096xf32>
    %c0_6 = arith.constant 0 : index
    %c128 = arith.constant 128 : index
    %c0_7 = arith.constant 0 : index
    %22 = vector.load %arg5[%c0_6, %c128, %c0_7] : memref<1x512x4096xf32, #tpu.memory_space<vmem>>, vector<1x64x4096xf32>
    %23 = vector.shape_cast %22 : vector<1x64x4096xf32> to vector<64x4096xf32>
    %24 = vector.shape_cast %21 : vector<64x4096xf32> to vector<1x64x4096xf32>
    tpu.vector_store %arg5[%c0_6, %c128, %c0_7], %24 {strides = array<i32>} : memref<1x512x4096xf32, #tpu.memory_space<vmem>>, vector<1x64x4096xf32>,
    %25 = vector.extract_strided_slice %6 {offsets = [3, 0], sizes = [1, 4096], strides = [1, 1]} : vector<8x4096xf32> to vector<1x4096xf32>
    %26 = vector.shape_cast %25 : vector<1x4096xf32> to vector<1x4096xf32>
    %27 = vector.broadcast %26 : vector<1x4096xf32> to vector<64x4096xf32>
    %c0_8 = arith.constant 0 : index
    %c192 = arith.constant 192 : index
    %c0_9 = arith.constant 0 : index
    %28 = vector.load %arg5[%c0_8, %c192, %c0_9] : memref<1x512x4096xf32, #tpu.memory_space<vmem>>, vector<1x64x4096xf32>
    %29 = vector.shape_cast %28 : vector<1x64x4096xf32> to vector<64x4096xf32>
    %30 = vector.shape_cast %27 : vector<64x4096xf32> to vector<1x64x4096xf32>
    tpu.vector_store %arg5[%c0_8, %c192, %c0_9], %30 {strides = array<i32>} : memref<1x512x4096xf32, #tpu.memory_space<vmem>>, vector<1x64x4096xf32>,
    %31 = vector.extract_strided_slice %6 {offsets = [4, 0], sizes = [1, 4096], strides = [1, 1]} : vector<8x4096xf32> to vector<1x4096xf32>
    %32 = vector.shape_cast %31 : vector<1x4096xf32> to vector<1x4096xf32>
    %33 = vector.broadcast %32 : vector<1x4096xf32> to vector<64x4096xf32>
    %c0_10 = arith.constant 0 : index
    %c256 = arith.constant 256 : index
    %c0_11 = arith.constant 0 : index
    %34 = vector.load %arg5[%c0_10, %c256, %c0_11] : memref<1x512x4096xf32, #tpu.memory_space<vmem>>, vector<1x64x4096xf32>
    %35 = vector.shape_cast %34 : vector<1x64x4096xf32> to vector<64x4096xf32>
    %36 = vector.shape_cast %33 : vector<64x4096xf32> to vector<1x64x4096xf32>
    tpu.vector_store %arg5[%c0_10, %c256, %c0_11], %36 {strides = array<i32>} : memref<1x512x4096xf32, #tpu.memory_space<vmem>>, vector<1x64x4096xf32>,
    %37 = vector.extract_strided_slice %6 {offsets = [5, 0], sizes = [1, 4096], strides = [1, 1]} : vector<8x4096xf32> to vector<1x4096xf32>
    %38 = vector.shape_cast %37 : vector<1x4096xf32> to vector<1x4096xf32>
    %39 = vector.broadcast %38 : vector<1x4096xf32> to vector<64x4096xf32>
    %c0_12 = arith.constant 0 : index
    %c320 = arith.constant 320 : index
    %c0_13 = arith.constant 0 : index
    %40 = vector.load %arg5[%c0_12, %c320, %c0_13] : memref<1x512x4096xf32, #tpu.memory_space<vmem>>, vector<1x64x4096xf32>
    %41 = vector.shape_cast %40 : vector<1x64x4096xf32> to vector<64x4096xf32>
    %42 = vector.shape_cast %39 : vector<64x4096xf32> to vector<1x64x4096xf32>
    tpu.vector_store %arg5[%c0_12, %c320, %c0_13], %42 {strides = array<i32>} : memref<1x512x4096xf32, #tpu.memory_space<vmem>>, vector<1x64x4096xf32>,
    %43 = vector.extract_strided_slice %6 {offsets = [6, 0], sizes = [1, 4096], strides = [1, 1]} : vector<8x4096xf32> to vector<1x4096xf32>
    %44 = vector.shape_cast %43 : vector<1x4096xf32> to vector<1x4096xf32>
    %45 = vector.broadcast %44 : vector<1x4096xf32> to vector<64x4096xf32>
    %c0_14 = arith.constant 0 : index
    %c384 = arith.constant 384 : index
    %c0_15 = arith.constant 0 : index
    %46 = vector.load %arg5[%c0_14, %c384, %c0_15] : memref<1x512x4096xf32, #tpu.memory_space<vmem>>, vector<1x64x4096xf32>
    %47 = vector.shape_cast %46 : vector<1x64x4096xf32> to vector<64x4096xf32>
    %48 = vector.shape_cast %45 : vector<64x4096xf32> to vector<1x64x4096xf32>
    tpu.vector_store %arg5[%c0_14, %c384, %c0_15], %48 {strides = array<i32>} : memref<1x512x4096xf32, #tpu.memory_space<vmem>>, vector<1x64x4096xf32>,
    %49 = vector.extract_strided_slice %6 {offsets = [7, 0], sizes = [1, 4096], strides = [1, 1]} : vector<8x4096xf32> to vector<1x4096xf32>
    %50 = vector.shape_cast %49 : vector<1x4096xf32> to vector<1x4096xf32>
    %51 = vector.broadcast %50 : vector<1x4096xf32> to vector<64x4096xf32>
    %c0_16 = arith.constant 0 : index
    %c448 = arith.constant 448 : index
    %c0_17 = arith.constant 0 : index
    %52 = vector.load %arg5[%c0_16, %c448, %c0_17] : memref<1x512x4096xf32, #tpu.memory_space<vmem>>, vector<1x64x4096xf32>
    %53 = vector.shape_cast %52 : vector<1x64x4096xf32> to vector<64x4096xf32>
    %54 = vector.shape_cast %51 : vector<64x4096xf32> to vector<1x64x4096xf32>
    tpu.vector_store %arg5[%c0_16, %c448, %c0_17], %54 {strides = array<i32>} : memref<1x512x4096xf32, #tpu.memory_space<vmem>>, vector<1x64x4096xf32>,
    return
  }
  func.func @transform_0(%arg0: i32, %arg1: i32) -> (i32, i32, i32) {
    %c0_i32 = arith.constant 0 : i32
    %c0_i32_0 = arith.constant 0 : i32
    %c0_i32_1 = arith.constant 0 : i32
    return %arg0, %c0_i32, %c0_i32_0 : i32, i32, i32
  }
  func.func @transform_1(%arg0: i32, %arg1: i32) -> (i32, i32) {
    %c0_i32 = arith.constant 0 : i32
    %c0_i32_0 = arith.constant 0 : i32
    %c0_i32_1 = arith.constant 0 : i32
    return %c0_i32, %c0_i32_0 : i32, i32
  }
  func.func @transform_2(%arg0: i32, %arg1: i32) -> (i32, i32) {
    %c0_i32 = arith.constant 0 : i32
    %c0_i32_0 = arith.constant 0 : i32
    %c0_i32_1 = arith.constant 0 : i32
    return %c0_i32, %c0_i32_0 : i32, i32
  }
  func.func @transform_3(%arg0: i32, %arg1: i32) -> (i32, i32, i32) {
    %c0_i32 = arith.constant 0 : i32
    %c0_i32_0 = arith.constant 0 : i32
    return %arg0, %arg1, %c0_i32 : i32, i32, i32
  }
}

</mosaic_0001>

<llo_original>
// kernel: mratt_forward.1
$region0: #{mratt_forward.1}
  #allocation0 [shape = 'u32[]', space=smem, size = 0x4, offset = 0x4, fixed_abs, tag = 'smem constant byte address 0x4 - core index']
  #allocation1 [shape = 'u32[72,128]{1,0:T(1,128)}', space=vmem, size = 0x9000, scoped, tag = 'internal scratch']
  #allocation2 [shape = 'f32[64,4096]{1,0:T(8,128)}', space=vmem, size = 0x100000, scoped, tag = 'scratch operand']
  %s0 = inlined_call_operand.vmem [shape: f32[2,64,9], index: 0, kind: input, shape index: {}]
  %s1 = inlined_call_operand.vmem [shape: f32[9,9], index: 1, kind: input, shape index: {}]
  %s2 = inlined_call_operand.vmem [shape: f32[64,4096], index: 2, kind: input, shape index: {}]
  %s3 = inlined_call_operand.hbm [shape: f32[2,4096,4096], index: 3, kind: output, shape index: {}]
  %s4 = sld [smem:[#allocation0]]
  $region49: #{mratt_forward.1} parent=0
    _
  %s6 = ssub.s32 1, %s4
  %s7 = scalar_select 0, %s6, %s4
  $region1: #{mratt_forward.1} parent=0
    #allocation3 [shape = 'u8[16777216]{0}', space=vmem, size = 0x1000000, scoped, tag = 'output window, operand 0']
    #allocation4 [shape = 's32[2]{0}', space=sflag, size = 0x8, scoped, tag = 'scoped memory for mratt_forward.1']
    %8 = vsyncpa [#allocation4], 0
    %s9 = scalar_lea.sflag [#allocation4], 1
    %10 = vsyncpa %s9, 0
    loop: start=0, step=1, limit=18
    $region2: #{mratt_forward.1} parent=1 // loop_pre_header
      _
    $region3: #{mratt_forward.1} parent=1 // loop_header
      %s12 = sphi 0, %s16
      %p13 = scmp.ge.s32.totalorder %s12, 18
      %s19 = sphi 0, %s31
      %s20 = sphi 0, %s27
      %s21 = sphi 0, %s19
      %s22 = sphi 0, %s20
      %s23 = sphi 0, %s21
      %s24 = sphi 0, %s22
      %s34 = sphi 0, %s36
      %s37 = sphi 0, %s34
      %s38 = sphi 0, %s37
      %s54 = sphi 0, %s38
      %s58 = sphi 0, %s58
      %s60 = sphi 0, %s58
      %s61 = sphi 0, %s60
      %s75 = sphi 0, %s61
      %s79 = sphi 0, %s79
      %s81 = sphi 0, %s79
      %s82 = sphi 0, %s81
      %s96 = sphi 0, %s82
      %s104 = sphi 0, %s106
      %s107 = sphi 0, %s104
      %s108 = sphi 0, %s107
      %s124 = sphi 0, %s108
    $region4: #{mratt_forward.1} parent=1 // loop_header_branch
      %15 = sbr.rel (%p13) target = $region8
    $region5: #{mratt_forward.1} parent=1 // loop_body
      %s17 = ssub.s32 %s12, 1
      %s18 = ssub.s32 %s12, 2
      %s25 = sadd.s32 1, %s20
      %p26 = scmp.ge.s32.totalorder %s25, 8
      %s27 = scalar_select %p26, 0, %s25
      %s28 = sadd.s32 1, %s19
      %s29 = scalar_select %p26, %s28, %s19
      %p30 = scmp.ge.s32.totalorder %s29, 2
      %s31 = scalar_select %p30, 0, %s29
      %s32 = ssub.s32 %s19, %s31
      %p33 = scmp.eq.s32.totalorder %s32, 0
      %s35 = sadd.s32 %s34, 1
      %s36 = scalar_select %p33, %s34, %s35
      %p39 = pneg %p33
      %p40 = scmp.eq.s32.totalorder %s12, 15
      %p41 = por %p39, %p40
      %p42 = scmp.ne.s32.totalorder %s34, %s37
      %p43 = scmp.eq.s32.totalorder %s12, 0
      %p44 = por %p42, %p43
      %p45 = scmp.ne.s32.totalorder %s34, %s37
      %p46 = scmp.eq.s32.totalorder %s17, 15
      %p47 = por %p45, %p46
      %p48 = scmp.ne.s32.totalorder %s37, %s38
      %p49 = scmp.eq.s32.totalorder %s17, 0
      %p50 = por %p48, %p49
      %p51 = scmp.ne.s32.totalorder %s37, %s38
      %p52 = scmp.eq.s32.totalorder %s18, 15
      %p53 = por %p51, %p52
      %p55 = scmp.ne.s32.totalorder %s38, %s54
      %p56 = scmp.eq.s32.totalorder %s18, 0
      %p57 = por %p55, %p56
      %s59 = sadd.s32 %s58, 1
      %p62 = scmp.eq.s32.totalorder %s12, 15
      %p63 = scmp.ne.s32.totalorder %s58, %s60
      %p64 = scmp.eq.s32.totalorder %s12, 0
      %p65 = por %p63, %p64
      %p66 = scmp.ne.s32.totalorder %s58, %s60
      %p67 = scmp.eq.s32.totalorder %s17, 15
      %p68 = por %p66, %p67
      %p69 = scmp.ne.s32.totalorder %s60, %s61
      %p70 = scmp.eq.s32.totalorder %s17, 0
      %p71 = por %p69, %p70
      %p72 = scmp.ne.s32.totalorder %s60, %s61
      %p73 = scmp.eq.s32.totalorder %s18, 15
      %p74 = por %p72, %p73
      %p76 = scmp.ne.s32.totalorder %s61, %s75
      %p77 = scmp.eq.s32.totalorder %s18, 0
      %p78 = por %p76, %p77
      %s80 = sadd.s32 %s79, 1
      %p83 = scmp.eq.s32.totalorder %s12, 15
      %p84 = scmp.ne.s32.totalorder %s79, %s81
      %p85 = scmp.eq.s32.totalorder %s12, 0
      %p86 = por %p84, %p85
      %p87 = scmp.ne.s32.totalorder %s79, %s81
      %p88 = scmp.eq.s32.totalorder %s17, 15
      %p89 = por %p87, %p88
      %p90 = scmp.ne.s32.totalorder %s81, %s82
      %p91 = scmp.eq.s32.totalorder %s17, 0
      %p92 = por %p90, %p91
      %p93 = scmp.ne.s32.totalorder %s81, %s82
      %p94 = scmp.eq.s32.totalorder %s18, 15
      %p95 = por %p93, %p94
      %p97 = scmp.ne.s32.totalorder %s82, %s96
      %p98 = scmp.eq.s32.totalorder %s18, 0
      %p99 = por %p97, %p98
      %s100 = ssub.s32 %s19, %s31
      %s101 = ssub.s32 %s20, %s27
      %s102 = sor.u32 %s100, %s101
      %p103 = scmp.eq.s32.totalorder %s102, 0
      %s105 = sadd.s32 %s104, 1
      %s106 = scalar_select %p103, %s104, %s105
      %p109 = pneg %p103
      %p110 = scmp.eq.s32.totalorder %s12, 15
      %p111 = por %p109, %p110
      %p112 = scmp.ne.s32.totalorder %s104, %s107
      %p113 = scmp.eq.s32.totalorder %s12, 0
      %p114 = por %p112, %p113
      %p115 = scmp.ne.s32.totalorder %s104, %s107
      %p116 = scmp.eq.s32.totalorder %s17, 15
      %p117 = por %p115, %p116
      %p118 = scmp.ne.s32.totalorder %s107, %s108
      %p119 = scmp.eq.s32.totalorder %s17, 0
      %p120 = por %p118, %p119
      %p121 = scmp.ne.s32.totalorder %s107, %s108
      %p122 = scmp.eq.s32.totalorder %s18, 15
      %p123 = por %p121, %p122
      %p125 = scmp.ne.s32.totalorder %s108, %s124
      %p126 = scmp.eq.s32.totalorder %s18, 0
      %p127 = por %p125, %p126
      %p128 = scmp.le.s32.totalorder 1, %s12
      %p129 = scmp.lt.s32.totalorder %s12, 17
      %p130 = pnand %p128, %p129
      %p131 = pneg %p130
      // Predicated region
      $region9: #{mratt_forward.1} parent=5 // pred_check
        _
      $region10: #{mratt_forward.1} parent=5 // pred_check_branch
        %133 = sbr.rel (%p130) target = $region12
      $region11: #{mratt_forward.1} parent=5 // pred_region
        %s134 = ssub.s32 %s12, 1
        // Predicated region
        $region13: #{mratt_forward.1} parent=11 // pred_check
          %p135 = pneg %p71
        $region14: #{mratt_forward.1} parent=11 // pred_check_branch
          %137 = sbr.rel (%p135) target = $region16
        $region15: #{mratt_forward.1} parent=11 // pred_region
          _
        $region16: #{mratt_forward.1} parent=11 // pred_fallthru
          _
        // Predicated region
        $region17: #{mratt_forward.1} parent=11 // pred_check
          %p138 = pneg %p92
        $region18: #{mratt_forward.1} parent=11 // pred_check_branch
          %140 = sbr.rel (%p138) target = $region20
        $region19: #{mratt_forward.1} parent=11 // pred_region
          _
        $region20: #{mratt_forward.1} parent=11 // pred_fallthru
          _
      $region12: #{mratt_forward.1} parent=5 // pred_fallthru
        _
      %p141 = scmp.lt.s32.totalorder %s12, 16
      // Predicated region
      $region21: #{mratt_forward.1} parent=5 // pred_check
        %p142 = pneg %p141
      $region22: #{mratt_forward.1} parent=5 // pred_check_branch
        %144 = sbr.rel (%p142) target = $region24
      $region23: #{mratt_forward.1} parent=5 // pred_region
        // Predicated region
        $region25: #{mratt_forward.1} parent=23 // pred_check
          %p145 = pneg %p44
        $region26: #{mratt_forward.1} parent=23 // pred_check_branch
          %147 = sbr.rel (%p145) target = $region28
        $region27: #{mratt_forward.1} parent=23 // pred_region
          %p148 = scmp.lt.s32.totalorder %s19, 1
          %s149 = scalar_select %p148, %s19, 1
          %s150 = smul.addr %s149, 8
          %s151 = smul.addr %s150, 8
          %s152 = scalar_lea.vmem %s0, %s151
        $region28: #{mratt_forward.1} parent=23 // pred_fallthru
          _
      $region24: #{mratt_forward.1} parent=5 // pred_fallthru
        _
      %p153 = scmp.le.s32.totalorder 1, %s12
      %p154 = scmp.lt.s32.totalorder %s12, 17
      %p155 = pnand %p153, %p154
      %p156 = pneg %p155
      // Predicated region
      $region29: #{mratt_forward.1} parent=5 // pred_check
        _
      $region30: #{mratt_forward.1} parent=5 // pred_check_branch
        %158 = sbr.rel (%p155) target = $region32
      $region31: #{mratt_forward.1} parent=5 // pred_region
        %s159 = ssub.s32 %s12, 1
        %p160 = scmp.lt.s32.totalorder %s21, 1
        %s161 = scalar_select %p160, %s21, 1
        %s162 = smul.addr %s161, 8
        %s163 = smul.addr %s162, 8
        %s164 = scalar_lea.vmem %s0, %s163
        %p165 = pneg %p50
        %p166 = pneg %p47
        %p167 = pneg %p71
        %p168 = pneg %p68
        %p169 = pneg %p92
        %p170 = pneg %p89
        %p171 = pneg %p120
        %p172 = pneg %p117
        %s173 = sand.u32 %s107, 1
        %s174 = scalar_lea.sflag [#allocation4], %s173
        %s175 = sand.u32 %s107, 1
        %s176 = smul.addr %s175, 16384
        %s177 = scalar_lea.vmem [#allocation3], %s176
        %p178 = scmp.lt.s32.totalorder %s21, 1
        %s179 = scalar_select %p178, %s21, 1
        %s180 = smul.addr %s179, 8
        %s181 = smul.addr %s180, 8
        %s182 = scalar_lea.vmem %s0, %s181
        %s183 = smul.u32 64, %s22
        %p184 = scmp.eq.s32.totalorder %s22, 0
        // Predicated region
        $region33: #{mratt_forward.1} parent=31 // pred_check
          %p185 = pneg %p184
        $region34: #{mratt_forward.1} parent=31 // pred_check_branch
          %187 = sbr.rel (%p185) target = $region36
        $region35: #{mratt_forward.1} parent=31 // pred_region
          %v188 = vld [vmem:[%s182] sm:$0xff]
          %v189 = vld [vmem:[%s182 + $0x8] sm:$0xff]
          %v190 = vld [vmem:[%s182 + $0x10] sm:$0xff]
          %v191 = vld [vmem:[%s182 + $0x18] sm:$0xff]
          %v192 = vld [vmem:[%s182 + $0x20] sm:$0xff]
          %v193 = vld [vmem:[%s182 + $0x28] sm:$0xff]
          %v194 = vld [vmem:[%s182 + $0x30] sm:$0xff]
          %v195 = vld [vmem:[%s182 + $0x38] sm:$0xff]
          %v196 = vld [vmem:[%s1] sm:$0xff]
          %v197 = vld [vmem:[%s1 + $0x8] sm:$0x1]
          %vm198 = vcmask 72704
          %v200 = vsel %vm198, %v188, 0
          %v203 = vsel %vm198, %v189, 0
          %v206 = vsel %vm198, %v190, 0
          %v209 = vsel %vm198, %v191, 0
          %v212 = vsel %vm198, %v192, 0
          %v215 = vsel %vm198, %v193, 0
          %v218 = vsel %vm198, %v194, 0
          %v221 = vsel %vm198, %v195, 0
          %vm223 = vcmask 1040384
          %v225 = vsel %vm223, %v197, 0
          %227 = vmatpush.msra.mxu0 0.0
          %228 = vmatpush.msra.mxu0 0.0
          %229 = vmatpush.msra.mxu0 0.0
          %230 = vmatpush.msra.mxu0 0.0
          %231 = vmatpush.msra.mxu0 0.0
          %232 = vmatpush.msra.mxu0 0.0
          %233 = vmatpush.msra.mxu0 0.0
          %234 = vmatpush.msra.mxu0 0.0
          %235 = vmatpush.msra.mxu0 0.0
          %236 = vmatpush.msra.mxu0 0.0
          %237 = vmatpush.msra.mxu0 0.0
          %238 = vmatpush.msra.mxu0 0.0
          %239 = vmatpush.msra.mxu0 0.0
          %240 = vmatpush.msra.mxu0 0.0
          %241 = vmatpush.msra.mxu0 %v225
          %242 = vmatpush.msra.mxu0 %v196
          %243 = vmatmul.f32.gmra.mxu0 %v200
          %v244 = vpop.f32.mrf.mxu0
          %v245 = vadd.f32 0.0, %v244
          %246 = vmatmul.f32.gmra.mxu0 %v203
          %v247 = vpop.f32.mrf.mxu0
          %v248 = vadd.f32 0.0, %v247
          %249 = vmatmul.f32.gmra.mxu0 %v206
          %v250 = vpop.f32.mrf.mxu0
          %v251 = vadd.f32 0.0, %v250
          %252 = vmatmul.f32.gmra.mxu0 %v209
          %v253 = vpop.f32.mrf.mxu0
          %v254 = vadd.f32 0.0, %v253
          %255 = vmatmul.f32.gmra.mxu0 %v212
          %v256 = vpop.f32.mrf.mxu0
          %v257 = vadd.f32 0.0, %v256
          %258 = vmatmul.f32.gmra.mxu0 %v215
          %v259 = vpop.f32.mrf.mxu0
          %v260 = vadd.f32 0.0, %v259
          %261 = vmatmul.f32.gmra.mxu0 %v218
          %v262 = vpop.f32.mrf.mxu0
          %v263 = vadd.f32 0.0, %v262
          %264 = vmatmul.f32.gmra.mxu0 %v221
          %v265 = vpop.f32.mrf.mxu0
          %v266 = vadd.f32 0.0, %v265
          %267 = vdwg.mxu0
          %v269 = vsel %vm198, %v245, 0
          %v272 = vsel %vm198, %v248, 0
          %v275 = vsel %vm198, %v251, 0
          %v278 = vsel %vm198, %v254, 0
          %v281 = vsel %vm198, %v257, 0
          %v284 = vsel %vm198, %v260, 0
          %v287 = vsel %vm198, %v263, 0
          %v290 = vsel %vm198, %v266, 0
          %292 = vmatpush.xpose.msra.mxu0 0.0
          %293 = vmatpush.xpose.msra.mxu0 0.0
          %294 = vmatpush.xpose.msra.mxu0 0.0
          %295 = vmatpush.xpose.msra.mxu0 0.0
          %296 = vmatpush.xpose.msra.mxu0 0.0
          %297 = vmatpush.xpose.msra.mxu0 0.0
          %298 = vmatpush.xpose.msra.mxu0 0.0
          %299 = vmatpush.xpose.msra.mxu0 0.0
          %300 = vmatpush.xpose.msra.mxu0 %v221
          %301 = vmatpush.xpose.msra.mxu0 %v218
          %302 = vmatpush.xpose.msra.mxu0 %v215
          %303 = vmatpush.xpose.msra.mxu0 %v212
          %304 = vmatpush.xpose.msra.mxu0 %v209
          %305 = vmatpush.xpose.msra.mxu0 %v206
          %306 = vmatpush.xpose.msra.mxu0 %v203
          %307 = vmatpush.xpose.msra.mxu0 %v200
          %308 = vmatmul.f32.gmra.mxu0 %v269
          %v309 = vpop.f32.mrf.mxu0
          %v310 = vadd.f32 0.0, %v309
          %311 = vmatmul.f32.gmra.mxu0 %v272
          %v312 = vpop.f32.mrf.mxu0
          %v313 = vadd.f32 0.0, %v312
          %314 = vmatmul.f32.gmra.mxu0 %v275
          %v315 = vpop.f32.mrf.mxu0
          %v316 = vadd.f32 0.0, %v315
          %317 = vmatmul.f32.gmra.mxu0 %v278
          %v318 = vpop.f32.mrf.mxu0
          %v319 = vadd.f32 0.0, %v318
          %320 = vmatmul.f32.gmra.mxu0 %v281
          %v321 = vpop.f32.mrf.mxu0
          %v322 = vadd.f32 0.0, %v321
          %323 = vmatmul.f32.gmra.mxu0 %v284
          %v324 = vpop.f32.mrf.mxu0
          %v325 = vadd.f32 0.0, %v324
          %326 = vmatmul.f32.gmra.mxu0 %v287
          %v327 = vpop.f32.mrf.mxu0
          %v328 = vadd.f32 0.0, %v327
          %329 = vmatmul.f32.gmra.mxu0 %v290
          %v330 = vpop.f32.mrf.mxu0
          %v331 = vadd.f32 0.0, %v330
          %332 = vdwg.mxu0
          %vm333 = vcmask 523264
          %v334 = vsel %vm333, %v310, -inf
          %v335 = vsel %vm333, %v313, -inf
          %v336 = vsel %vm333, %v316, -inf
          %v337 = vsel %vm333, %v319, -inf
          %v338 = vsel %vm333, %v322, -inf
          %v339 = vmax.f32 %v334, %v338
          %v340 = vsel %vm333, %v325, -inf
          %v341 = vmax.f32 %v335, %v340
          %v342 = vsel %vm333, %v328, -inf
          %v343 = vmax.f32 %v336, %v342
          %v344 = vsel %vm333, %v331, -inf
          %v345 = vmax.f32 %v337, %v344
          %v346 = vmax.f32 %v339, %v341
          %v347 = vmax.f32 %v343, %v345
          %v348 = vmax.f32 %v346, %v347
          %349 = vmax.xlane.f32.xlu0 %v348
          %v350 = vpop.xlane.xlu0 %349
          %v351 = vrot.slane %v350, 4
          %v352 = vmax.f32 %v350, %v351
          %v353 = vrot.slane %v352, 2
          %v354 = vmax.f32 %v352, %v353
          %v355 = vrot.slane %v354, 1
          %v356 = vmax.f32 %v354, %v355
          %s357 = vtos %v356
          %v358 = vstv %s357
          %v359 = vsub.f32 %v310, %v358
          %v360 = vsub.f32 %v313, %v358
          %v361 = vsub.f32 %v316, %v358
          %v362 = vsub.f32 %v319, %v358
          %v363 = vsub.f32 %v322, %v358
          %v364 = vsub.f32 %v325, %v358
          %v365 = vsub.f32 %v328, %v358
          %v366 = vsub.f32 %v331, %v358
          %v367 = vmul.f32 %v359, 1.442695
          %v368 = vpow.pop %v367
          %v369 = vmul.f32 %v360, 1.442695
          %v370 = vpow.pop %v369
          %v371 = vmul.f32 %v361, 1.442695
          %v372 = vpow.pop %v371
          %v373 = vmul.f32 %v362, 1.442695
          %v374 = vpow.pop %v373
          %v375 = vmul.f32 %v363, 1.442695
          %v376 = vpow.pop %v375
          %v377 = vmul.f32 %v364, 1.442695
          %v378 = vpow.pop %v377
          %v379 = vmul.f32 %v365, 1.442695
          %v380 = vpow.pop %v379
          %v381 = vmul.f32 %v366, 1.442695
          %v382 = vpow.pop %v381
          %v383 = vsel %vm333, %v368, 0.0
          %v384 = vsel %vm333, %v370, 0.0
          %v385 = vadd.f32 %v383, %v384
          %v386 = vsel %vm333, %v372, 0.0
          %v387 = vadd.f32 %v385, %v386
          %v388 = vsel %vm333, %v374, 0.0
          %v389 = vadd.f32 %v387, %v388
          %v390 = vsel %vm333, %v376, 0.0
          %v391 = vadd.f32 %v389, %v390
          %v392 = vsel %vm333, %v378, 0.0
          %v393 = vadd.f32 %v391, %v392
          %v394 = vsel %vm333, %v380, 0.0
          %v395 = vadd.f32 %v393, %v394
          %v396 = vsel %vm333, %v382, 0.0
          %v397 = vadd.f32 %v395, %v396
          %398 = vadd.xlane.f32.xlu0 %v397
          %v399 = vpop.xlane.xlu0 %398
          %v400 = vrot.slane %v399, 4
          %v401 = vadd.f32 %v399, %v400
          %v402 = vrot.slane %v401, 2
          %v403 = vadd.f32 %v401, %v402
          %v404 = vrot.slane %v403, 1
          %v405 = vadd.f32 %v403, %v404
          %s406 = vtos %v405
          %v407 = vstv %s406
          %v408 = vrcp.pop %v407
          %v409 = vmul.f32 %v407, %v408
          %v410 = vsub.f32 1.0, %v409
          %v411 = vmul.f32 %v408, %v410
          %v412 = vadd.f32 %v408, %v411
          %vm413 = vweird.f32 %v407
          %vm414 = vweird.f32 %v408
          %vm415 = vmor %vm413, %vm414
          %v416 = vsel %vm415, %v408, %v412
          %v417 = vand.u32 2147483647, %v407
          %vm418 = vcmp.eq.f32.partialorder %v417, 8.507059e+37
          %v419 = vand.u32 %v407, 2147483648
          %v420 = vor.u32 1.1754944e-38, %v419
          %v421 = vsel %vm418, %v420, %v416
          %s422 = vtos %v421
          %v423 = vstv %s422
          %v424 = vmul.f32 %v368, %v423
          %v425 = vmul.f32 %v370, %v423
          %v426 = vmul.f32 %v372, %v423
          %v427 = vmul.f32 %v374, %v423
          %v428 = vmul.f32 %v376, %v423
          %v429 = vmul.f32 %v378, %v423
          %v430 = vmul.f32 %v380, %v423
          %v431 = vmul.f32 %v382, %v423
          %v432 = vld [vmem:[%s2] sm:$0xff]
          %v433 = vld [vmem:[%s2 + $0x8] sm:$0xff]
          %v434 = vld [vmem:[%s2 + $0x10] sm:$0xff]
          %v435 = vld [vmem:[%s2 + $0x18] sm:$0xff]
          %v436 = vld [vmem:[%s2 + $0x20] sm:$0xff]
          %v437 = vld [vmem:[%s2 + $0x28] sm:$0xff]
          %v438 = vld [vmem:[%s2 + $0x30] sm:$0xff]
          %v439 = vld [vmem:[%s2 + $0x38] sm:$0xff]
          %v440 = vld [vmem:[%s2 + $0x40] sm:$0xff]
          %v441 = vld [vmem:[%s2 + $0x48] sm:$0xff]
          %v442 = vld [vmem:[%s2 + $0x50] sm:$0xff]
          %v443 = vld [vmem:[%s2 + $0x58] sm:$0xff]
          %v444 = vld [vmem:[%s2 + $0x60] sm:$0xff]
          %v445 = vld [vmem:[%s2 + $0x68] sm:$0xff]
          %v446 = vld [vmem:[%s2 + $0x70] sm:$0xff]
          %v447 = vld [vmem:[%s2 + $0x78] sm:$0xff]
          %v448 = vld [vmem:[%s2 + $0x80] sm:$0xff]
          %v449 = vld [vmem:[%s2 + $0x88] sm:$0xff]
          %v450 = vld [vmem:[%s2 + $0x90] sm:$0xff]
          %v451 = vld [vmem:[%s2 + $0x98] sm:$0xff]
          %v452 = vld [vmem:[%s2 + $0xa0] sm:$0xff]
          %v453 = vld [vmem:[%s2 + $0xa8] sm:$0xff]
          %v454 = vld [vmem:[%s2 + $0xb0] sm:$0xff]
          %v455 = vld [vmem:[%s2 + $0xb8] sm:$0xff]
          %v456 = vld [vmem:[%s2 + $0xc0] sm:$0xff]
          %v457 = vld [vmem:[%s2 + $0xc8] sm:$0xff]
          %v458 = vld [vmem:[%s2 + $0xd0] sm:$0xff]
          %v459 = vld [vmem:[%s2 + $0xd8] sm:$0xff]
          %v460 = vld [vmem:[%s2 + $0xe0] sm:$0xff]
          %v461 = vld [vmem:[%s2 + $0xe8] sm:$0xff]
          %v462 = vld [vmem:[%s2 + $0xf0] sm:$0xff]
          %v463 = vld [vmem:[%s2 + $0xf8] sm:$0xff]
          %v464 = vld [vmem:[%s2 + $0x100] sm:$0xff]
          %v465 = vld [vmem:[%s2 + $0x108] sm:$0xff]
          %v466 = vld [vmem:[%s2 + $0x110] sm:$0xff]
          %v467 = vld [vmem:[%s2 + $0x118] sm:$0xff]
          %v468 = vld [vmem:[%s2 + $0x120] sm:$0xff]
          %v469 = vld [vmem:[%s2 + $0x128] sm:$0xff]
          %v470 = vld [vmem:[%s2 + $0x130] sm:$0xff]
          %v471 = vld [vmem:[%s2 + $0x138] sm:$0xff]
          %v472 = vld [vmem:[%s2 + $0x140] sm:$0xff]
          %v473 = vld [vmem:[%s2 + $0x148] sm:$0xff]
          %v474 = vld [vmem:[%s2 + $0x150] sm:$0xff]
          %v475 = vld [vmem:[%s2 + $0x158] sm:$0xff]
          %v476 = vld [vmem:[%s2 + $0x160] sm:$0xff]
          %v477 = vld [vmem:[%s2 + $0x168] sm:$0xff]
          %v478 = vld [vmem:[%s2 + $0x170] sm:$0xff]
          %v479 = vld [vmem:[%s2 + $0x178] sm:$0xff]
          %v480 = vld [vmem:[%s2 + $0x180] sm:$0xff]
          %v481 = vld [vmem:[%s2 + $0x188] sm:$0xff]
          %v482 = vld [vmem:[%s2 + $0x190] sm:$0xff]
          %v483 = vld [vmem:[%s2 + $0x198] sm:$0xff]
          %v484 = vld [vmem:[%s2 + $0x1a0] sm:$0xff]
          %v485 = vld [vmem:[%s2 + $0x1a8] sm:$0xff]
          %v486 = vld [vmem:[%s2 + $0x1b0] sm:$0xff]
          %v487 = vld [vmem:[%s2 + $0x1b8] sm:$0xff]
          %v488 = vld [vmem:[%s2 + $0x1c0] sm:$0xff]
          %v489 = vld [vmem:[%s2 + $0x1c8] sm:$0xff]
          %v490 = vld [vmem:[%s2 + $0x1d0] sm:$0xff]
          %v491 = vld [vmem:[%s2 + $0x1d8] sm:$0xff]
          %v492 = vld [vmem:[%s2 + $0x1e0] sm:$0xff]
          %v493 = vld [vmem:[%s2 + $0x1e8] sm:$0xff]
          %v494 = vld [vmem:[%s2 + $0x1f0] sm:$0xff]
          %v495 = vld [vmem:[%s2 + $0x1f8] sm:$0xff]
          %v496 = vld [vmem:[%s2 + $0x200] sm:$0xff]
          %v497 = vld [vmem:[%s2 + $0x208] sm:$0xff]
          %v498 = vld [vmem:[%s2 + $0x210] sm:$0xff]
          %v499 = vld [vmem:[%s2 + $0x218] sm:$0xff]
          %v500 = vld [vmem:[%s2 + $0x220] sm:$0xff]
          %v501 = vld [vmem:[%s2 + $0x228] sm:$0xff]
          %v502 = vld [vmem:[%s2 + $0x230] sm:$0xff]
          %v503 = vld [vmem:[%s2 + $0x238] sm:$0xff]
          %v504 = vld [vmem:[%s2 + $0x240] sm:$0xff]
          %v505 = vld [vmem:[%s2 + $0x248] sm:$0xff]
          %v506 = vld [vmem:[%s2 + $0x250] sm:$0xff]
          %v507 = vld [vmem:[%s2 + $0x258] sm:$0xff]
          %v508 = vld [vmem:[%s2 + $0x260] sm:$0xff]
          %v509 = vld [vmem:[%s2 + $0x268] sm:$0xff]
          %v510 = vld [vmem:[%s2 + $0x270] sm:$0xff]
          %v511 = vld [vmem:[%s2 + $0x278] sm:$0xff]
          %v512 = vld [vmem:[%s2 + $0x280] sm:$0xff]
          %v513 = vld [vmem:[%s2 + $0x288] sm:$0xff]
          %v514 = vld [vmem:[%s2 + $0x290] sm:$0xff]
          %v515 = vld [vmem:[%s2 + $0x298] sm:$0xff]
          %v516 = vld [vmem:[%s2 + $0x2a0] sm:$0xff]
          %v517 = vld [vmem:[%s2 + $0x2a8] sm:$0xff]
          %v518 = vld [vmem:[%s2 + $0x2b0] sm:$0xff]
          %v519 = vld [vmem:[%s2 + $0x2b8] sm:$0xff]
          %v520 = vld [vmem:[%s2 + $0x2c0] sm:$0xff]
          %v521 = vld [vmem:[%s2 + $0x2c8] sm:$0xff]
          %v522 = vld [vmem:[%s2 + $0x2d0] sm:$0xff]
          %v523 = vld [vmem:[%s2 + $0x2d8] sm:$0xff]
          %v524 = vld [vmem:[%s2 + $0x2e0] sm:$0xff]
          %v525 = vld [vmem:[%s2 + $0x2e8] sm:$0xff]
          %v526 = vld [vmem:[%s2 + $0x2f0] sm:$0xff]
          %v527 = vld [vmem:[%s2 + $0x2f8] sm:$0xff]
          %v528 = vld [vmem:[%s2 + $0x300] sm:$0xff]
          %v529 = vld [vmem:[%s2 + $0x308] sm:$0xff]
          %v530 = vld [vmem:[%s2 + $0x310] sm:$0xff]
          %v531 = vld [vmem:[%s2 + $0x318] sm:$0xff]
          %v532 = vld [vmem:[%s2 + $0x320] sm:$0xff]
          %v533 = vld [vmem:[%s2 + $0x328] sm:$0xff]
          %v534 = vld [vmem:[%s2 + $0x330] sm:$0xff]
          %v535 = vld [vmem:[%s2 + $0x338] sm:$0xff]
          %v536 = vld [vmem:[%s2 + $0x340] sm:$0xff]
          %v537 = vld [vmem:[%s2 + $0x348] sm:$0xff]
          %v538 = vld [vmem:[%s2 + $0x350] sm:$0xff]
          %v539 = vld [vmem:[%s2 + $0x358] sm:$0xff]
          %v540 = vld [vmem:[%s2 + $0x360] sm:$0xff]
          %v541 = vld [vmem:[%s2 + $0x368] sm:$0xff]
          %v542 = vld [vmem:[%s2 + $0x370] sm:$0xff]
          %v543 = vld [vmem:[%s2 + $0x378] sm:$0xff]
          %v544 = vld [vmem:[%s2 + $0x380] sm:$0xff]
          %v545 = vld [vmem:[%s2 + $0x388] sm:$0xff]
          %v546 = vld [vmem:[%s2 + $0x390] sm:$0xff]
          %v547 = vld [vmem:[%s2 + $0x398] sm:$0xff]
          %v548 = vld [vmem:[%s2 + $0x3a0] sm:$0xff]
          %v549 = vld [vmem:[%s2 + $0x3a8] sm:$0xff]
          %v550 = vld [vmem:[%s2 + $0x3b0] sm:$0xff]
          %v551 = vld [vmem:[%s2 + $0x3b8] sm:$0xff]
          %v552 = vld [vmem:[%s2 + $0x3c0] sm:$0xff]
          %v553 = vld [vmem:[%s2 + $0x3c8] sm:$0xff]
          %v554 = vld [vmem:[%s2 + $0x3d0] sm:$0xff]
          %v555 = vld [vmem:[%s2 + $0x3d8] sm:$0xff]
          %v556 = vld [vmem:[%s2 + $0x3e0] sm:$0xff]
          %v557 = vld [vmem:[%s2 + $0x3e8] sm:$0xff]
          %v558 = vld [vmem:[%s2 + $0x3f0] sm:$0xff]
          %v559 = vld [vmem:[%s2 + $0x3f8] sm:$0xff]
          %v560 = vld [vmem:[%s2 + $0x400] sm:$0xff]
          %v561 = vld [vmem:[%s2 + $0x408] sm:$0xff]
          %v562 = vld [vmem:[%s2 + $0x410] sm:$0xff]
          %v563 = vld [vmem:[%s2 + $0x418] sm:$0xff]
          %v564 = vld [vmem:[%s2 + $0x420] sm:$0xff]
          %v565 = vld [vmem:[%s2 + $0x428] sm:$0xff]
          %v566 = vld [vmem:[%s2 + $0x430] sm:$0xff]
          %v567 = vld [vmem:[%s2 + $0x438] sm:$0xff]
          %v568 = vld [vmem:[%s2 + $0x440] sm:$0xff]
          %v569 = vld [vmem:[%s2 + $0x448] sm:$0xff]
          %v570 = vld [vmem:[%s2 + $0x450] sm:$0xff]
          %v571 = vld [vmem:[%s2 + $0x458] sm:$0xff]
          %v572 = vld [vmem:[%s2 + $0x460] sm:$0xff]
          %v573 = vld [vmem:[%s2 + $0x468] sm:$0xff]
          %v574 = vld [vmem:[%s2 + $0x470] sm:$0xff]
          %v575 = vld [vmem:[%s2 + $0x478] sm:$0xff]
          %v576 = vld [vmem:[%s2 + $0x480] sm:$0xff]
          %v577 = vld [vmem:[%s2 + $0x488] sm:$0xff]
          %v578 = vld [vmem:[%s2 + $0x490] sm:$0xff]
          %v579 = vld [vmem:[%s2 + $0x498] sm:$0xff]
          %v580 = vld [vmem:[%s2 + $0x4a0] sm:$0xff]
          %v581 = vld [vmem:[%s2 + $0x4a8] sm:$0xff]
          %v582 = vld [vmem:[%s2 + $0x4b0] sm:$0xff]
          %v583 = vld [vmem:[%s2 + $0x4b8] sm:$0xff]
          %v584 = vld [vmem:[%s2 + $0x4c0] sm:$0xff]
          %v585 = vld [vmem:[%s2 + $0x4c8] sm:$0xff]
          %v586 = vld [vmem:[%s2 + $0x4d0] sm:$0xff]
          %v587 = vld [vmem:[%s2 + $0x4d8] sm:$0xff]
          %v588 = vld [vmem:[%s2 + $0x4e0] sm:$0xff]
          %v589 = vld [vmem:[%s2 + $0x4e8] sm:$0xff]
          %v590 = vld [vmem:[%s2 + $0x4f0] sm:$0xff]
          %v591 = vld [vmem:[%s2 + $0x4f8] sm:$0xff]
          %v592 = vld [vmem:[%s2 + $0x500] sm:$0xff]
          %v593 = vld [vmem:[%s2 + $0x508] sm:$0xff]
          %v594 = vld [vmem:[%s2 + $0x510] sm:$0xff]
          %v595 = vld [vmem:[%s2 + $0x518] sm:$0xff]
          %v596 = vld [vmem:[%s2 + $0x520] sm:$0xff]
          %v597 = vld [vmem:[%s2 + $0x528] sm:$0xff]
          %v598 = vld [vmem:[%s2 + $0x530] sm:$0xff]
          %v599 = vld [vmem:[%s2 + $0x538] sm:$0xff]
          %v600 = vld [vmem:[%s2 + $0x540] sm:$0xff]
          %v601 = vld [vmem:[%s2 + $0x548] sm:$0xff]
          %v602 = vld [vmem:[%s2 + $0x550] sm:$0xff]
          %v603 = vld [vmem:[%s2 + $0x558] sm:$0xff]
          %v604 = vld [vmem:[%s2 + $0x560] sm:$0xff]
          %v605 = vld [vmem:[%s2 + $0x568] sm:$0xff]
          %v606 = vld [vmem:[%s2 + $0x570] sm:$0xff]
          %v607 = vld [vmem:[%s2 + $0x578] sm:$0xff]
          %v608 = vld [vmem:[%s2 + $0x580] sm:$0xff]
          %v609 = vld [vmem:[%s2 + $0x588] sm:$0xff]
          %v610 = vld [vmem:[%s2 + $0x590] sm:$0xff]
          %v611 = vld [vmem:[%s2 + $0x598] sm:$0xff]
          %v612 = vld [vmem:[%s2 + $0x5a0] sm:$0xff]
          %v613 = vld [vmem:[%s2 + $0x5a8] sm:$0xff]
          %v614 = vld [vmem:[%s2 + $0x5b0] sm:$0xff]
          %v615 = vld [vmem:[%s2 + $0x5b8] sm:$0xff]
          %v616 = vld [vmem:[%s2 + $0x5c0] sm:$0xff]
          %v617 = vld [vmem:[%s2 + $0x5c8] sm:$0xff]
          %v618 = vld [vmem:[%s2 + $0x5d0] sm:$0xff]
          %v619 = vld [vmem:[%s2 + $0x5d8] sm:$0xff]
          %v620 = vld [vmem:[%s2 + $0x5e0] sm:$0xff]
          %v621 = vld [vmem:[%s2 + $0x5e8] sm:$0xff]
          %v622 = vld [vmem:[%s2 + $0x5f0] sm:$0xff]
          %v623 = vld [vmem:[%s2 + $0x5f8] sm:$0xff]
          %v624 = vld [vmem:[%s2 + $0x600] sm:$0xff]
          %v625 = vld [vmem:[%s2 + $0x608] sm:$0xff]
          %v626 = vld [vmem:[%s2 + $0x610] sm:$0xff]
          %v627 = vld [vmem:[%s2 + $0x618] sm:$0xff]
          %v628 = vld [vmem:[%s2 + $0x620] sm:$0xff]
          %v629 = vld [vmem:[%s2 + $0x628] sm:$0xff]
          %v630 = vld [vmem:[%s2 + $0x630] sm:$0xff]
          %v631 = vld [vmem:[%s2 + $0x638] sm:$0xff]
          %v632 = vld [vmem:[%s2 + $0x640] sm:$0xff]
          %v633 = vld [vmem:[%s2 + $0x648] sm:$0xff]
          %v634 = vld [vmem:[%s2 + $0x650] sm:$0xff]
          %v635 = vld [vmem:[%s2 + $0x658] sm:$0xff]
          %v636 = vld [vmem:[%s2 + $0x660] sm:$0xff]
          %v637 = vld [vmem:[%s2 + $0x668] sm:$0xff]
          %v638 = vld [vmem:[%s2 + $0x670] sm:$0xff]
          %v639 = vld [vmem:[%s2 + $0x678] sm:$0xff]
          %v640 = vld [vmem:[%s2 + $0x680] sm:$0xff]
          %v641 = vld [vmem:[%s2 + $0x688] sm:$0xff]
          %v642 = vld [vmem:[%s2 + $0x690] sm:$0xff]
          %v643 = vld [vmem:[%s2 + $0x698] sm:$0xff]
          %v644 = vld [vmem:[%s2 + $0x6a0] sm:$0xff]
          %v645 = vld [vmem:[%s2 + $0x6a8] sm:$0xff]
          %v646 = vld [vmem:[%s2 + $0x6b0] sm:$0xff]
          %v647 = vld [vmem:[%s2 + $0x6b8] sm:$0xff]
          %v648 = vld [vmem:[%s2 + $0x6c0] sm:$0xff]
          %v649 = vld [vmem:[%s2 + $0x6c8] sm:$0xff]
          %v650 = vld [vmem:[%s2 + $0x6d0] sm:$0xff]
          %v651 = vld [vmem:[%s2 + $0x6d8] sm:$0xff]
          %v652 = vld [vmem:[%s2 + $0x6e0] sm:$0xff]
          %v653 = vld [vmem:[%s2 + $0x6e8] sm:$0xff]
          %v654 = vld [vmem:[%s2 + $0x6f0] sm:$0xff]
          %v655 = vld [vmem:[%s2 + $0x6f8] sm:$0xff]
          %v656 = vld [vmem:[%s2 + $0x700] sm:$0xff]
          %v657 = vld [vmem:[%s2 + $0x708] sm:$0xff]
          %v658 = vld [vmem:[%s2 + $0x710] sm:$0xff]
          %v659 = vld [vmem:[%s2 + $0x718] sm:$0xff]
          %v660 = vld [vmem:[%s2 + $0x720] sm:$0xff]
          %v661 = vld [vmem:[%s2 + $0x728] sm:$0xff]
          %v662 = vld [vmem:[%s2 + $0x730] sm:$0xff]
          %v663 = vld [vmem:[%s2 + $0x738] sm:$0xff]
          %v664 = vld [vmem:[%s2 + $0x740] sm:$0xff]
          %v665 = vld [vmem:[%s2 + $0x748] sm:$0xff]
          %v666 = vld [vmem:[%s2 + $0x750] sm:$0xff]
          %v667 = vld [vmem:[%s2 + $0x758] sm:$0xff]
          %v668 = vld [vmem:[%s2 + $0x760] sm:$0xff]
          %v669 = vld [vmem:[%s2 + $0x768] sm:$0xff]
          %v670 = vld [vmem:[%s2 + $0x770] sm:$0xff]
          %v671 = vld [vmem:[%s2 + $0x778] sm:$0xff]
          %v672 = vld [vmem:[%s2 + $0x780] sm:$0xff]
          %v673 = vld [vmem:[%s2 + $0x788] sm:$0xff]
          %v674 = vld [vmem:[%s2 + $0x790] sm:$0xff]
          %v675 = vld [vmem:[%s2 + $0x798] sm:$0xff]
          %v676 = vld [vmem:[%s2 + $0x7a0] sm:$0xff]
          %v677 = vld [vmem:[%s2 + $0x7a8] sm:$0xff]
          %v678 = vld [vmem:[%s2 + $0x7b0] sm:$0xff]
          %v679 = vld [vmem:[%s2 + $0x7b8] sm:$0xff]
          %v680 = vld [vmem:[%s2 + $0x7c0] sm:$0xff]
          %v681 = vld [vmem:[%s2 + $0x7c8] sm:$0xff]
          %v682 = vld [vmem:[%s2 + $0x7d0] sm:$0xff]
          %v683 = vld [vmem:[%s2 + $0x7d8] sm:$0xff]
          %v684 = vld [vmem:[%s2 + $0x7e0] sm:$0xff]
          %v685 = vld [vmem:[%s2 + $0x7e8] sm:$0xff]
          %v686 = vld [vmem:[%s2 + $0x7f0] sm:$0xff]
          %v687 = vld [vmem:[%s2 + $0x7f8] sm:$0xff]
          %v689 = vsel %vm333, %v424, 0
          %v692 = vsel %vm333, %v425, 0
          %v695 = vsel %vm333, %v426, 0
          %v698 = vsel %vm333, %v427, 0
          %v701 = vsel %vm333, %v428, 0
          %v704 = vsel %vm333, %v429, 0
          %v707 = vsel %vm333, %v430, 0
          %v710 = vsel %vm333, %v431, 0
          %712 = vmatpush.msra.mxu0 0.0
          %713 = vmatpush.msra.mxu0 0.0
          %714 = vmatpush.msra.mxu0 0.0
          %715 = vmatpush.msra.mxu0 0.0
          %716 = vmatpush.msra.mxu0 0.0
          %717 = vmatpush.msra.mxu0 0.0
          %718 = vmatpush.msra.mxu0 0.0
          %719 = vmatpush.msra.mxu0 0.0
          %720 = vmatpush.msra.mxu0 %v656
          %721 = vmatpush.msra.mxu0 %v624
          %722 = vmatpush.msra.mxu0 %v592
          %723 = vmatpush.msra.mxu0 %v560
          %724 = vmatpush.msra.mxu0 %v528
          %725 = vmatpush.msra.mxu0 %v496
          %726 = vmatpush.msra.mxu0 %v464
          %727 = vmatpush.msra.mxu0 %v432
          %728 = vmatmul.f32.gmra.mxu0 %v689
          %v729 = vpop.f32.mrf.mxu0
          %v730 = vadd.f32 0.0, %v729
          %731 = vmatmul.f32.gmra.mxu0 %v692
          %v732 = vpop.f32.mrf.mxu0
          %v733 = vadd.f32 0.0, %v732
          %734 = vmatmul.f32.gmra.mxu0 %v695
          %v735 = vpop.f32.mrf.mxu0
          %v736 = vadd.f32 0.0, %v735
          %737 = vmatmul.f32.gmra.mxu0 %v698
          %v738 = vpop.f32.mrf.mxu0
          %v739 = vadd.f32 0.0, %v738
          %740 = vmatmul.f32.gmra.mxu0 %v701
          %v741 = vpop.f32.mrf.mxu0
          %v742 = vadd.f32 0.0, %v741
          %743 = vmatmul.f32.gmra.mxu0 %v704
          %v744 = vpop.f32.mrf.mxu0
          %v745 = vadd.f32 0.0, %v744
          %746 = vmatmul.f32.gmra.mxu0 %v707
          %v747 = vpop.f32.mrf.mxu0
          %v748 = vadd.f32 0.0, %v747
          %749 = vmatmul.f32.gmra.mxu0 %v710
          %v750 = vpop.f32.mrf.mxu0
          %v751 = vadd.f32 0.0, %v750
          %752 = vdwg.mxu0
          %753 = vmatpush.msra.mxu0 0.0
          %754 = vmatpush.msra.mxu0 0.0
          %755 = vmatpush.msra.mxu0 0.0
          %756 = vmatpush.msra.mxu0 0.0
          %757 = vmatpush.msra.mxu0 0.0
          %758 = vmatpush.msra.mxu0 0.0
          %759 = vmatpush.msra.mxu0 0.0
          %760 = vmatpush.msra.mxu0 0.0
          %761 = vmatpush.msra.mxu0 %v657
          %762 = vmatpush.msra.mxu0 %v625
          %763 = vmatpush.msra.mxu0 %v593
          %764 = vmatpush.msra.mxu0 %v561
          %765 = vmatpush.msra.mxu0 %v529
          %766 = vmatpush.msra.mxu0 %v497
          %767 = vmatpush.msra.mxu0 %v465
          %768 = vmatpush.msra.mxu0 %v433
          %769 = vmatmul.f32.gmra.mxu0 %v689
          %v770 = vpop.f32.mrf.mxu0
          %v771 = vadd.f32 0.0, %v770
          %772 = vmatmul.f32.gmra.mxu0 %v692
          %v773 = vpop.f32.mrf.mxu0
          %v774 = vadd.f32 0.0, %v773
          %775 = vmatmul.f32.gmra.mxu0 %v695
          %v776 = vpop.f32.mrf.mxu0
          %v777 = vadd.f32 0.0, %v776
          %778 = vmatmul.f32.gmra.mxu0 %v698
          %v779 = vpop.f32.mrf.mxu0
          %v780 = vadd.f32 0.0, %v779
          %781 = vmatmul.f32.gmra.mxu0 %v701
          %v782 = vpop.f32.mrf.mxu0
          %v783 = vadd.f32 0.0, %v782
          %784 = vmatmul.f32.gmra.mxu0 %v704
          %v785 = vpop.f32.mrf.mxu0
          %v786 = vadd.f32 0.0, %v785
          %787 = vmatmul.f32.gmra.mxu0 %v707
          %v788 = vpop.f32.mrf.mxu0
          %v789 = vadd.f32 0.0, %v788
          %790 = vmatmul.f32.gmra.mxu0 %v710
          %v791 = vpop.f32.mrf.mxu0
          %v792 = vadd.f32 0.0, %v791
          %793 = vdwg.mxu0
          %794 = vmatpush.msra.mxu0 0.0
          %795 = vmatpush.msra.mxu0 0.0
          %796 = vmatpush.msra.mxu0 0.0
          %797 = vmatpush.msra.mxu0 0.0
          %798 = vmatpush.msra.mxu0 0.0
          %799 = vmatpush.msra.mxu0 0.0
          %800 = vmatpush.msra.mxu0 0.0
          %801 = vmatpush.msra.mxu0 0.0
          %802 = vmatpush.msra.mxu0 %v658
          %803 = vmatpush.msra.mxu0 %v626
          %804 = vmatpush.msra.mxu0 %v594
          %805 = vmatpush.msra.mxu0 %v562
          %806 = vmatpush.msra.mxu0 %v530
          %807 = vmatpush.msra.mxu0 %v498
          %808 = vmatpush.msra.mxu0 %v466
          %809 = vmatpush.msra.mxu0 %v434
          %810 = vmatmul.f32.gmra.mxu0 %v689
          %v811 = vpop.f32.mrf.mxu0
          %v812 = vadd.f32 0.0, %v811
          %813 = vmatmul.f32.gmra.mxu0 %v692
          %v814 = vpop.f32.mrf.mxu0
          %v815 = vadd.f32 0.0, %v814
          %816 = vmatmul.f32.gmra.mxu0 %v695
          %v817 = vpop.f32.mrf.mxu0
          %v818 = vadd.f32 0.0, %v817
          %819 = vmatmul.f32.gmra.mxu0 %v698
          %v820 = vpop.f32.mrf.mxu0
          %v821 = vadd.f32 0.0, %v820
          %822 = vmatmul.f32.gmra.mxu0 %v701
          %v823 = vpop.f32.mrf.mxu0
          %v824 = vadd.f32 0.0, %v823
          %825 = vmatmul.f32.gmra.mxu0 %v704
          %v826 = vpop.f32.mrf.mxu0
          %v827 = vadd.f32 0.0, %v826
          %828 = vmatmul.f32.gmra.mxu0 %v707
          %v829 = vpop.f32.mrf.mxu0
          %v830 = vadd.f32 0.0, %v829
          %831 = vmatmul.f32.gmra.mxu0 %v710
          %v832 = vpop.f32.mrf.mxu0
          %v833 = vadd.f32 0.0, %v832
          %834 = vdwg.mxu0
          %835 = vmatpush.msra.mxu0 0.0
          %836 = vmatpush.msra.mxu0 0.0
          %837 = vmatpush.msra.mxu0 0.0
          %838 = vmatpush.msra.mxu0 0.0
          %839 = vmatpush.msra.mxu0 0.0
          %840 = vmatpush.msra.mxu0 0.0
          %841 = vmatpush.msra.mxu0 0.0
          %842 = vmatpush.msra.mxu0 0.0
          %843 = vmatpush.msra.mxu0 %v659
          %844 = vmatpush.msra.mxu0 %v627
          %845 = vmatpush.msra.mxu0 %v595
          %846 = vmatpush.msra.mxu0 %v563
          %847 = vmatpush.msra.mxu0 %v531
          %848 = vmatpush.msra.mxu0 %v499
          %849 = vmatpush.msra.mxu0 %v467
          %850 = vmatpush.msra.mxu0 %v435
          %851 = vmatmul.f32.gmra.mxu0 %v689
          %v852 = vpop.f32.mrf.mxu0
          %v853 = vadd.f32 0.0, %v852
          %854 = vmatmul.f32.gmra.mxu0 %v692
          %v855 = vpop.f32.mrf.mxu0
          %v856 = vadd.f32 0.0, %v855
          %857 = vmatmul.f32.gmra.mxu0 %v695
          %v858 = vpop.f32.mrf.mxu0
          %v859 = vadd.f32 0.0, %v858
          %860 = vmatmul.f32.gmra.mxu0 %v698
          %v861 = vpop.f32.mrf.mxu0
          %v862 = vadd.f32 0.0, %v861
          %863 = vmatmul.f32.gmra.mxu0 %v701
          %v864 = vpop.f32.mrf.mxu0
          %v865 = vadd.f32 0.0, %v864
          %866 = vmatmul.f32.gmra.mxu0 %v704
          %v867 = vpop.f32.mrf.mxu0
          %v868 = vadd.f32 0.0, %v867
          %869 = vmatmul.f32.gmra.mxu0 %v707
          %v870 = vpop.f32.mrf.mxu0
          %v871 = vadd.f32 0.0, %v870
          %872 = vmatmul.f32.gmra.mxu0 %v710
          %v873 = vpop.f32.mrf.mxu0
          %v874 = vadd.f32 0.0, %v873
          %875 = vdwg.mxu0
          %876 = vmatpush.msra.mxu0 0.0
          %877 = vmatpush.msra.mxu0 0.0
          %878 = vmatpush.msra.mxu0 0.0
          %879 = vmatpush.msra.mxu0 0.0
          %880 = vmatpush.msra.mxu0 0.0
          %881 = vmatpush.msra.mxu0 0.0
          %882 = vmatpush.msra.mxu0 0.0
          %883 = vmatpush.msra.mxu0 0.0
          %884 = vmatpush.msra.mxu0 %v660
          %885 = vmatpush.msra.mxu0 %v628
          %886 = vmatpush.msra.mxu0 %v596
          %887 = vmatpush.msra.mxu0 %v564
          %888 = vmatpush.msra.mxu0 %v532
          %889 = vmatpush.msra.mxu0 %v500
          %890 = vmatpush.msra.mxu0 %v468
          %891 = vmatpush.msra.mxu0 %v436
          %892 = vmatmul.f32.gmra.mxu0 %v689
          %v893 = vpop.f32.mrf.mxu0
          %v894 = vadd.f32 0.0, %v893
          %895 = vmatmul.f32.gmra.mxu0 %v692
          %v896 = vpop.f32.mrf.mxu0
          %v897 = vadd.f32 0.0, %v896
          %898 = vmatmul.f32.gmra.mxu0 %v695
          %v899 = vpop.f32.mrf.mxu0
          %v900 = vadd.f32 0.0, %v899
          %901 = vmatmul.f32.gmra.mxu0 %v698
          %v902 = vpop.f32.mrf.mxu0
          %v903 = vadd.f32 0.0, %v902
          %904 = vmatmul.f32.gmra.mxu0 %v701
          %v905 = vpop.f32.mrf.mxu0
          %v906 = vadd.f32 0.0, %v905
          %907 = vmatmul.f32.gmra.mxu0 %v704
          %v908 = vpop.f32.mrf.mxu0
          %v909 = vadd.f32 0.0, %v908
          %910 = vmatmul.f32.gmra.mxu0 %v707
          %v911 = vpop.f32.mrf.mxu0
          %v912 = vadd.f32 0.0, %v911
          %913 = vmatmul.f32.gmra.mxu0 %v710
          %v914 = vpop.f32.mrf.mxu0
          %v915 = vadd.f32 0.0, %v914
          %916 = vdwg.mxu0
          %917 = vmatpush.msra.mxu0 0.0
          %918 = vmatpush.msra.mxu0 0.0
          %919 = vmatpush.msra.mxu0 0.0
          %920 = vmatpush.msra.mxu0 0.0
          %921 = vmatpush.msra.mxu0 0.0
          %922 = vmatpush.msra.mxu0 0.0
          %923 = vmatpush.msra.mxu0 0.0
          %924 = vmatpush.msra.mxu0 0.0
          %925 = vmatpush.msra.mxu0 %v661
          %926 = vmatpush.msra.mxu0 %v629
          %927 = vmatpush.msra.mxu0 %v597
          %928 = vmatpush.msra.mxu0 %v565
          %929 = vmatpush.msra.mxu0 %v533
          %930 = vmatpush.msra.mxu0 %v501
          %931 = vmatpush.msra.mxu0 %v469
          %932 = vmatpush.msra.mxu0 %v437
          %933 = vmatmul.f32.gmra.mxu0 %v689
          %v934 = vpop.f32.mrf.mxu0
          %v935 = vadd.f32 0.0, %v934
          %936 = vmatmul.f32.gmra.mxu0 %v692
          %v937 = vpop.f32.mrf.mxu0
          %v938 = vadd.f32 0.0, %v937
          %939 = vmatmul.f32.gmra.mxu0 %v695
          %v940 = vpop.f32.mrf.mxu0
          %v941 = vadd.f32 0.0, %v940
          %942 = vmatmul.f32.gmra.mxu0 %v698
          %v943 = vpop.f32.mrf.mxu0
          %v944 = vadd.f32 0.0, %v943
          %945 = vmatmul.f32.gmra.mxu0 %v701
          %v946 = vpop.f32.mrf.mxu0
          %v947 = vadd.f32 0.0, %v946
          %948 = vmatmul.f32.gmra.mxu0 %v704
          %v949 = vpop.f32.mrf.mxu0
          %v950 = vadd.f32 0.0, %v949
          %951 = vmatmul.f32.gmra.mxu0 %v707
          %v952 = vpop.f32.mrf.mxu0
          %v953 = vadd.f32 0.0, %v952
          %954 = vmatmul.f32.gmra.mxu0 %v710
          %v955 = vpop.f32.mrf.mxu0
          %v956 = vadd.f32 0.0, %v955
          %957 = vdwg.mxu0
          %958 = vmatpush.msra.mxu0 0.0
          %959 = vmatpush.msra.mxu0 0.0
          %960 = vmatpush.msra.mxu0 0.0
          %961 = vmatpush.msra.mxu0 0.0
          %962 = vmatpush.msra.mxu0 0.0
          %963 = vmatpush.msra.mxu0 0.0
          %964 = vmatpush.msra.mxu0 0.0
          %965 = vmatpush.msra.mxu0 0.0
          %966 = vmatpush.msra.mxu0 %v662
          %967 = vmatpush.msra.mxu0 %v630
          %968 = vmatpush.msra.mxu0 %v598
          %969 = vmatpush.msra.mxu0 %v566
          %970 = vmatpush.msra.mxu0 %v534
          %971 = vmatpush.msra.mxu0 %v502
          %972 = vmatpush.msra.mxu0 %v470
          %973 = vmatpush.msra.mxu0 %v438
          %974 = vmatmul.f32.gmra.mxu0 %v689
          %v975 = vpop.f32.mrf.mxu0
          %v976 = vadd.f32 0.0, %v975
          %977 = vmatmul.f32.gmra.mxu0 %v692
          %v978 = vpop.f32.mrf.mxu0
          %v979 = vadd.f32 0.0, %v978
          %980 = vmatmul.f32.gmra.mxu0 %v695
          %v981 = vpop.f32.mrf.mxu0
          %v982 = vadd.f32 0.0, %v981
          %983 = vmatmul.f32.gmra.mxu0 %v698
          %v984 = vpop.f32.mrf.mxu0
          %v985 = vadd.f32 0.0, %v984
          %986 = vmatmul.f32.gmra.mxu0 %v701
          %v987 = vpop.f32.mrf.mxu0
          %v988 = vadd.f32 0.0, %v987
          %989 = vmatmul.f32.gmra.mxu0 %v704
          %v990 = vpop.f32.mrf.mxu0
          %v991 = vadd.f32 0.0, %v990
          %992 = vmatmul.f32.gmra.mxu0 %v707
          %v993 = vpop.f32.mrf.mxu0
          %v994 = vadd.f32 0.0, %v993
          %995 = vmatmul.f32.gmra.mxu0 %v710
          %v996 = vpop.f32.mrf.mxu0
          %v997 = vadd.f32 0.0, %v996
          %998 = vdwg.mxu0
          %999 = vmatpush.msra.mxu0 0.0
          %1000 = vmatpush.msra.mxu0 0.0
          %1001 = vmatpush.msra.mxu0 0.0
          %1002 = vmatpush.msra.mxu0 0.0
          %1003 = vmatpush.msra.mxu0 0.0
          %1004 = vmatpush.msra.mxu0 0.0
          %1005 = vmatpush.msra.mxu0 0.0
          %1006 = vmatpush.msra.mxu0 0.0
          %1007 = vmatpush.msra.mxu0 %v663
          %1008 = vmatpush.msra.mxu0 %v631
          %1009 = vmatpush.msra.mxu0 %v599
          %1010 = vmatpush.msra.mxu0 %v567
          %1011 = vmatpush.msra.mxu0 %v535
          %1012 = vmatpush.msra.mxu0 %v503
          %1013 = vmatpush.msra.mxu0 %v471
          %1014 = vmatpush.msra.mxu0 %v439
          %1015 = vmatmul.f32.gmra.mxu0 %v689
          %v1016 = vpop.f32.mrf.mxu0
          %v1017 = vadd.f32 0.0, %v1016
          %1018 = vmatmul.f32.gmra.mxu0 %v692
          %v1019 = vpop.f32.mrf.mxu0
          %v1020 = vadd.f32 0.0, %v1019
          %1021 = vmatmul.f32.gmra.mxu0 %v695
          %v1022 = vpop.f32.mrf.mxu0
          %v1023 = vadd.f32 0.0, %v1022
          %1024 = vmatmul.f32.gmra.mxu0 %v698
          %v1025 = vpop.f32.mrf.mxu0
          %v1026 = vadd.f32 0.0, %v1025
          %1027 = vmatmul.f32.gmra.mxu0 %v701
          %v1028 = vpop.f32.mrf.mxu0
          %v1029 = vadd.f32 0.0, %v1028
          %1030 = vmatmul.f32.gmra.mxu0 %v704
          %v1031 = vpop.f32.mrf.mxu0
          %v1032 = vadd.f32 0.0, %v1031
          %1033 = vmatmul.f32.gmra.mxu0 %v707
          %v1034 = vpop.f32.mrf.mxu0
          %v1035 = vadd.f32 0.0, %v1034
          %1036 = vmatmul.f32.gmra.mxu0 %v710
          %v1037 = vpop.f32.mrf.mxu0
          %v1038 = vadd.f32 0.0, %v1037
          %1039 = vdwg.mxu0
          %1040 = vmatpush.msra.mxu0 0.0
          %1041 = vmatpush.msra.mxu0 0.0
          %1042 = vmatpush.msra.mxu0 0.0
          %1043 = vmatpush.msra.mxu0 0.0
          %1044 = vmatpush.msra.mxu0 0.0
          %1045 = vmatpush.msra.mxu0 0.0
          %1046 = vmatpush.msra.mxu0 0.0
          %1047 = vmatpush.msra.mxu0 0.0
          %1048 = vmatpush.msra.mxu0 %v664
          %1049 = vmatpush.msra.mxu0 %v632
          %1050 = vmatpush.msra.mxu0 %v600
          %1051 = vmatpush.msra.mxu0 %v568
          %1052 = vmatpush.msra.mxu0 %v536
          %1053 = vmatpush.msra.mxu0 %v504
          %1054 = vmatpush.msra.mxu0 %v472
          %1055 = vmatpush.msra.mxu0 %v440
          %1056 = vmatmul.f32.gmra.mxu0 %v689
          %v1057 = vpop.f32.mrf.mxu0
          %v1058 = vadd.f32 0.0, %v1057
          %1059 = vmatmul.f32.gmra.mxu0 %v692
          %v1060 = vpop.f32.mrf.mxu0
          %v1061 = vadd.f32 0.0, %v1060
          %1062 = vmatmul.f32.gmra.mxu0 %v695
          %v1063 = vpop.f32.mrf.mxu0
          %v1064 = vadd.f32 0.0, %v1063
          %1065 = vmatmul.f32.gmra.mxu0 %v698
          %v1066 = vpop.f32.mrf.mxu0
          %v1067 = vadd.f32 0.0, %v1066
          %1068 = vmatmul.f32.gmra.mxu0 %v701
          %v1069 = vpop.f32.mrf.mxu0
          %v1070 = vadd.f32 0.0, %v1069
          %1071 = vmatmul.f32.gmra.mxu0 %v704
          %v1072 = vpop.f32.mrf.mxu0
          %v1073 = vadd.f32 0.0, %v1072
          %1074 = vmatmul.f32.gmra.mxu0 %v707
          %v1075 = vpop.f32.mrf.mxu0
          %v1076 = vadd.f32 0.0, %v1075
          %1077 = vmatmul.f32.gmra.mxu0 %v710
          %v1078 = vpop.f32.mrf.mxu0
          %v1079 = vadd.f32 0.0, %v1078
          %1080 = vdwg.mxu0
          %1081 = vmatpush.msra.mxu0 0.0
          %1082 = vmatpush.msra.mxu0 0.0
          %1083 = vmatpush.msra.mxu0 0.0
          %1084 = vmatpush.msra.mxu0 0.0
          %1085 = vmatpush.msra.mxu0 0.0
          %1086 = vmatpush.msra.mxu0 0.0
          %1087 = vmatpush.msra.mxu0 0.0
          %1088 = vmatpush.msra.mxu0 0.0
          %1089 = vmatpush.msra.mxu0 %v665
          %1090 = vmatpush.msra.mxu0 %v633
          %1091 = vmatpush.msra.mxu0 %v601
          %1092 = vmatpush.msra.mxu0 %v569
          %1093 = vmatpush.msra.mxu0 %v537
          %1094 = vmatpush.msra.mxu0 %v505
          %1095 = vmatpush.msra.mxu0 %v473
          %1096 = vmatpush.msra.mxu0 %v441
          %1097 = vmatmul.f32.gmra.mxu0 %v689
          %v1098 = vpop.f32.mrf.mxu0
          %v1099 = vadd.f32 0.0, %v1098
          %1100 = vmatmul.f32.gmra.mxu0 %v692
          %v1101 = vpop.f32.mrf.mxu0
          %v1102 = vadd.f32 0.0, %v1101
          %1103 = vmatmul.f32.gmra.mxu0 %v695
          %v1104 = vpop.f32.mrf.mxu0
          %v1105 = vadd.f32 0.0, %v1104
          %1106 = vmatmul.f32.gmra.mxu0 %v698
          %v1107 = vpop.f32.mrf.mxu0
          %v1108 = vadd.f32 0.0, %v1107
          %1109 = vmatmul.f32.gmra.mxu0 %v701
          %v1110 = vpop.f32.mrf.mxu0
          %v1111 = vadd.f32 0.0, %v1110
          %1112 = vmatmul.f32.gmra.mxu0 %v704
          %v1113 = vpop.f32.mrf.mxu0
          %v1114 = vadd.f32 0.0, %v1113
          %1115 = vmatmul.f32.gmra.mxu0 %v707
          %v1116 = vpop.f32.mrf.mxu0
          %v1117 = vadd.f32 0.0, %v1116
          %1118 = vmatmul.f32.gmra.mxu0 %v710
          %v1119 = vpop.f32.mrf.mxu0
          %v1120 = vadd.f32 0.0, %v1119
          %1121 = vdwg.mxu0
          %1122 = vmatpush.msra.mxu0 0.0
          %1123 = vmatpush.msra.mxu0 0.0
          %1124 = vmatpush.msra.mxu0 0.0
          %1125 = vmatpush.msra.mxu0 0.0
          %1126 = vmatpush.msra.mxu0 0.0
          %1127 = vmatpush.msra.mxu0 0.0
          %1128 = vmatpush.msra.mxu0 0.0
          %1129 = vmatpush.msra.mxu0 0.0
          %1130 = vmatpush.msra.mxu0 %v666
          %1131 = vmatpush.msra.mxu0 %v634
          %1132 = vmatpush.msra.mxu0 %v602
          %1133 = vmatpush.msra.mxu0 %v570
          %1134 = vmatpush.msra.mxu0 %v538
          %1135 = vmatpush.msra.mxu0 %v506
          %1136 = vmatpush.msra.mxu0 %v474
          %1137 = vmatpush.msra.mxu0 %v442
          %1138 = vmatmul.f32.gmra.mxu0 %v689
          %v1139 = vpop.f32.mrf.mxu0
          %v1140 = vadd.f32 0.0, %v1139
          %1141 = vmatmul.f32.gmra.mxu0 %v692
          %v1142 = vpop.f32.mrf.mxu0
          %v1143 = vadd.f32 0.0, %v1142
          %1144 = vmatmul.f32.gmra.mxu0 %v695
          %v1145 = vpop.f32.mrf.mxu0
          %v1146 = vadd.f32 0.0, %v1145
          %1147 = vmatmul.f32.gmra.mxu0 %v698
          %v1148 = vpop.f32.mrf.mxu0
          %v1149 = vadd.f32 0.0, %v1148
          %1150 = vmatmul.f32.gmra.mxu0 %v701
          %v1151 = vpop.f32.mrf.mxu0
          %v1152 = vadd.f32 0.0, %v1151
          %1153 = vmatmul.f32.gmra.mxu0 %v704
          %v1154 = vpop.f32.mrf.mxu0
          %v1155 = vadd.f32 0.0, %v1154
          %1156 = vmatmul.f32.gmra.mxu0 %v707
          %v1157 = vpop.f32.mrf.mxu0
          %v1158 = vadd.f32 0.0, %v1157
          %1159 = vmatmul.f32.gmra.mxu0 %v710
          %v1160 = vpop.f32.mrf.mxu0
          %v1161 = vadd.f32 0.0, %v1160
          %1162 = vdwg.mxu0
          %1163 = vmatpush.msra.mxu0 0.0
          %1164 = vmatpush.msra.mxu0 0.0
          %1165 = vmatpush.msra.mxu0 0.0
          %1166 = vmatpush.msra.mxu0 0.0
          %1167 = vmatpush.msra.mxu0 0.0
          %1168 = vmatpush.msra.mxu0 0.0
          %1169 = vmatpush.msra.mxu0 0.0
          %1170 = vmatpush.msra.mxu0 0.0
          %1171 = vmatpush.msra.mxu0 %v667
          %1172 = vmatpush.msra.mxu0 %v635
          %1173 = vmatpush.msra.mxu0 %v603
          %1174 = vmatpush.msra.mxu0 %v571
          %1175 = vmatpush.msra.mxu0 %v539
          %1176 = vmatpush.msra.mxu0 %v507
          %1177 = vmatpush.msra.mxu0 %v475
          %1178 = vmatpush.msra.mxu0 %v443
          %1179 = vmatmul.f32.gmra.mxu0 %v689
          %v1180 = vpop.f32.mrf.mxu0
          %v1181 = vadd.f32 0.0, %v1180
          %1182 = vmatmul.f32.gmra.mxu0 %v692
          %v1183 = vpop.f32.mrf.mxu0
          %v1184 = vadd.f32 0.0, %v1183
          %1185 = vmatmul.f32.gmra.mxu0 %v695
          %v1186 = vpop.f32.mrf.mxu0
          %v1187 = vadd.f32 0.0, %v1186
          %1188 = vmatmul.f32.gmra.mxu0 %v698
          %v1189 = vpop.f32.mrf.mxu0
          %v1190 = vadd.f32 0.0, %v1189
          %1191 = vmatmul.f32.gmra.mxu0 %v701
          %v1192 = vpop.f32.mrf.mxu0
          %v1193 = vadd.f32 0.0, %v1192
          %1194 = vmatmul.f32.gmra.mxu0 %v704
          %v1195 = vpop.f32.mrf.mxu0
          %v1196 = vadd.f32 0.0, %v1195
          %1197 = vmatmul.f32.gmra.mxu0 %v707
          %v1198 = vpop.f32.mrf.mxu0
          %v1199 = vadd.f32 0.0, %v1198
          %1200 = vmatmul.f32.gmra.mxu0 %v710
          %v1201 = vpop.f32.mrf.mxu0
          %v1202 = vadd.f32 0.0, %v1201
          %1203 = vdwg.mxu0
          %1204 = vmatpush.msra.mxu0 0.0
          %1205 = vmatpush.msra.mxu0 0.0
          %1206 = vmatpush.msra.mxu0 0.0
          %1207 = vmatpush.msra.mxu0 0.0
          %1208 = vmatpush.msra.mxu0 0.0
          %1209 = vmatpush.msra.mxu0 0.0
          %1210 = vmatpush.msra.mxu0 0.0
          %1211 = vmatpush.msra.mxu0 0.0
          %1212 = vmatpush.msra.mxu0 %v668
          %1213 = vmatpush.msra.mxu0 %v636
          %1214 = vmatpush.msra.mxu0 %v604
          %1215 = vmatpush.msra.mxu0 %v572
          %1216 = vmatpush.msra.mxu0 %v540
          %1217 = vmatpush.msra.mxu0 %v508
          %1218 = vmatpush.msra.mxu0 %v476
          %1219 = vmatpush.msra.mxu0 %v444
          %1220 = vmatmul.f32.gmra.mxu0 %v689
          %v1221 = vpop.f32.mrf.mxu0
          %v1222 = vadd.f32 0.0, %v1221
          %1223 = vmatmul.f32.gmra.mxu0 %v692
          %v1224 = vpop.f32.mrf.mxu0
          %v1225 = vadd.f32 0.0, %v1224
          %1226 = vmatmul.f32.gmra.mxu0 %v695
          %v1227 = vpop.f32.mrf.mxu0
          %v1228 = vadd.f32 0.0, %v1227
          %1229 = vmatmul.f32.gmra.mxu0 %v698
          %v1230 = vpop.f32.mrf.mxu0
          %v1231 = vadd.f32 0.0, %v1230
          %1232 = vmatmul.f32.gmra.mxu0 %v701
          %v1233 = vpop.f32.mrf.mxu0
          %v1234 = vadd.f32 0.0, %v1233
          %1235 = vmatmul.f32.gmra.mxu0 %v704
          %v1236 = vpop.f32.mrf.mxu0
          %v1237 = vadd.f32 0.0, %v1236
          %1238 = vmatmul.f32.gmra.mxu0 %v707
          %v1239 = vpop.f32.mrf.mxu0
          %v1240 = vadd.f32 0.0, %v1239
          %1241 = vmatmul.f32.gmra.mxu0 %v710
          %v1242 = vpop.f32.mrf.mxu0
          %v1243 = vadd.f32 0.0, %v1242
          %1244 = vdwg.mxu0
          %1245 = vmatpush.msra.mxu0 0.0
          %1246 = vmatpush.msra.mxu0 0.0
          %1247 = vmatpush.msra.mxu0 0.0
          %1248 = vmatpush.msra.mxu0 0.0
          %1249 = vmatpush.msra.mxu0 0.0
          %1250 = vmatpush.msra.mxu0 0.0
          %1251 = vmatpush.msra.mxu0 0.0
          %1252 = vmatpush.msra.mxu0 0.0
          %1253 = vmatpush.msra.mxu0 %v669
          %1254 = vmatpush.msra.mxu0 %v637
          %1255 = vmatpush.msra.mxu0 %v605
          %1256 = vmatpush.msra.mxu0 %v573
          %1257 = vmatpush.msra.mxu0 %v541
          %1258 = vmatpush.msra.mxu0 %v509
          %1259 = vmatpush.msra.mxu0 %v477
          %1260 = vmatpush.msra.mxu0 %v445
          %1261 = vmatmul.f32.gmra.mxu0 %v689
          %v1262 = vpop.f32.mrf.mxu0
          %v1263 = vadd.f32 0.0, %v1262
          %1264 = vmatmul.f32.gmra.mxu0 %v692
          %v1265 = vpop.f32.mrf.mxu0
          %v1266 = vadd.f32 0.0, %v1265
          %1267 = vmatmul.f32.gmra.mxu0 %v695
          %v1268 = vpop.f32.mrf.mxu0
          %v1269 = vadd.f32 0.0, %v1268
          %1270 = vmatmul.f32.gmra.mxu0 %v698
          %v1271 = vpop.f32.mrf.mxu0
          %v1272 = vadd.f32 0.0, %v1271
          %1273 = vmatmul.f32.gmra.mxu0 %v701
          %v1274 = vpop.f32.mrf.mxu0
          %v1275 = vadd.f32 0.0, %v1274
          %1276 = vmatmul.f32.gmra.mxu0 %v704
          %v1277 = vpop.f32.mrf.mxu0
          %v1278 = vadd.f32 0.0, %v1277
          %1279 = vmatmul.f32.gmra.mxu0 %v707
          %v1280 = vpop.f32.mrf.mxu0
          %v1281 = vadd.f32 0.0, %v1280
          %1282 = vmatmul.f32.gmra.mxu0 %v710
          %v1283 = vpop.f32.mrf.mxu0
          %v1284 = vadd.f32 0.0, %v1283
          %1285 = vdwg.mxu0
          %1286 = vmatpush.msra.mxu0 0.0
          %1287 = vmatpush.msra.mxu0 0.0
          %1288 = vmatpush.msra.mxu0 0.0
          %1289 = vmatpush.msra.mxu0 0.0
          %1290 = vmatpush.msra.mxu0 0.0
          %1291 = vmatpush.msra.mxu0 0.0
          %1292 = vmatpush.msra.mxu0 0.0
          %1293 = vmatpush.msra.mxu0 0.0
          %1294 = vmatpush.msra.mxu0 %v670
          %1295 = vmatpush.msra.mxu0 %v638
          %1296 = vmatpush.msra.mxu0 %v606
          %1297 = vmatpush.msra.mxu0 %v574
          %1298 = vmatpush.msra.mxu0 %v542
          %1299 = vmatpush.msra.mxu0 %v510
          %1300 = vmatpush.msra.mxu0 %v478
          %1301 = vmatpush.msra.mxu0 %v446
          %1302 = vmatmul.f32.gmra.mxu0 %v689
          %v1303 = vpop.f32.mrf.mxu0
          %v1304 = vadd.f32 0.0, %v1303
          %1305 = vmatmul.f32.gmra.mxu0 %v692
          %v1306 = vpop.f32.mrf.mxu0
          %v1307 = vadd.f32 0.0, %v1306
          %1308 = vmatmul.f32.gmra.mxu0 %v695
          %v1309 = vpop.f32.mrf.mxu0
          %v1310 = vadd.f32 0.0, %v1309
          %1311 = vmatmul.f32.gmra.mxu0 %v698
          %v1312 = vpop.f32.mrf.mxu0
          %v1313 = vadd.f32 0.0, %v1312
          %1314 = vmatmul.f32.gmra.mxu0 %v701
          %v1315 = vpop.f32.mrf.mxu0
          %v1316 = vadd.f32 0.0, %v1315
          %1317 = vmatmul.f32.gmra.mxu0 %v704
          %v1318 = vpop.f32.mrf.mxu0
          %v1319 = vadd.f32 0.0, %v1318
          %1320 = vmatmul.f32.gmra.mxu0 %v707
          %v1321 = vpop.f32.mrf.mxu0
          %v1322 = vadd.f32 0.0, %v1321
          %1323 = vmatmul.f32.gmra.mxu0 %v710
          %v1324 = vpop.f32.mrf.mxu0
          %v1325 = vadd.f32 0.0, %v1324
          %1326 = vdwg.mxu0
          %1327 = vmatpush.msra.mxu0 0.0
          %1328 = vmatpush.msra.mxu0 0.0
          %1329 = vmatpush.msra.mxu0 0.0
          %1330 = vmatpush.msra.mxu0 0.0
          %1331 = vmatpush.msra.mxu0 0.0
          %1332 = vmatpush.msra.mxu0 0.0
          %1333 = vmatpush.msra.mxu0 0.0
          %1334 = vmatpush.msra.mxu0 0.0
          %1335 = vmatpush.msra.mxu0 %v671
          %1336 = vmatpush.msra.mxu0 %v639
          %1337 = vmatpush.msra.mxu0 %v607
          %1338 = vmatpush.msra.mxu0 %v575
          %1339 = vmatpush.msra.mxu0 %v543
          %1340 = vmatpush.msra.mxu0 %v511
          %1341 = vmatpush.msra.mxu0 %v479
          %1342 = vmatpush.msra.mxu0 %v447
          %1343 = vmatmul.f32.gmra.mxu0 %v689
          %v1344 = vpop.f32.mrf.mxu0
          %v1345 = vadd.f32 0.0, %v1344
          %1346 = vmatmul.f32.gmra.mxu0 %v692
          %v1347 = vpop.f32.mrf.mxu0
          %v1348 = vadd.f32 0.0, %v1347
          %1349 = vmatmul.f32.gmra.mxu0 %v695
          %v1350 = vpop.f32.mrf.mxu0
          %v1351 = vadd.f32 0.0, %v1350
          %1352 = vmatmul.f32.gmra.mxu0 %v698
          %v1353 = vpop.f32.mrf.mxu0
          %v1354 = vadd.f32 0.0, %v1353
          %1355 = vmatmul.f32.gmra.mxu0 %v701
          %v1356 = vpop.f32.mrf.mxu0
          %v1357 = vadd.f32 0.0, %v1356
          %1358 = vmatmul.f32.gmra.mxu0 %v704
          %v1359 = vpop.f32.mrf.mxu0
          %v1360 = vadd.f32 0.0, %v1359
          %1361 = vmatmul.f32.gmra.mxu0 %v707
          %v1362 = vpop.f32.mrf.mxu0
          %v1363 = vadd.f32 0.0, %v1362
          %1364 = vmatmul.f32.gmra.mxu0 %v710
          %v1365 = vpop.f32.mrf.mxu0
          %v1366 = vadd.f32 0.0, %v1365
          %1367 = vdwg.mxu0
          %1368 = vmatpush.msra.mxu0 0.0
          %1369 = vmatpush.msra.mxu0 0.0
          %1370 = vmatpush.msra.mxu0 0.0
          %1371 = vmatpush.msra.mxu0 0.0
          %1372 = vmatpush.msra.mxu0 0.0
          %1373 = vmatpush.msra.mxu0 0.0
          %1374 = vmatpush.msra.mxu0 0.0
          %1375 = vmatpush.msra.mxu0 0.0
          %1376 = vmatpush.msra.mxu0 %v672
          %1377 = vmatpush.msra.mxu0 %v640
          %1378 = vmatpush.msra.mxu0 %v608
          %1379 = vmatpush.msra.mxu0 %v576
          %1380 = vmatpush.msra.mxu0 %v544
          %1381 = vmatpush.msra.mxu0 %v512
          %1382 = vmatpush.msra.mxu0 %v480
          %1383 = vmatpush.msra.mxu0 %v448
          %1384 = vmatmul.f32.gmra.mxu0 %v689
          %v1385 = vpop.f32.mrf.mxu0
          %v1386 = vadd.f32 0.0, %v1385
          %1387 = vmatmul.f32.gmra.mxu0 %v692
          %v1388 = vpop.f32.mrf.mxu0
          %v1389 = vadd.f32 0.0, %v1388
          %1390 = vmatmul.f32.gmra.mxu0 %v695
          %v1391 = vpop.f32.mrf.mxu0
          %v1392 = vadd.f32 0.0, %v1391
          %1393 = vmatmul.f32.gmra.mxu0 %v698
          %v1394 = vpop.f32.mrf.mxu0
          %v1395 = vadd.f32 0.0, %v1394
          %1396 = vmatmul.f32.gmra.mxu0 %v701
          %v1397 = vpop.f32.mrf.mxu0
          %v1398 = vadd.f32 0.0, %v1397
          %1399 = vmatmul.f32.gmra.mxu0 %v704
          %v1400 = vpop.f32.mrf.mxu0
          %v1401 = vadd.f32 0.0, %v1400
          %1402 = vmatmul.f32.gmra.mxu0 %v707
          %v1403 = vpop.f32.mrf.mxu0
          %v1404 = vadd.f32 0.0, %v1403
          %1405 = vmatmul.f32.gmra.mxu0 %v710
          %v1406 = vpop.f32.mrf.mxu0
          %v1407 = vadd.f32 0.0, %v1406
          %1408 = vdwg.mxu0
          %1409 = vmatpush.msra.mxu0 0.0
          %1410 = vmatpush.msra.mxu0 0.0
          %1411 = vmatpush.msra.mxu0 0.0
          %1412 = vmatpush.msra.mxu0 0.0
          %1413 = vmatpush.msra.mxu0 0.0
          %1414 = vmatpush.msra.mxu0 0.0
          %1415 = vmatpush.msra.mxu0 0.0
          %1416 = vmatpush.msra.mxu0 0.0
          %1417 = vmatpush.msra.mxu0 %v673
          %1418 = vmatpush.msra.mxu0 %v641
          %1419 = vmatpush.msra.mxu0 %v609
          %1420 = vmatpush.msra.mxu0 %v577
          %1421 = vmatpush.msra.mxu0 %v545
          %1422 = vmatpush.msra.mxu0 %v513
          %1423 = vmatpush.msra.mxu0 %v481
          %1424 = vmatpush.msra.mxu0 %v449
          %1425 = vmatmul.f32.gmra.mxu0 %v689
          %v1426 = vpop.f32.mrf.mxu0
          %v1427 = vadd.f32 0.0, %v1426
          %1428 = vmatmul.f32.gmra.mxu0 %v692
          %v1429 = vpop.f32.mrf.mxu0
          %v1430 = vadd.f32 0.0, %v1429
          %1431 = vmatmul.f32.gmra.mxu0 %v695
          %v1432 = vpop.f32.mrf.mxu0
          %v1433 = vadd.f32 0.0, %v1432
          %1434 = vmatmul.f32.gmra.mxu0 %v698
          %v1435 = vpop.f32.mrf.mxu0
          %v1436 = vadd.f32 0.0, %v1435
          %1437 = vmatmul.f32.gmra.mxu0 %v701
          %v1438 = vpop.f32.mrf.mxu0
          %v1439 = vadd.f32 0.0, %v1438
          %1440 = vmatmul.f32.gmra.mxu0 %v704
          %v1441 = vpop.f32.mrf.mxu0
          %v1442 = vadd.f32 0.0, %v1441
          %1443 = vmatmul.f32.gmra.mxu0 %v707
          %v1444 = vpop.f32.mrf.mxu0
          %v1445 = vadd.f32 0.0, %v1444
          %1446 = vmatmul.f32.gmra.mxu0 %v710
          %v1447 = vpop.f32.mrf.mxu0
          %v1448 = vadd.f32 0.0, %v1447
          %1449 = vdwg.mxu0
          %1450 = vmatpush.msra.mxu0 0.0
          %1451 = vmatpush.msra.mxu0 0.0
          %1452 = vmatpush.msra.mxu0 0.0
          %1453 = vmatpush.msra.mxu0 0.0
          %1454 = vmatpush.msra.mxu0 0.0
          %1455 = vmatpush.msra.mxu0 0.0
          %1456 = vmatpush.msra.mxu0 0.0
          %1457 = vmatpush.msra.mxu0 0.0
          %1458 = vmatpush.msra.mxu0 %v674
          %1459 = vmatpush.msra.mxu0 %v642
          %1460 = vmatpush.msra.mxu0 %v610
          %1461 = vmatpush.msra.mxu0 %v578
          %1462 = vmatpush.msra.mxu0 %v546
          %1463 = vmatpush.msra.mxu0 %v514
          %1464 = vmatpush.msra.mxu0 %v482
          %1465 = vmatpush.msra.mxu0 %v450
          %1466 = vmatmul.f32.gmra.mxu0 %v689
          %v1467 = vpop.f32.mrf.mxu0
          %v1468 = vadd.f32 0.0, %v1467
          %1469 = vmatmul.f32.gmra.mxu0 %v692
          %v1470 = vpop.f32.mrf.mxu0
          %v1471 = vadd.f32 0.0, %v1470
          %1472 = vmatmul.f32.gmra.mxu0 %v695
          %v1473 = vpop.f32.mrf.mxu0
          %v1474 = vadd.f32 0.0, %v1473
          %1475 = vmatmul.f32.gmra.mxu0 %v698
          %v1476 = vpop.f32.mrf.mxu0
          %v1477 = vadd.f32 0.0, %v1476
          %1478 = vmatmul.f32.gmra.mxu0 %v701
          %v1479 = vpop.f32.mrf.mxu0
          %v1480 = vadd.f32 0.0, %v1479
          %1481 = vmatmul.f32.gmra.mxu0 %v704
          %v1482 = vpop.f32.mrf.mxu0
          %v1483 = vadd.f32 0.0, %v1482
          %1484 = vmatmul.f32.gmra.mxu0 %v707
          %v1485 = vpop.f32.mrf.mxu0
          %v1486 = vadd.f32 0.0, %v1485
          %1487 = vmatmul.f32.gmra.mxu0 %v710
          %v1488 = vpop.f32.mrf.mxu0
          %v1489 = vadd.f32 0.0, %v1488
          %1490 = vdwg.mxu0
          %1491 = vmatpush.msra.mxu0 0.0
          %1492 = vmatpush.msra.mxu0 0.0
          %1493 = vmatpush.msra.mxu0 0.0
          %1494 = vmatpush.msra.mxu0 0.0
          %1495 = vmatpush.msra.mxu0 0.0
          %1496 = vmatpush.msra.mxu0 0.0
          %1497 = vmatpush.msra.mxu0 0.0
          %1498 = vmatpush.msra.mxu0 0.0
          %1499 = vmatpush.msra.mxu0 %v675
          %1500 = vmatpush.msra.mxu0 %v643
          %1501 = vmatpush.msra.mxu0 %v611
          %1502 = vmatpush.msra.mxu0 %v579
          %1503 = vmatpush.msra.mxu0 %v547
          %1504 = vmatpush.msra.mxu0 %v515
          %1505 = vmatpush.msra.mxu0 %v483
          %1506 = vmatpush.msra.mxu0 %v451
          %1507 = vmatmul.f32.gmra.mxu0 %v689
          %v1508 = vpop.f32.mrf.mxu0
          %v1509 = vadd.f32 0.0, %v1508
          %1510 = vmatmul.f32.gmra.mxu0 %v692
          %v1511 = vpop.f32.mrf.mxu0
          %v1512 = vadd.f32 0.0, %v1511
          %1513 = vmatmul.f32.gmra.mxu0 %v695
          %v1514 = vpop.f32.mrf.mxu0
          %v1515 = vadd.f32 0.0, %v1514
          %1516 = vmatmul.f32.gmra.mxu0 %v698
          %v1517 = vpop.f32.mrf.mxu0
          %v1518 = vadd.f32 0.0, %v1517
          %1519 = vmatmul.f32.gmra.mxu0 %v701
          %v1520 = vpop.f32.mrf.mxu0
          %v1521 = vadd.f32 0.0, %v1520
          %1522 = vmatmul.f32.gmra.mxu0 %v704
          %v1523 = vpop.f32.mrf.mxu0
          %v1524 = vadd.f32 0.0, %v1523
          %1525 = vmatmul.f32.gmra.mxu0 %v707
          %v1526 = vpop.f32.mrf.mxu0
          %v1527 = vadd.f32 0.0, %v1526
          %1528 = vmatmul.f32.gmra.mxu0 %v710
          %v1529 = vpop.f32.mrf.mxu0
          %v1530 = vadd.f32 0.0, %v1529
          %1531 = vdwg.mxu0
          %1532 = vmatpush.msra.mxu0 0.0
          %1533 = vmatpush.msra.mxu0 0.0
          %1534 = vmatpush.msra.mxu0 0.0
          %1535 = vmatpush.msra.mxu0 0.0
          %1536 = vmatpush.msra.mxu0 0.0
          %1537 = vmatpush.msra.mxu0 0.0
          %1538 = vmatpush.msra.mxu0 0.0
          %1539 = vmatpush.msra.mxu0 0.0
          %1540 = vmatpush.msra.mxu0 %v676
          %1541 = vmatpush.msra.mxu0 %v644
          %1542 = vmatpush.msra.mxu0 %v612
          %1543 = vmatpush.msra.mxu0 %v580
          %1544 = vmatpush.msra.mxu0 %v548
          %1545 = vmatpush.msra.mxu0 %v516
          %1546 = vmatpush.msra.mxu0 %v484
          %1547 = vmatpush.msra.mxu0 %v452
          %1548 = vmatmul.f32.gmra.mxu0 %v689
          %v1549 = vpop.f32.mrf.mxu0
          %v1550 = vadd.f32 0.0, %v1549
          %1551 = vmatmul.f32.gmra.mxu0 %v692
          %v1552 = vpop.f32.mrf.mxu0
          %v1553 = vadd.f32 0.0, %v1552
          %1554 = vmatmul.f32.gmra.mxu0 %v695
          %v1555 = vpop.f32.mrf.mxu0
          %v1556 = vadd.f32 0.0, %v1555
          %1557 = vmatmul.f32.gmra.mxu0 %v698
          %v1558 = vpop.f32.mrf.mxu0
          %v1559 = vadd.f32 0.0, %v1558
          %1560 = vmatmul.f32.gmra.mxu0 %v701
          %v1561 = vpop.f32.mrf.mxu0
          %v1562 = vadd.f32 0.0, %v1561
          %1563 = vmatmul.f32.gmra.mxu0 %v704
          %v1564 = vpop.f32.mrf.mxu0
          %v1565 = vadd.f32 0.0, %v1564
          %1566 = vmatmul.f32.gmra.mxu0 %v707
          %v1567 = vpop.f32.mrf.mxu0
          %v1568 = vadd.f32 0.0, %v1567
          %1569 = vmatmul.f32.gmra.mxu0 %v710
          %v1570 = vpop.f32.mrf.mxu0
          %v1571 = vadd.f32 0.0, %v1570
          %1572 = vdwg.mxu0
          %1573 = vmatpush.msra.mxu0 0.0
          %1574 = vmatpush.msra.mxu0 0.0
          %1575 = vmatpush.msra.mxu0 0.0
          %1576 = vmatpush.msra.mxu0 0.0
          %1577 = vmatpush.msra.mxu0 0.0
          %1578 = vmatpush.msra.mxu0 0.0
          %1579 = vmatpush.msra.mxu0 0.0
          %1580 = vmatpush.msra.mxu0 0.0
          %1581 = vmatpush.msra.mxu0 %v677
          %1582 = vmatpush.msra.mxu0 %v645
          %1583 = vmatpush.msra.mxu0 %v613
          %1584 = vmatpush.msra.mxu0 %v581
          %1585 = vmatpush.msra.mxu0 %v549
          %1586 = vmatpush.msra.mxu0 %v517
          %1587 = vmatpush.msra.mxu0 %v485
          %1588 = vmatpush.msra.mxu0 %v453
          %1589 = vmatmul.f32.gmra.mxu0 %v689
          %v1590 = vpop.f32.mrf.mxu0
          %v1591 = vadd.f32 0.0, %v1590
          %1592 = vmatmul.f32.gmra.mxu0 %v692
          %v1593 = vpop.f32.mrf.mxu0
          %v1594 = vadd.f32 0.0, %v1593
          %1595 = vmatmul.f32.gmra.mxu0 %v695
          %v1596 = vpop.f32.mrf.mxu0
          %v1597 = vadd.f32 0.0, %v1596
          %1598 = vmatmul.f32.gmra.mxu0 %v698
          %v1599 = vpop.f32.mrf.mxu0
          %v1600 = vadd.f32 0.0, %v1599
          %1601 = vmatmul.f32.gmra.mxu0 %v701
          %v1602 = vpop.f32.mrf.mxu0
          %v1603 = vadd.f32 0.0, %v1602
          %1604 = vmatmul.f32.gmra.mxu0 %v704
          %v1605 = vpop.f32.mrf.mxu0
          %v1606 = vadd.f32 0.0, %v1605
          %1607 = vmatmul.f32.gmra.mxu0 %v707
          %v1608 = vpop.f32.mrf.mxu0
          %v1609 = vadd.f32 0.0, %v1608
          %1610 = vmatmul.f32.gmra.mxu0 %v710
          %v1611 = vpop.f32.mrf.mxu0
          %v1612 = vadd.f32 0.0, %v1611
          %1613 = vdwg.mxu0
          %1614 = vmatpush.msra.mxu0 0.0
          %1615 = vmatpush.msra.mxu0 0.0
          %1616 = vmatpush.msra.mxu0 0.0
          %1617 = vmatpush.msra.mxu0 0.0
          %1618 = vmatpush.msra.mxu0 0.0
          %1619 = vmatpush.msra.mxu0 0.0
          %1620 = vmatpush.msra.mxu0 0.0
          %1621 = vmatpush.msra.mxu0 0.0
          %1622 = vmatpush.msra.mxu0 %v678
          %1623 = vmatpush.msra.mxu0 %v646
          %1624 = vmatpush.msra.mxu0 %v614
          %1625 = vmatpush.msra.mxu0 %v582
          %1626 = vmatpush.msra.mxu0 %v550
          %1627 = vmatpush.msra.mxu0 %v518
          %1628 = vmatpush.msra.mxu0 %v486
          %1629 = vmatpush.msra.mxu0 %v454
          %1630 = vmatmul.f32.gmra.mxu0 %v689
          %v1631 = vpop.f32.mrf.mxu0
          %v1632 = vadd.f32 0.0, %v1631
          %1633 = vmatmul.f32.gmra.mxu0 %v692
          %v1634 = vpop.f32.mrf.mxu0
          %v1635 = vadd.f32 0.0, %v1634
          %1636 = vmatmul.f32.gmra.mxu0 %v695
          %v1637 = vpop.f32.mrf.mxu0
          %v1638 = vadd.f32 0.0, %v1637
          %1639 = vmatmul.f32.gmra.mxu0 %v698
          %v1640 = vpop.f32.mrf.mxu0
          %v1641 = vadd.f32 0.0, %v1640
          %1642 = vmatmul.f32.gmra.mxu0 %v701
          %v1643 = vpop.f32.mrf.mxu0
          %v1644 = vadd.f32 0.0, %v1643
          %1645 = vmatmul.f32.gmra.mxu0 %v704
          %v1646 = vpop.f32.mrf.mxu0
          %v1647 = vadd.f32 0.0, %v1646
          %1648 = vmatmul.f32.gmra.mxu0 %v707
          %v1649 = vpop.f32.mrf.mxu0
          %v1650 = vadd.f32 0.0, %v1649
          %1651 = vmatmul.f32.gmra.mxu0 %v710
          %v1652 = vpop.f32.mrf.mxu0
          %v1653 = vadd.f32 0.0, %v1652
          %1654 = vdwg.mxu0
          %1655 = vmatpush.msra.mxu0 0.0
          %1656 = vmatpush.msra.mxu0 0.0
          %1657 = vmatpush.msra.mxu0 0.0
          %1658 = vmatpush.msra.mxu0 0.0
          %1659 = vmatpush.msra.mxu0 0.0
          %1660 = vmatpush.msra.mxu0 0.0
          %1661 = vmatpush.msra.mxu0 0.0
          %1662 = vmatpush.msra.mxu0 0.0
          %1663 = vmatpush.msra.mxu0 %v679
          %1664 = vmatpush.msra.mxu0 %v647
          %1665 = vmatpush.msra.mxu0 %v615
          %1666 = vmatpush.msra.mxu0 %v583
          %1667 = vmatpush.msra.mxu0 %v551
          %1668 = vmatpush.msra.mxu0 %v519
          %1669 = vmatpush.msra.mxu0 %v487
          %1670 = vmatpush.msra.mxu0 %v455
          %1671 = vmatmul.f32.gmra.mxu0 %v689
          %v1672 = vpop.f32.mrf.mxu0
          %v1673 = vadd.f32 0.0, %v1672
          %1674 = vmatmul.f32.gmra.mxu0 %v692
          %v1675 = vpop.f32.mrf.mxu0
          %v1676 = vadd.f32 0.0, %v1675
          %1677 = vmatmul.f32.gmra.mxu0 %v695
          %v1678 = vpop.f32.mrf.mxu0
          %v1679 = vadd.f32 0.0, %v1678
          %1680 = vmatmul.f32.gmra.mxu0 %v698
          %v1681 = vpop.f32.mrf.mxu0
          %v1682 = vadd.f32 0.0, %v1681
          %1683 = vmatmul.f32.gmra.mxu0 %v701
          %v1684 = vpop.f32.mrf.mxu0
          %v1685 = vadd.f32 0.0, %v1684
          %1686 = vmatmul.f32.gmra.mxu0 %v704
          %v1687 = vpop.f32.mrf.mxu0
          %v1688 = vadd.f32 0.0, %v1687
          %1689 = vmatmul.f32.gmra.mxu0 %v707
          %v1690 = vpop.f32.mrf.mxu0
          %v1691 = vadd.f32 0.0, %v1690
          %1692 = vmatmul.f32.gmra.mxu0 %v710
          %v1693 = vpop.f32.mrf.mxu0
          %v1694 = vadd.f32 0.0, %v1693
          %1695 = vdwg.mxu0
          %1696 = vmatpush.msra.mxu0 0.0
          %1697 = vmatpush.msra.mxu0 0.0
          %1698 = vmatpush.msra.mxu0 0.0
          %1699 = vmatpush.msra.mxu0 0.0
          %1700 = vmatpush.msra.mxu0 0.0
          %1701 = vmatpush.msra.mxu0 0.0
          %1702 = vmatpush.msra.mxu0 0.0
          %1703 = vmatpush.msra.mxu0 0.0
          %1704 = vmatpush.msra.mxu0 %v680
          %1705 = vmatpush.msra.mxu0 %v648
          %1706 = vmatpush.msra.mxu0 %v616
          %1707 = vmatpush.msra.mxu0 %v584
          %1708 = vmatpush.msra.mxu0 %v552
          %1709 = vmatpush.msra.mxu0 %v520
          %1710 = vmatpush.msra.mxu0 %v488
          %1711 = vmatpush.msra.mxu0 %v456
          %1712 = vmatmul.f32.gmra.mxu0 %v689
          %v1713 = vpop.f32.mrf.mxu0
          %v1714 = vadd.f32 0.0, %v1713
          %1715 = vmatmul.f32.gmra.mxu0 %v692
          %v1716 = vpop.f32.mrf.mxu0
          %v1717 = vadd.f32 0.0, %v1716
          %1718 = vmatmul.f32.gmra.mxu0 %v695
          %v1719 = vpop.f32.mrf.mxu0
          %v1720 = vadd.f32 0.0, %v1719
          %1721 = vmatmul.f32.gmra.mxu0 %v698
          %v1722 = vpop.f32.mrf.mxu0
          %v1723 = vadd.f32 0.0, %v1722
          %1724 = vmatmul.f32.gmra.mxu0 %v701
          %v1725 = vpop.f32.mrf.mxu0
          %v1726 = vadd.f32 0.0, %v1725
          %1727 = vmatmul.f32.gmra.mxu0 %v704
          %v1728 = vpop.f32.mrf.mxu0
          %v1729 = vadd.f32 0.0, %v1728
          %1730 = vmatmul.f32.gmra.mxu0 %v707
          %v1731 = vpop.f32.mrf.mxu0
          %v1732 = vadd.f32 0.0, %v1731
          %1733 = vmatmul.f32.gmra.mxu0 %v710
          %v1734 = vpop.f32.mrf.mxu0
          %v1735 = vadd.f32 0.0, %v1734
          %1736 = vdwg.mxu0
          %1737 = vmatpush.msra.mxu0 0.0
          %1738 = vmatpush.msra.mxu0 0.0
          %1739 = vmatpush.msra.mxu0 0.0
          %1740 = vmatpush.msra.mxu0 0.0
          %1741 = vmatpush.msra.mxu0 0.0
          %1742 = vmatpush.msra.mxu0 0.0
          %1743 = vmatpush.msra.mxu0 0.0
          %1744 = vmatpush.msra.mxu0 0.0
          %1745 = vmatpush.msra.mxu0 %v681
          %1746 = vmatpush.msra.mxu0 %v649
          %1747 = vmatpush.msra.mxu0 %v617
          %1748 = vmatpush.msra.mxu0 %v585
          %1749 = vmatpush.msra.mxu0 %v553
          %1750 = vmatpush.msra.mxu0 %v521
          %1751 = vmatpush.msra.mxu0 %v489
          %1752 = vmatpush.msra.mxu0 %v457
          %1753 = vmatmul.f32.gmra.mxu0 %v689
          %v1754 = vpop.f32.mrf.mxu0
          %v1755 = vadd.f32 0.0, %v1754
          %1756 = vmatmul.f32.gmra.mxu0 %v692
          %v1757 = vpop.f32.mrf.mxu0
          %v1758 = vadd.f32 0.0, %v1757
          %1759 = vmatmul.f32.gmra.mxu0 %v695
          %v1760 = vpop.f32.mrf.mxu0
          %v1761 = vadd.f32 0.0, %v1760
          %1762 = vmatmul.f32.gmra.mxu0 %v698
          %v1763 = vpop.f32.mrf.mxu0
          %v1764 = vadd.f32 0.0, %v1763
          %1765 = vmatmul.f32.gmra.mxu0 %v701
          %v1766 = vpop.f32.mrf.mxu0
          %v1767 = vadd.f32 0.0, %v1766
          %1768 = vmatmul.f32.gmra.mxu0 %v704
          %v1769 = vpop.f32.mrf.mxu0
          %v1770 = vadd.f32 0.0, %v1769
          %1771 = vmatmul.f32.gmra.mxu0 %v707
          %v1772 = vpop.f32.mrf.mxu0
          %v1773 = vadd.f32 0.0, %v1772
          %1774 = vmatmul.f32.gmra.mxu0 %v710
          %v1775 = vpop.f32.mrf.mxu0
          %v1776 = vadd.f32 0.0, %v1775
          %1777 = vdwg.mxu0
          %1778 = vmatpush.msra.mxu0 0.0
          %1779 = vmatpush.msra.mxu0 0.0
          %1780 = vmatpush.msra.mxu0 0.0
          %1781 = vmatpush.msra.mxu0 0.0
          %1782 = vmatpush.msra.mxu0 0.0
          %1783 = vmatpush.msra.mxu0 0.0
          %1784 = vmatpush.msra.mxu0 0.0
          %1785 = vmatpush.msra.mxu0 0.0
          %1786 = vmatpush.msra.mxu0 %v682
          %1787 = vmatpush.msra.mxu0 %v650
          %1788 = vmatpush.msra.mxu0 %v618
          %1789 = vmatpush.msra.mxu0 %v586
          %1790 = vmatpush.msra.mxu0 %v554
          %1791 = vmatpush.msra.mxu0 %v522
          %1792 = vmatpush.msra.mxu0 %v490
          %1793 = vmatpush.msra.mxu0 %v458
          %1794 = vmatmul.f32.gmra.mxu0 %v689
          %v1795 = vpop.f32.mrf.mxu0
          %v1796 = vadd.f32 0.0, %v1795
          %1797 = vmatmul.f32.gmra.mxu0 %v692
          %v1798 = vpop.f32.mrf.mxu0
          %v1799 = vadd.f32 0.0, %v1798
          %1800 = vmatmul.f32.gmra.mxu0 %v695
          %v1801 = vpop.f32.mrf.mxu0
          %v1802 = vadd.f32 0.0, %v1801
          %1803 = vmatmul.f32.gmra.mxu0 %v698
          %v1804 = vpop.f32.mrf.mxu0
          %v1805 = vadd.f32 0.0, %v1804
          %1806 = vmatmul.f32.gmra.mxu0 %v701
          %v1807 = vpop.f32.mrf.mxu0
          %v1808 = vadd.f32 0.0, %v1807
          %1809 = vmatmul.f32.gmra.mxu0 %v704
          %v1810 = vpop.f32.mrf.mxu0
          %v1811 = vadd.f32 0.0, %v1810
          %1812 = vmatmul.f32.gmra.mxu0 %v707
          %v1813 = vpop.f32.mrf.mxu0
          %v1814 = vadd.f32 0.0, %v1813
          %1815 = vmatmul.f32.gmra.mxu0 %v710
          %v1816 = vpop.f32.mrf.mxu0
          %v1817 = vadd.f32 0.0, %v1816
          %1818 = vdwg.mxu0
          %1819 = vmatpush.msra.mxu0 0.0
          %1820 = vmatpush.msra.mxu0 0.0
          %1821 = vmatpush.msra.mxu0 0.0
          %1822 = vmatpush.msra.mxu0 0.0
          %1823 = vmatpush.msra.mxu0 0.0
          %1824 = vmatpush.msra.mxu0 0.0
          %1825 = vmatpush.msra.mxu0 0.0
          %1826 = vmatpush.msra.mxu0 0.0
          %1827 = vmatpush.msra.mxu0 %v683
          %1828 = vmatpush.msra.mxu0 %v651
          %1829 = vmatpush.msra.mxu0 %v619
          %1830 = vmatpush.msra.mxu0 %v587
          %1831 = vmatpush.msra.mxu0 %v555
          %1832 = vmatpush.msra.mxu0 %v523
          %1833 = vmatpush.msra.mxu0 %v491
          %1834 = vmatpush.msra.mxu0 %v459
          %1835 = vmatmul.f32.gmra.mxu0 %v689
          %v1836 = vpop.f32.mrf.mxu0
          %v1837 = vadd.f32 0.0, %v1836
          %1838 = vmatmul.f32.gmra.mxu0 %v692
          %v1839 = vpop.f32.mrf.mxu0
          %v1840 = vadd.f32 0.0, %v1839
          %1841 = vmatmul.f32.gmra.mxu0 %v695
          %v1842 = vpop.f32.mrf.mxu0
          %v1843 = vadd.f32 0.0, %v1842
          %1844 = vmatmul.f32.gmra.mxu0 %v698
          %v1845 = vpop.f32.mrf.mxu0
          %v1846 = vadd.f32 0.0, %v1845
          %1847 = vmatmul.f32.gmra.mxu0 %v701
          %v1848 = vpop.f32.mrf.mxu0
          %v1849 = vadd.f32 0.0, %v1848
          %1850 = vmatmul.f32.gmra.mxu0 %v704
          %v1851 = vpop.f32.mrf.mxu0
          %v1852 = vadd.f32 0.0, %v1851
          %1853 = vmatmul.f32.gmra.mxu0 %v707
          %v1854 = vpop.f32.mrf.mxu0
          %v1855 = vadd.f32 0.0, %v1854
          %1856 = vmatmul.f32.gmra.mxu0 %v710
          %v1857 = vpop.f32.mrf.mxu0
          %v1858 = vadd.f32 0.0, %v1857
          %1859 = vdwg.mxu0
          %1860 = vmatpush.msra.mxu0 0.0
          %1861 = vmatpush.msra.mxu0 0.0
          %1862 = vmatpush.msra.mxu0 0.0
          %1863 = vmatpush.msra.mxu0 0.0
          %1864 = vmatpush.msra.mxu0 0.0
          %1865 = vmatpush.msra.mxu0 0.0
          %1866 = vmatpush.msra.mxu0 0.0
          %1867 = vmatpush.msra.mxu0 0.0
          %1868 = vmatpush.msra.mxu0 %v684
          %1869 = vmatpush.msra.mxu0 %v652
          %1870 = vmatpush.msra.mxu0 %v620
          %1871 = vmatpush.msra.mxu0 %v588
          %1872 = vmatpush.msra.mxu0 %v556
          %1873 = vmatpush.msra.mxu0 %v524
          %1874 = vmatpush.msra.mxu0 %v492
          %1875 = vmatpush.msra.mxu0 %v460
          %1876 = vmatmul.f32.gmra.mxu0 %v689
          %v1877 = vpop.f32.mrf.mxu0
          %v1878 = vadd.f32 0.0, %v1877
          %1879 = vmatmul.f32.gmra.mxu0 %v692
          %v1880 = vpop.f32.mrf.mxu0
          %v1881 = vadd.f32 0.0, %v1880
          %1882 = vmatmul.f32.gmra.mxu0 %v695
          %v1883 = vpop.f32.mrf.mxu0
          %v1884 = vadd.f32 0.0, %v1883
          %1885 = vmatmul.f32.gmra.mxu0 %v698
          %v1886 = vpop.f32.mrf.mxu0
          %v1887 = vadd.f32 0.0, %v1886
          %1888 = vmatmul.f32.gmra.mxu0 %v701
          %v1889 = vpop.f32.mrf.mxu0
          %v1890 = vadd.f32 0.0, %v1889
          %1891 = vmatmul.f32.gmra.mxu0 %v704
          %v1892 = vpop.f32.mrf.mxu0
          %v1893 = vadd.f32 0.0, %v1892
          %1894 = vmatmul.f32.gmra.mxu0 %v707
          %v1895 = vpop.f32.mrf.mxu0
          %v1896 = vadd.f32 0.0, %v1895
          %1897 = vmatmul.f32.gmra.mxu0 %v710
          %v1898 = vpop.f32.mrf.mxu0
          %v1899 = vadd.f32 0.0, %v1898
          %1900 = vdwg.mxu0
          %1901 = vmatpush.msra.mxu0 0.0
          %1902 = vmatpush.msra.mxu0 0.0
          %1903 = vmatpush.msra.mxu0 0.0
          %1904 = vmatpush.msra.mxu0 0.0
          %1905 = vmatpush.msra.mxu0 0.0
          %1906 = vmatpush.msra.mxu0 0.0
          %1907 = vmatpush.msra.mxu0 0.0
          %1908 = vmatpush.msra.mxu0 0.0
          %1909 = vmatpush.msra.mxu0 %v685
          %1910 = vmatpush.msra.mxu0 %v653
          %1911 = vmatpush.msra.mxu0 %v621
          %1912 = vmatpush.msra.mxu0 %v589
          %1913 = vmatpush.msra.mxu0 %v557
          %1914 = vmatpush.msra.mxu0 %v525
          %1915 = vmatpush.msra.mxu0 %v493
          %1916 = vmatpush.msra.mxu0 %v461
          %1917 = vmatmul.f32.gmra.mxu0 %v689
          %v1918 = vpop.f32.mrf.mxu0
          %v1919 = vadd.f32 0.0, %v1918
          %1920 = vmatmul.f32.gmra.mxu0 %v692
          %v1921 = vpop.f32.mrf.mxu0
          %v1922 = vadd.f32 0.0, %v1921
          %1923 = vmatmul.f32.gmra.mxu0 %v695
          %v1924 = vpop.f32.mrf.mxu0
          %v1925 = vadd.f32 0.0, %v1924
          %1926 = vmatmul.f32.gmra.mxu0 %v698
          %v1927 = vpop.f32.mrf.mxu0
          %v1928 = vadd.f32 0.0, %v1927
          %1929 = vmatmul.f32.gmra.mxu0 %v701
          %v1930 = vpop.f32.mrf.mxu0
          %v1931 = vadd.f32 0.0, %v1930
          %1932 = vmatmul.f32.gmra.mxu0 %v704
          %v1933 = vpop.f32.mrf.mxu0
          %v1934 = vadd.f32 0.0, %v1933
          %1935 = vmatmul.f32.gmra.mxu0 %v707
          %v1936 = vpop.f32.mrf.mxu0
          %v1937 = vadd.f32 0.0, %v1936
          %1938 = vmatmul.f32.gmra.mxu0 %v710
          %v1939 = vpop.f32.mrf.mxu0
          %v1940 = vadd.f32 0.0, %v1939
          %1941 = vdwg.mxu0
          %1942 = vmatpush.msra.mxu0 0.0
          %1943 = vmatpush.msra.mxu0 0.0
          %1944 = vmatpush.msra.mxu0 0.0
          %1945 = vmatpush.msra.mxu0 0.0
          %1946 = vmatpush.msra.mxu0 0.0
          %1947 = vmatpush.msra.mxu0 0.0
          %1948 = vmatpush.msra.mxu0 0.0
          %1949 = vmatpush.msra.mxu0 0.0
          %1950 = vmatpush.msra.mxu0 %v686
          %1951 = vmatpush.msra.mxu0 %v654
          %1952 = vmatpush.msra.mxu0 %v622
          %1953 = vmatpush.msra.mxu0 %v590
          %1954 = vmatpush.msra.mxu0 %v558
          %1955 = vmatpush.msra.mxu0 %v526
          %1956 = vmatpush.msra.mxu0 %v494
          %1957 = vmatpush.msra.mxu0 %v462
          %1958 = vmatmul.f32.gmra.mxu0 %v689
          %v1959 = vpop.f32.mrf.mxu0
          %v1960 = vadd.f32 0.0, %v1959
          %1961 = vmatmul.f32.gmra.mxu0 %v692
          %v1962 = vpop.f32.mrf.mxu0
          %v1963 = vadd.f32 0.0, %v1962
          %1964 = vmatmul.f32.gmra.mxu0 %v695
          %v1965 = vpop.f32.mrf.mxu0
          %v1966 = vadd.f32 0.0, %v1965
          %1967 = vmatmul.f32.gmra.mxu0 %v698
          %v1968 = vpop.f32.mrf.mxu0
          %v1969 = vadd.f32 0.0, %v1968
          %1970 = vmatmul.f32.gmra.mxu0 %v701
          %v1971 = vpop.f32.mrf.mxu0
          %v1972 = vadd.f32 0.0, %v1971
          %1973 = vmatmul.f32.gmra.mxu0 %v704
          %v1974 = vpop.f32.mrf.mxu0
          %v1975 = vadd.f32 0.0, %v1974
          %1976 = vmatmul.f32.gmra.mxu0 %v707
          %v1977 = vpop.f32.mrf.mxu0
          %v1978 = vadd.f32 0.0, %v1977
          %1979 = vmatmul.f32.gmra.mxu0 %v710
          %v1980 = vpop.f32.mrf.mxu0
          %v1981 = vadd.f32 0.0, %v1980
          %1982 = vdwg.mxu0
          %1983 = vmatpush.msra.mxu0 0.0
          %1984 = vmatpush.msra.mxu0 0.0
          %1985 = vmatpush.msra.mxu0 0.0
          %1986 = vmatpush.msra.mxu0 0.0
          %1987 = vmatpush.msra.mxu0 0.0
          %1988 = vmatpush.msra.mxu0 0.0
          %1989 = vmatpush.msra.mxu0 0.0
          %1990 = vmatpush.msra.mxu0 0.0
          %1991 = vmatpush.msra.mxu0 %v687
          %1992 = vmatpush.msra.mxu0 %v655
          %1993 = vmatpush.msra.mxu0 %v623
          %1994 = vmatpush.msra.mxu0 %v591
          %1995 = vmatpush.msra.mxu0 %v559
          %1996 = vmatpush.msra.mxu0 %v527
          %1997 = vmatpush.msra.mxu0 %v495
          %1998 = vmatpush.msra.mxu0 %v463
          %1999 = vmatmul.f32.gmra.mxu0 %v689
          %v2000 = vpop.f32.mrf.mxu0
          %v2001 = vadd.f32 0.0, %v2000
          %2002 = vmatmul.f32.gmra.mxu0 %v692
          %v2003 = vpop.f32.mrf.mxu0
          %v2004 = vadd.f32 0.0, %v2003
          %2005 = vmatmul.f32.gmra.mxu0 %v695
          %v2006 = vpop.f32.mrf.mxu0
          %v2007 = vadd.f32 0.0, %v2006
          %2008 = vmatmul.f32.gmra.mxu0 %v698
          %v2009 = vpop.f32.mrf.mxu0
          %v2010 = vadd.f32 0.0, %v2009
          %2011 = vmatmul.f32.gmra.mxu0 %v701
          %v2012 = vpop.f32.mrf.mxu0
          %v2013 = vadd.f32 0.0, %v2012
          %2014 = vmatmul.f32.gmra.mxu0 %v704
          %v2015 = vpop.f32.mrf.mxu0
          %v2016 = vadd.f32 0.0, %v2015
          %2017 = vmatmul.f32.gmra.mxu0 %v707
          %v2018 = vpop.f32.mrf.mxu0
          %v2019 = vadd.f32 0.0, %v2018
          %2020 = vmatmul.f32.gmra.mxu0 %v710
          %v2021 = vpop.f32.mrf.mxu0
          %v2022 = vadd.f32 0.0, %v2021
          %2023 = vdwg.mxu0
          %2024 = vst [vmem:[#allocation2] sm:$0xff] %v730
          %2025 = vst [vmem:[#allocation2 + $0x8] sm:$0xff] %v771
          %2026 = vst [vmem:[#allocation2 + $0x10] sm:$0xff] %v812
          %2027 = vst [vmem:[#allocation2 + $0x18] sm:$0xff] %v853
          %2028 = vst [vmem:[#allocation2 + $0x20] sm:$0xff] %v894
          %2029 = vst [vmem:[#allocation2 + $0x28] sm:$0xff] %v935
          %2030 = vst [vmem:[#allocation2 + $0x30] sm:$0xff] %v976
          %2031 = vst [vmem:[#allocation2 + $0x38] sm:$0xff] %v1017
          %2032 = vst [vmem:[#allocation2 + $0x40] sm:$0xff] %v1058
          %2033 = vst [vmem:[#allocation2 + $0x48] sm:$0xff] %v1099
          %2034 = vst [vmem:[#allocation2 + $0x50] sm:$0xff] %v1140
          %2035 = vst [vmem:[#allocation2 + $0x58] sm:$0xff] %v1181
          %2036 = vst [vmem:[#allocation2 + $0x60] sm:$0xff] %v1222
          %2037 = vst [vmem:[#allocation2 + $0x68] sm:$0xff] %v1263
          %2038 = vst [vmem:[#allocation2 + $0x70] sm:$0xff] %v1304
          %2039 = vst [vmem:[#allocation2 + $0x78] sm:$0xff] %v1345
          %2040 = vst [vmem:[#allocation2 + $0x80] sm:$0xff] %v1386
          %2041 = vst [vmem:[#allocation2 + $0x88] sm:$0xff] %v1427
          %2042 = vst [vmem:[#allocation2 + $0x90] sm:$0xff] %v1468
          %2043 = vst [vmem:[#allocation2 + $0x98] sm:$0xff] %v1509
          %2044 = vst [vmem:[#allocation2 + $0xa0] sm:$0xff] %v1550
          %2045 = vst [vmem:[#allocation2 + $0xa8] sm:$0xff] %v1591
          %2046 = vst [vmem:[#allocation2 + $0xb0] sm:$0xff] %v1632
          %2047 = vst [vmem:[#allocation2 + $0xb8] sm:$0xff] %v1673
          %2048 = vst [vmem:[#allocation2 + $0xc0] sm:$0xff] %v1714
          %2049 = vst [vmem:[#allocation2 + $0xc8] sm:$0xff] %v1755
          %2050 = vst [vmem:[#allocation2 + $0xd0] sm:$0xff] %v1796
          %2051 = vst [vmem:[#allocation2 + $0xd8] sm:$0xff] %v1837
          %2052 = vst [vmem:[#allocation2 + $0xe0] sm:$0xff] %v1878
          %2053 = vst [vmem:[#allocation2 + $0xe8] sm:$0xff] %v1919
          %2054 = vst [vmem:[#allocation2 + $0xf0] sm:$0xff] %v1960
          %2055 = vst [vmem:[#allocation2 + $0xf8] sm:$0xff] %v2001
          %2056 = vst [vmem:[#allocation2 + $0x100] sm:$0xff] %v733
          %2057 = vst [vmem:[#allocation2 + $0x108] sm:$0xff] %v774
          %2058 = vst [vmem:[#allocation2 + $0x110] sm:$0xff] %v815
          %2059 = vst [vmem:[#allocation2 + $0x118] sm:$0xff] %v856
          %2060 = vst [vmem:[#allocation2 + $0x120] sm:$0xff] %v897
          %2061 = vst [vmem:[#allocation2 + $0x128] sm:$0xff] %v938
          %2062 = vst [vmem:[#allocation2 + $0x130] sm:$0xff] %v979
          %2063 = vst [vmem:[#allocation2 + $0x138] sm:$0xff] %v1020
          %2064 = vst [vmem:[#allocation2 + $0x140] sm:$0xff] %v1061
          %2065 = vst [vmem:[#allocation2 + $0x148] sm:$0xff] %v1102
          %2066 = vst [vmem:[#allocation2 + $0x150] sm:$0xff] %v1143
          %2067 = vst [vmem:[#allocation2 + $0x158] sm:$0xff] %v1184
          %2068 = vst [vmem:[#allocation2 + $0x160] sm:$0xff] %v1225
          %2069 = vst [vmem:[#allocation2 + $0x168] sm:$0xff] %v1266
          %2070 = vst [vmem:[#allocation2 + $0x170] sm:$0xff] %v1307
          %2071 = vst [vmem:[#allocation2 + $0x178] sm:$0xff] %v1348
          %2072 = vst [vmem:[#allocation2 + $0x180] sm:$0xff] %v1389
          %2073 = vst [vmem:[#allocation2 + $0x188] sm:$0xff] %v1430
          %2074 = vst [vmem:[#allocation2 + $0x190] sm:$0xff] %v1471
          %2075 = vst [vmem:[#allocation2 + $0x198] sm:$0xff] %v1512
          %2076 = vst [vmem:[#allocation2 + $0x1a0] sm:$0xff] %v1553
          %2077 = vst [vmem:[#allocation2 + $0x1a8] sm:$0xff] %v1594
          %2078 = vst [vmem:[#allocation2 + $0x1b0] sm:$0xff] %v1635
          %2079 = vst [vmem:[#allocation2 + $0x1b8] sm:$0xff] %v1676
          %2080 = vst [vmem:[#allocation2 + $0x1c0] sm:$0xff] %v1717
          %2081 = vst [vmem:[#allocation2 + $0x1c8] sm:$0xff] %v1758
          %2082 = vst [vmem:[#allocation2 + $0x1d0] sm:$0xff] %v1799
          %2083 = vst [vmem:[#allocation2 + $0x1d8] sm:$0xff] %v1840
          %2084 = vst [vmem:[#allocation2 + $0x1e0] sm:$0xff] %v1881
          %2085 = vst [vmem:[#allocation2 + $0x1e8] sm:$0xff] %v1922
          %2086 = vst [vmem:[#allocation2 + $0x1f0] sm:$0xff] %v1963
          %2087 = vst [vmem:[#allocation2 + $0x1f8] sm:$0xff] %v2004
          %2088 = vst [vmem:[#allocation2 + $0x200] sm:$0xff] %v736
          %2089 = vst [vmem:[#allocation2 + $0x208] sm:$0xff] %v777
          %2090 = vst [vmem:[#allocation2 + $0x210] sm:$0xff] %v818
          %2091 = vst [vmem:[#allocation2 + $0x218] sm:$0xff] %v859
          %2092 = vst [vmem:[#allocation2 + $0x220] sm:$0xff] %v900
          %2093 = vst [vmem:[#allocation2 + $0x228] sm:$0xff] %v941
          %2094 = vst [vmem:[#allocation2 + $0x230] sm:$0xff] %v982
          %2095 = vst [vmem:[#allocation2 + $0x238] sm:$0xff] %v1023
          %2096 = vst [vmem:[#allocation2 + $0x240] sm:$0xff] %v1064
          %2097 = vst [vmem:[#allocation2 + $0x248] sm:$0xff] %v1105
          %2098 = vst [vmem:[#allocation2 + $0x250] sm:$0xff] %v1146
          %2099 = vst [vmem:[#allocation2 + $0x258] sm:$0xff] %v1187
          %2100 = vst [vmem:[#allocation2 + $0x260] sm:$0xff] %v1228
          %2101 = vst [vmem:[#allocation2 + $0x268] sm:$0xff] %v1269
          %2102 = vst [vmem:[#allocation2 + $0x270] sm:$0xff] %v1310
          %2103 = vst [vmem:[#allocation2 + $0x278] sm:$0xff] %v1351
          %2104 = vst [vmem:[#allocation2 + $0x280] sm:$0xff] %v1392
          %2105 = vst [vmem:[#allocation2 + $0x288] sm:$0xff] %v1433
          %2106 = vst [vmem:[#allocation2 + $0x290] sm:$0xff] %v1474
          %2107 = vst [vmem:[#allocation2 + $0x298] sm:$0xff] %v1515
          %2108 = vst [vmem:[#allocation2 + $0x2a0] sm:$0xff] %v1556
          %2109 = vst [vmem:[#allocation2 + $0x2a8] sm:$0xff] %v1597
          %2110 = vst [vmem:[#allocation2 + $0x2b0] sm:$0xff] %v1638
          %2111 = vst [vmem:[#allocation2 + $0x2b8] sm:$0xff] %v1679
          %2112 = vst [vmem:[#allocation2 + $0x2c0] sm:$0xff] %v1720
          %2113 = vst [vmem:[#allocation2 + $0x2c8] sm:$0xff] %v1761
          %2114 = vst [vmem:[#allocation2 + $0x2d0] sm:$0xff] %v1802
          %2115 = vst [vmem:[#allocation2 + $0x2d8] sm:$0xff] %v1843
          %2116 = vst [vmem:[#allocation2 + $0x2e0] sm:$0xff] %v1884
          %2117 = vst [vmem:[#allocation2 + $0x2e8] sm:$0xff] %v1925
          %2118 = vst [vmem:[#allocation2 + $0x2f0] sm:$0xff] %v1966
          %2119 = vst [vmem:[#allocation2 + $0x2f8] sm:$0xff] %v2007
          %2120 = vst [vmem:[#allocation2 + $0x300] sm:$0xff] %v739
          %2121 = vst [vmem:[#allocation2 + $0x308] sm:$0xff] %v780
          %2122 = vst [vmem:[#allocation2 + $0x310] sm:$0xff] %v821
          %2123 = vst [vmem:[#allocation2 + $0x318] sm:$0xff] %v862
          %2124 = vst [vmem:[#allocation2 + $0x320] sm:$0xff] %v903
          %2125 = vst [vmem:[#allocation2 + $0x328] sm:$0xff] %v944
          %2126 = vst [vmem:[#allocation2 + $0x330] sm:$0xff] %v985
          %2127 = vst [vmem:[#allocation2 + $0x338] sm:$0xff] %v1026
          %2128 = vst [vmem:[#allocation2 + $0x340] sm:$0xff] %v1067
          %2129 = vst [vmem:[#allocation2 + $0x348] sm:$0xff] %v1108
          %2130 = vst [vmem:[#allocation2 + $0x350] sm:$0xff] %v1149
          %2131 = vst [vmem:[#allocation2 + $0x358] sm:$0xff] %v1190
          %2132 = vst [vmem:[#allocation2 + $0x360] sm:$0xff] %v1231
          %2133 = vst [vmem:[#allocation2 + $0x368] sm:$0xff] %v1272
          %2134 = vst [vmem:[#allocation2 + $0x370] sm:$0xff] %v1313
          %2135 = vst [vmem:[#allocation2 + $0x378] sm:$0xff] %v1354
          %2136 = vst [vmem:[#allocation2 + $0x380] sm:$0xff] %v1395
          %2137 = vst [vmem:[#allocation2 + $0x388] sm:$0xff] %v1436
          %2138 = vst [vmem:[#allocation2 + $0x390] sm:$0xff] %v1477
          %2139 = vst [vmem:[#allocation2 + $0x398] sm:$0xff] %v1518
          %2140 = vst [vmem:[#allocation2 + $0x3a0] sm:$0xff] %v1559
          %2141 = vst [vmem:[#allocation2 + $0x3a8] sm:$0xff] %v1600
          %2142 = vst [vmem:[#allocation2 + $0x3b0] sm:$0xff] %v1641
          %2143 = vst [vmem:[#allocation2 + $0x3b8] sm:$0xff] %v1682
          %2144 = vst [vmem:[#allocation2 + $0x3c0] sm:$0xff] %v1723
          %2145 = vst [vmem:[#allocation2 + $0x3c8] sm:$0xff] %v1764
          %2146 = vst [vmem:[#allocation2 + $0x3d0] sm:$0xff] %v1805
          %2147 = vst [vmem:[#allocation2 + $0x3d8] sm:$0xff] %v1846
          %2148 = vst [vmem:[#allocation2 + $0x3e0] sm:$0xff] %v1887
          %2149 = vst [vmem:[#allocation2 + $0x3e8] sm:$0xff] %v1928
          %2150 = vst [vmem:[#allocation2 + $0x3f0] sm:$0xff] %v1969
          %2151 = vst [vmem:[#allocation2 + $0x3f8] sm:$0xff] %v2010
          %2152 = vst [vmem:[#allocation2 + $0x400] sm:$0xff] %v742
          %2153 = vst [vmem:[#allocation2 + $0x408] sm:$0xff] %v783
          %2154 = vst [vmem:[#allocation2 + $0x410] sm:$0xff] %v824
          %2155 = vst [vmem:[#allocation2 + $0x418] sm:$0xff] %v865
          %2156 = vst [vmem:[#allocation2 + $0x420] sm:$0xff] %v906
          %2157 = vst [vmem:[#allocation2 + $0x428] sm:$0xff] %v947
          %2158 = vst [vmem:[#allocation2 + $0x430] sm:$0xff] %v988
          %2159 = vst [vmem:[#allocation2 + $0x438] sm:$0xff] %v1029
          %2160 = vst [vmem:[#allocation2 + $0x440] sm:$0xff] %v1070
          %2161 = vst [vmem:[#allocation2 + $0x448] sm:$0xff] %v1111
          %2162 = vst [vmem:[#allocation2 + $0x450] sm:$0xff] %v1152
          %2163 = vst [vmem:[#allocation2 + $0x458] sm:$0xff] %v1193
          %2164 = vst [vmem:[#allocation2 + $0x460] sm:$0xff] %v1234
          %2165 = vst [vmem:[#allocation2 + $0x468] sm:$0xff] %v1275
          %2166 = vst [vmem:[#allocation2 + $0x470] sm:$0xff] %v1316
          %2167 = vst [vmem:[#allocation2 + $0x478] sm:$0xff] %v1357
          %2168 = vst [vmem:[#allocation2 + $0x480] sm:$0xff] %v1398
          %2169 = vst [vmem:[#allocation2 + $0x488] sm:$0xff] %v1439
          %2170 = vst [vmem:[#allocation2 + $0x490] sm:$0xff] %v1480
          %2171 = vst [vmem:[#allocation2 + $0x498] sm:$0xff] %v1521
          %2172 = vst [vmem:[#allocation2 + $0x4a0] sm:$0xff] %v1562
          %2173 = vst [vmem:[#allocation2 + $0x4a8] sm:$0xff] %v1603
          %2174 = vst [vmem:[#allocation2 + $0x4b0] sm:$0xff] %v1644
          %2175 = vst [vmem:[#allocation2 + $0x4b8] sm:$0xff] %v1685
          %2176 = vst [vmem:[#allocation2 + $0x4c0] sm:$0xff] %v1726
          %2177 = vst [vmem:[#allocation2 + $0x4c8] sm:$0xff] %v1767
          %2178 = vst [vmem:[#allocation2 + $0x4d0] sm:$0xff] %v1808
          %2179 = vst [vmem:[#allocation2 + $0x4d8] sm:$0xff] %v1849
          %2180 = vst [vmem:[#allocation2 + $0x4e0] sm:$0xff] %v1890
          %2181 = vst [vmem:[#allocation2 + $0x4e8] sm:$0xff] %v1931
          %2182 = vst [vmem:[#allocation2 + $0x4f0] sm:$0xff] %v1972
          %2183 = vst [vmem:[#allocation2 + $0x4f8] sm:$0xff] %v2013
          %2184 = vst [vmem:[#allocation2 + $0x500] sm:$0xff] %v745
          %2185 = vst [vmem:[#allocation2 + $0x508] sm:$0xff] %v786
          %2186 = vst [vmem:[#allocation2 + $0x510] sm:$0xff] %v827
          %2187 = vst [vmem:[#allocation2 + $0x518] sm:$0xff] %v868
          %2188 = vst [vmem:[#allocation2 + $0x520] sm:$0xff] %v909
          %2189 = vst [vmem:[#allocation2 + $0x528] sm:$0xff] %v950
          %2190 = vst [vmem:[#allocation2 + $0x530] sm:$0xff] %v991
          %2191 = vst [vmem:[#allocation2 + $0x538] sm:$0xff] %v1032
          %2192 = vst [vmem:[#allocation2 + $0x540] sm:$0xff] %v1073
          %2193 = vst [vmem:[#allocation2 + $0x548] sm:$0xff] %v1114
          %2194 = vst [vmem:[#allocation2 + $0x550] sm:$0xff] %v1155
          %2195 = vst [vmem:[#allocation2 + $0x558] sm:$0xff] %v1196
          %2196 = vst [vmem:[#allocation2 + $0x560] sm:$0xff] %v1237
          %2197 = vst [vmem:[#allocation2 + $0x568] sm:$0xff] %v1278
          %2198 = vst [vmem:[#allocation2 + $0x570] sm:$0xff] %v1319
          %2199 = vst [vmem:[#allocation2 + $0x578] sm:$0xff] %v1360
          %2200 = vst [vmem:[#allocation2 + $0x580] sm:$0xff] %v1401
          %2201 = vst [vmem:[#allocation2 + $0x588] sm:$0xff] %v1442
          %2202 = vst [vmem:[#allocation2 + $0x590] sm:$0xff] %v1483
          %2203 = vst [vmem:[#allocation2 + $0x598] sm:$0xff] %v1524
          %2204 = vst [vmem:[#allocation2 + $0x5a0] sm:$0xff] %v1565
          %2205 = vst [vmem:[#allocation2 + $0x5a8] sm:$0xff] %v1606
          %2206 = vst [vmem:[#allocation2 + $0x5b0] sm:$0xff] %v1647
          %2207 = vst [vmem:[#allocation2 + $0x5b8] sm:$0xff] %v1688
          %2208 = vst [vmem:[#allocation2 + $0x5c0] sm:$0xff] %v1729
          %2209 = vst [vmem:[#allocation2 + $0x5c8] sm:$0xff] %v1770
          %2210 = vst [vmem:[#allocation2 + $0x5d0] sm:$0xff] %v1811
          %2211 = vst [vmem:[#allocation2 + $0x5d8] sm:$0xff] %v1852
          %2212 = vst [vmem:[#allocation2 + $0x5e0] sm:$0xff] %v1893
          %2213 = vst [vmem:[#allocation2 + $0x5e8] sm:$0xff] %v1934
          %2214 = vst [vmem:[#allocation2 + $0x5f0] sm:$0xff] %v1975
          %2215 = vst [vmem:[#allocation2 + $0x5f8] sm:$0xff] %v2016
          %2216 = vst [vmem:[#allocation2 + $0x600] sm:$0xff] %v748
          %2217 = vst [vmem:[#allocation2 + $0x608] sm:$0xff] %v789
          %2218 = vst [vmem:[#allocation2 + $0x610] sm:$0xff] %v830
          %2219 = vst [vmem:[#allocation2 + $0x618] sm:$0xff] %v871
          %2220 = vst [vmem:[#allocation2 + $0x620] sm:$0xff] %v912
          %2221 = vst [vmem:[#allocation2 + $0x628] sm:$0xff] %v953
          %2222 = vst [vmem:[#allocation2 + $0x630] sm:$0xff] %v994
          %2223 = vst [vmem:[#allocation2 + $0x638] sm:$0xff] %v1035
          %2224 = vst [vmem:[#allocation2 + $0x640] sm:$0xff] %v1076
          %2225 = vst [vmem:[#allocation2 + $0x648] sm:$0xff] %v1117
          %2226 = vst [vmem:[#allocation2 + $0x650] sm:$0xff] %v1158
          %2227 = vst [vmem:[#allocation2 + $0x658] sm:$0xff] %v1199
          %2228 = vst [vmem:[#allocation2 + $0x660] sm:$0xff] %v1240
          %2229 = vst [vmem:[#allocation2 + $0x668] sm:$0xff] %v1281
          %2230 = vst [vmem:[#allocation2 + $0x670] sm:$0xff] %v1322
          %2231 = vst [vmem:[#allocation2 + $0x678] sm:$0xff] %v1363
          %2232 = vst [vmem:[#allocation2 + $0x680] sm:$0xff] %v1404
          %2233 = vst [vmem:[#allocation2 + $0x688] sm:$0xff] %v1445
          %2234 = vst [vmem:[#allocation2 + $0x690] sm:$0xff] %v1486
          %2235 = vst [vmem:[#allocation2 + $0x698] sm:$0xff] %v1527
          %2236 = vst [vmem:[#allocation2 + $0x6a0] sm:$0xff] %v1568
          %2237 = vst [vmem:[#allocation2 + $0x6a8] sm:$0xff] %v1609
          %2238 = vst [vmem:[#allocation2 + $0x6b0] sm:$0xff] %v1650
          %2239 = vst [vmem:[#allocation2 + $0x6b8] sm:$0xff] %v1691
          %2240 = vst [vmem:[#allocation2 + $0x6c0] sm:$0xff] %v1732
          %2241 = vst [vmem:[#allocation2 + $0x6c8] sm:$0xff] %v1773
          %2242 = vst [vmem:[#allocation2 + $0x6d0] sm:$0xff] %v1814
          %2243 = vst [vmem:[#allocation2 + $0x6d8] sm:$0xff] %v1855
          %2244 = vst [vmem:[#allocation2 + $0x6e0] sm:$0xff] %v1896
          %2245 = vst [vmem:[#allocation2 + $0x6e8] sm:$0xff] %v1937
          %2246 = vst [vmem:[#allocation2 + $0x6f0] sm:$0xff] %v1978
          %2247 = vst [vmem:[#allocation2 + $0x6f8] sm:$0xff] %v2019
          %2248 = vst [vmem:[#allocation2 + $0x700] sm:$0xff] %v751
          %2249 = vst [vmem:[#allocation2 + $0x708] sm:$0xff] %v792
          %2250 = vst [vmem:[#allocation2 + $0x710] sm:$0xff] %v833
          %2251 = vst [vmem:[#allocation2 + $0x718] sm:$0xff] %v874
          %2252 = vst [vmem:[#allocation2 + $0x720] sm:$0xff] %v915
          %2253 = vst [vmem:[#allocation2 + $0x728] sm:$0xff] %v956
          %2254 = vst [vmem:[#allocation2 + $0x730] sm:$0xff] %v997
          %2255 = vst [vmem:[#allocation2 + $0x738] sm:$0xff] %v1038
          %2256 = vst [vmem:[#allocation2 + $0x740] sm:$0xff] %v1079
          %2257 = vst [vmem:[#allocation2 + $0x748] sm:$0xff] %v1120
          %2258 = vst [vmem:[#allocation2 + $0x750] sm:$0xff] %v1161
          %2259 = vst [vmem:[#allocation2 + $0x758] sm:$0xff] %v1202
          %2260 = vst [vmem:[#allocation2 + $0x760] sm:$0xff] %v1243
          %2261 = vst [vmem:[#allocation2 + $0x768] sm:$0xff] %v1284
          %2262 = vst [vmem:[#allocation2 + $0x770] sm:$0xff] %v1325
          %2263 = vst [vmem:[#allocation2 + $0x778] sm:$0xff] %v1366
          %2264 = vst [vmem:[#allocation2 + $0x780] sm:$0xff] %v1407
          %2265 = vst [vmem:[#allocation2 + $0x788] sm:$0xff] %v1448
          %2266 = vst [vmem:[#allocation2 + $0x790] sm:$0xff] %v1489
          %2267 = vst [vmem:[#allocation2 + $0x798] sm:$0xff] %v1530
          %2268 = vst [vmem:[#allocation2 + $0x7a0] sm:$0xff] %v1571
          %2269 = vst [vmem:[#allocation2 + $0x7a8] sm:$0xff] %v1612
          %2270 = vst [vmem:[#allocation2 + $0x7b0] sm:$0xff] %v1653
          %2271 = vst [vmem:[#allocation2 + $0x7b8] sm:$0xff] %v1694
          %2272 = vst [vmem:[#allocation2 + $0x7c0] sm:$0xff] %v1735
          %2273 = vst [vmem:[#allocation2 + $0x7c8] sm:$0xff] %v1776
          %2274 = vst [vmem:[#allocation2 + $0x7d0] sm:$0xff] %v1817
          %2275 = vst [vmem:[#allocation2 + $0x7d8] sm:$0xff] %v1858
          %2276 = vst [vmem:[#allocation2 + $0x7e0] sm:$0xff] %v1899
          %2277 = vst [vmem:[#allocation2 + $0x7e8] sm:$0xff] %v1940
          %2278 = vst [vmem:[#allocation2 + $0x7f0] sm:$0xff] %v1981
          %2279 = vst [vmem:[#allocation2 + $0x7f8] sm:$0xff] %v2022
        $region36: #{mratt_forward.1} parent=31 // pred_fallthru
          _
        %s2280 = smul.u32 %s22, 8
        %s2281 = sshra.s32 %s2280, 3
        %s2282 = sand.u32 %s2280, 7
        %s2283 = smul.u32 %s2281, 32
        %s2284 = smul.addr %s2283, 8
        %s2285 = scalar_lea.vmem [#allocation2], %s2284
        %v2286 = vld [vmem:[%s2285] sm:$0xff]
        %v2287 = vld [vmem:[%s2285 + $0x8] sm:$0xff]
        %v2288 = vld [vmem:[%s2285 + $0x10] sm:$0xff]
        %v2289 = vld [vmem:[%s2285 + $0x18] sm:$0xff]
        %v2290 = vld [vmem:[%s2285 + $0x20] sm:$0xff]
        %v2291 = vld [vmem:[%s2285 + $0x28] sm:$0xff]
        %v2292 = vld [vmem:[%s2285 + $0x30] sm:$0xff]
        %v2293 = vld [vmem:[%s2285 + $0x38] sm:$0xff]
        %v2294 = vld [vmem:[%s2285 + $0x40] sm:$0xff]
        %v2295 = vld [vmem:[%s2285 + $0x48] sm:$0xff]
        %v2296 = vld [vmem:[%s2285 + $0x50] sm:$0xff]
        %v2297 = vld [vmem:[%s2285 + $0x58] sm:$0xff]
        %v2298 = vld [vmem:[%s2285 + $0x60] sm:$0xff]
        %v2299 = vld [vmem:[%s2285 + $0x68] sm:$0xff]
        %v2300 = vld [vmem:[%s2285 + $0x70] sm:$0xff]
        %v2301 = vld [vmem:[%s2285 + $0x78] sm:$0xff]
        %v2302 = vld [vmem:[%s2285 + $0x80] sm:$0xff]
        %v2303 = vld [vmem:[%s2285 + $0x88] sm:$0xff]
        %v2304 = vld [vmem:[%s2285 + $0x90] sm:$0xff]
        %v2305 = vld [vmem:[%s2285 + $0x98] sm:$0xff]
        %v2306 = vld [vmem:[%s2285 + $0xa0] sm:$0xff]
        %v2307 = vld [vmem:[%s2285 + $0xa8] sm:$0xff]
        %v2308 = vld [vmem:[%s2285 + $0xb0] sm:$0xff]
        %v2309 = vld [vmem:[%s2285 + $0xb8] sm:$0xff]
        %v2310 = vld [vmem:[%s2285 + $0xc0] sm:$0xff]
        %v2311 = vld [vmem:[%s2285 + $0xc8] sm:$0xff]
        %v2312 = vld [vmem:[%s2285 + $0xd0] sm:$0xff]
        %v2313 = vld [vmem:[%s2285 + $0xd8] sm:$0xff]
        %v2314 = vld [vmem:[%s2285 + $0xe0] sm:$0xff]
        %v2315 = vld [vmem:[%s2285 + $0xe8] sm:$0xff]
        %v2316 = vld [vmem:[%s2285 + $0xf0] sm:$0xff]
        %v2317 = vld [vmem:[%s2285 + $0xf8] sm:$0xff]
        %v2318 = vperm.slane %v2286, 0
        %v2319 = vperm.slane %v2287, 0
        %v2320 = vperm.slane %v2288, 0
        %v2321 = vperm.slane %v2289, 0
        %v2322 = vperm.slane %v2290, 0
        %v2323 = vperm.slane %v2291, 0
        %v2324 = vperm.slane %v2292, 0
        %v2325 = vperm.slane %v2293, 0
        %v2326 = vperm.slane %v2294, 0
        %v2327 = vperm.slane %v2295, 0
        %v2328 = vperm.slane %v2296, 0
        %v2329 = vperm.slane %v2297, 0
        %v2330 = vperm.slane %v2298, 0
        %v2331 = vperm.slane %v2299, 0
        %v2332 = vperm.slane %v2300, 0
        %v2333 = vperm.slane %v2301, 0
        %v2334 = vperm.slane %v2302, 0
        %v2335 = vperm.slane %v2303, 0
        %v2336 = vperm.slane %v2304, 0
        %v2337 = vperm.slane %v2305, 0
        %v2338 = vperm.slane %v2306, 0
        %v2339 = vperm.slane %v2307, 0
        %v2340 = vperm.slane %v2308, 0
        %v2341 = vperm.slane %v2309, 0
        %v2342 = vperm.slane %v2310, 0
        %v2343 = vperm.slane %v2311, 0
        %v2344 = vperm.slane %v2312, 0
        %v2345 = vperm.slane %v2313, 0
        %v2346 = vperm.slane %v2314, 0
        %v2347 = vperm.slane %v2315, 0
        %v2348 = vperm.slane %v2316, 0
        %v2349 = vperm.slane %v2317, 0
        %2350 = vst [vmem:[%s177] sm:$0xff] %v2318
        %2351 = vst [vmem:[%s177 + $0x8] sm:$0xff] %v2319
        %2352 = vst [vmem:[%s177 + $0x10] sm:$0xff] %v2320
        %2353 = vst [vmem:[%s177 + $0x18] sm:$0xff] %v2321
        %2354 = vst [vmem:[%s177 + $0x20] sm:$0xff] %v2322
        %2355 = vst [vmem:[%s177 + $0x28] sm:$0xff] %v2323
        %2356 = vst [vmem:[%s177 + $0x30] sm:$0xff] %v2324
        %2357 = vst [vmem:[%s177 + $0x38] sm:$0xff] %v2325
        %2358 = vst [vmem:[%s177 + $0x40] sm:$0xff] %v2326
        %2359 = vst [vmem:[%s177 + $0x48] sm:$0xff] %v2327
        %2360 = vst [vmem:[%s177 + $0x50] sm:$0xff] %v2328
        %2361 = vst [vmem:[%s177 + $0x58] sm:$0xff] %v2329
        %2362 = vst [vmem:[%s177 + $0x60] sm:$0xff] %v2330
        %2363 = vst [vmem:[%s177 + $0x68] sm:$0xff] %v2331
        %2364 = vst [vmem:[%s177 + $0x70] sm:$0xff] %v2332
        %2365 = vst [vmem:[%s177 + $0x78] sm:$0xff] %v2333
        %2366 = vst [vmem:[%s177 + $0x80] sm:$0xff] %v2334
        %2367 = vst [vmem:[%s177 + $0x88] sm:$0xff] %v2335
        %2368 = vst [vmem:[%s177 + $0x90] sm:$0xff] %v2336
        %2369 = vst [vmem:[%s177 + $0x98] sm:$0xff] %v2337
        %2370 = vst [vmem:[%s177 + $0xa0] sm:$0xff] %v2338
        %2371 = vst [vmem:[%s177 + $0xa8] sm:$0xff] %v2339
        %2372 = vst [vmem:[%s177 + $0xb0] sm:$0xff] %v2340
        %2373 = vst [vmem:[%s177 + $0xb8] sm:$0xff] %v2341
        %2374 = vst [vmem:[%s177 + $0xc0] sm:$0xff] %v2342
        %2375 = vst [vmem:[%s177 + $0xc8] sm:$0xff] %v2343
        %2376 = vst [vmem:[%s177 + $0xd0] sm:$0xff] %v2344
        %2377 = vst [vmem:[%s177 + $0xd8] sm:$0xff] %v2345
        %2378 = vst [vmem:[%s177 + $0xe0] sm:$0xff] %v2346
        %2379 = vst [vmem:[%s177 + $0xe8] sm:$0xff] %v2347
        %2380 = vst [vmem:[%s177 + $0xf0] sm:$0xff] %v2348
        %2381 = vst [vmem:[%s177 + $0xf8] sm:$0xff] %v2349
        %2382 = vst [vmem:[%s177 + $0x100] sm:$0xff] %v2318
        %2383 = vst [vmem:[%s177 + $0x108] sm:$0xff] %v2319
        %2384 = vst [vmem:[%s177 + $0x110] sm:$0xff] %v2320
        %2385 = vst [vmem:[%s177 + $0x118] sm:$0xff] %v2321
        %2386 = vst [vmem:[%s177 + $0x120] sm:$0xff] %v2322
        %2387 = vst [vmem:[%s177 + $0x128] sm:$0xff] %v2323
        %2388 = vst [vmem:[%s177 + $0x130] sm:$0xff] %v2324
        %2389 = vst [vmem:[%s177 + $0x138] sm:$0xff] %v2325
        %2390 = vst [vmem:[%s177 + $0x140] sm:$0xff] %v2326
        %2391 = vst [vmem:[%s177 + $0x148] sm:$0xff] %v2327
        %2392 = vst [vmem:[%s177 + $0x150] sm:$0xff] %v2328
        %2393 = vst [vmem:[%s177 + $0x158] sm:$0xff] %v2329
        %2394 = vst [vmem:[%s177 + $0x160] sm:$0xff] %v2330
        %2395 = vst [vmem:[%s177 + $0x168] sm:$0xff] %v2331
        %2396 = vst [vmem:[%s177 + $0x170] sm:$0xff] %v2332
        %2397 = vst [vmem:[%s177 + $0x178] sm:$0xff] %v2333
        %2398 = vst [vmem:[%s177 + $0x180] sm:$0xff] %v2334
        %2399 = vst [vmem:[%s177 + $0x188] sm:$0xff] %v2335
        %2400 = vst [vmem:[%s177 + $0x190] sm:$0xff] %v2336
        %2401 = vst [vmem:[%s177 + $0x198] sm:$0xff] %v2337
        %2402 = vst [vmem:[%s177 + $0x1a0] sm:$0xff] %v2338
        %2403 = vst [vmem:[%s177 + $0x1a8] sm:$0xff] %v2339
        %2404 = vst [vmem:[%s177 + $0x1b0] sm:$0xff] %v2340
        %2405 = vst [vmem:[%s177 + $0x1b8] sm:$0xff] %v2341
        %2406 = vst [vmem:[%s177 + $0x1c0] sm:$0xff] %v2342
        %2407 = vst [vmem:[%s177 + $0x1c8] sm:$0xff] %v2343
        %2408 = vst [vmem:[%s177 + $0x1d0] sm:$0xff] %v2344
        %2409 = vst [vmem:[%s177 + $0x1d8] sm:$0xff] %v2345
        %2410 = vst [vmem:[%s177 + $0x1e0] sm:$0xff] %v2346
        %2411 = vst [vmem:[%s177 + $0x1e8] sm:$0xff] %v2347
        %2412 = vst [vmem:[%s177 + $0x1f0] sm:$0xff] %v2348
        %2413 = vst [vmem:[%s177 + $0x1f8] sm:$0xff] %v2349
        %2414 = vst [vmem:[%s177 + $0x200] sm:$0xff] %v2318
        %2415 = vst [vmem:[%s177 + $0x208] sm:$0xff] %v2319
        %2416 = vst [vmem:[%s177 + $0x210] sm:$0xff] %v2320
        %2417 = vst [vmem:[%s177 + $0x218] sm:$0xff] %v2321
        %2418 = vst [vmem:[%s177 + $0x220] sm:$0xff] %v2322
        %2419 = vst [vmem:[%s177 + $0x228] sm:$0xff] %v2323
        %2420 = vst [vmem:[%s177 + $0x230] sm:$0xff] %v2324
        %2421 = vst [vmem:[%s177 + $0x238] sm:$0xff] %v2325
        %2422 = vst [vmem:[%s177 + $0x240] sm:$0xff] %v2326
        %2423 = vst [vmem:[%s177 + $0x248] sm:$0xff] %v2327
        %2424 = vst [vmem:[%s177 + $0x250] sm:$0xff] %v2328
        %2425 = vst [vmem:[%s177 + $0x258] sm:$0xff] %v2329
        %2426 = vst [vmem:[%s177 + $0x260] sm:$0xff] %v2330
        %2427 = vst [vmem:[%s177 + $0x268] sm:$0xff] %v2331
        %2428 = vst [vmem:[%s177 + $0x270] sm:$0xff] %v2332
        %2429 = vst [vmem:[%s177 + $0x278] sm:$0xff] %v2333
        %2430 = vst [vmem:[%s177 + $0x280] sm:$0xff] %v2334
        %2431 = vst [vmem:[%s177 + $0x288] sm:$0xff] %v2335
        %2432 = vst [vmem:[%s177 + $0x290] sm:$0xff] %v2336
        %2433 = vst [vmem:[%s177 + $0x298] sm:$0xff] %v2337
        %2434 = vst [vmem:[%s177 + $0x2a0] sm:$0xff] %v2338
        %2435 = vst [vmem:[%s177 + $0x2a8] sm:$0xff] %v2339
        %2436 = vst [vmem:[%s177 + $0x2b0] sm:$0xff] %v2340
        %2437 = vst [vmem:[%s177 + $0x2b8] sm:$0xff] %v2341
        %2438 = vst [vmem:[%s177 + $0x2c0] sm:$0xff] %v2342
        %2439 = vst [vmem:[%s177 + $0x2c8] sm:$0xff] %v2343
        %2440 = vst [vmem:[%s177 + $0x2d0] sm:$0xff] %v2344
        %2441 = vst [vmem:[%s177 + $0x2d8] sm:$0xff] %v2345
        %2442 = vst [vmem:[%s177 + $0x2e0] sm:$0xff] %v2346
        %2443 = vst [vmem:[%s177 + $0x2e8] sm:$0xff] %v2347
        %2444 = vst [vmem:[%s177 + $0x2f0] sm:$0xff] %v2348
        %2445 = vst [vmem:[%s177 + $0x2f8] sm:$0xff] %v2349
        %2446 = vst [vmem:[%s177 + $0x300] sm:$0xff] %v2318
        %2447 = vst [vmem:[%s177 + $0x308] sm:$0xff] %v2319
        %2448 = vst [vmem:[%s177 + $0x310] sm:$0xff] %v2320
        %2449 = vst [vmem:[%s177 + $0x318] sm:$0xff] %v2321
        %2450 = vst [vmem:[%s177 + $0x320] sm:$0xff] %v2322
        %2451 = vst [vmem:[%s177 + $0x328] sm:$0xff] %v2323
        %2452 = vst [vmem:[%s177 + $0x330] sm:$0xff] %v2324
        %2453 = vst [vmem:[%s177 + $0x338] sm:$0xff] %v2325
        %2454 = vst [vmem:[%s177 + $0x340] sm:$0xff] %v2326
        %2455 = vst [vmem:[%s177 + $0x348] sm:$0xff] %v2327
        %2456 = vst [vmem:[%s177 + $0x350] sm:$0xff] %v2328
        %2457 = vst [vmem:[%s177 + $0x358] sm:$0xff] %v2329
        %2458 = vst [vmem:[%s177 + $0x360] sm:$0xff] %v2330
        %2459 = vst [vmem:[%s177 + $0x368] sm:$0xff] %v2331
        %2460 = vst [vmem:[%s177 + $0x370] sm:$0xff] %v2332
        %2461 = vst [vmem:[%s177 + $0x378] sm:$0xff] %v2333
        %2462 = vst [vmem:[%s177 + $0x380] sm:$0xff] %v2334
        %2463 = vst [vmem:[%s177 + $0x388] sm:$0xff] %v2335
        %2464 = vst [vmem:[%s177 + $0x390] sm:$0xff] %v2336
        %2465 = vst [vmem:[%s177 + $0x398] sm:$0xff] %v2337
        %2466 = vst [vmem:[%s177 + $0x3a0] sm:$0xff] %v2338
        %2467 = vst [vmem:[%s177 + $0x3a8] sm:$0xff] %v2339
        %2468 = vst [vmem:[%s177 + $0x3b0] sm:$0xff] %v2340
        %2469 = vst [vmem:[%s177 + $0x3b8] sm:$0xff] %v2341
        %2470 = vst [vmem:[%s177 + $0x3c0] sm:$0xff] %v2342
        %2471 = vst [vmem:[%s177 + $0x3c8] sm:$0xff] %v2343
        %2472 = vst [vmem:[%s177 + $0x3d0] sm:$0xff] %v2344
        %2473 = vst [vmem:[%s177 + $0x3d8] sm:$0xff] %v2345
        %2474 = vst [vmem:[%s177 + $0x3e0] sm:$0xff] %v2346
        %2475 = vst [vmem:[%s177 + $0x3e8] sm:$0xff] %v2347
        %2476 = vst [vmem:[%s177 + $0x3f0] sm:$0xff] %v2348
        %2477 = vst [vmem:[%s177 + $0x3f8] sm:$0xff] %v2349
        %2478 = vst [vmem:[%s177 + $0x400] sm:$0xff] %v2318
        %2479 = vst [vmem:[%s177 + $0x408] sm:$0xff] %v2319
        %2480 = vst [vmem:[%s177 + $0x410] sm:$0xff] %v2320
        %2481 = vst [vmem:[%s177 + $0x418] sm:$0xff] %v2321
        %2482 = vst [vmem:[%s177 + $0x420] sm:$0xff] %v2322
        %2483 = vst [vmem:[%s177 + $0x428] sm:$0xff] %v2323
        %2484 = vst [vmem:[%s177 + $0x430] sm:$0xff] %v2324
        %2485 = vst [vmem:[%s177 + $0x438] sm:$0xff] %v2325
        %2486 = vst [vmem:[%s177 + $0x440] sm:$0xff] %v2326
        %2487 = vst [vmem:[%s177 + $0x448] sm:$0xff] %v2327
        %2488 = vst [vmem:[%s177 + $0x450] sm:$0xff] %v2328
        %2489 = vst [vmem:[%s177 + $0x458] sm:$0xff] %v2329
        %2490 = vst [vmem:[%s177 + $0x460] sm:$0xff] %v2330
        %2491 = vst [vmem:[%s177 + $0x468] sm:$0xff] %v2331
        %2492 = vst [vmem:[%s177 + $0x470] sm:$0xff] %v2332
        %2493 = vst [vmem:[%s177 + $0x478] sm:$0xff] %v2333
        %2494 = vst [vmem:[%s177 + $0x480] sm:$0xff] %v2334
        %2495 = vst [vmem:[%s177 + $0x488] sm:$0xff] %v2335
        %2496 = vst [vmem:[%s177 + $0x490] sm:$0xff] %v2336
        %2497 = vst [vmem:[%s177 + $0x498] sm:$0xff] %v2337
        %2498 = vst [vmem:[%s177 + $0x4a0] sm:$0xff] %v2338
        %2499 = vst [vmem:[%s177 + $0x4a8] sm:$0xff] %v2339
        %2500 = vst [vmem:[%s177 + $0x4b0] sm:$0xff] %v2340
        %2501 = vst [vmem:[%s177 + $0x4b8] sm:$0xff] %v2341
        %2502 = vst [vmem:[%s177 + $0x4c0] sm:$0xff] %v2342
        %2503 = vst [vmem:[%s177 + $0x4c8] sm:$0xff] %v2343
        %2504 = vst [vmem:[%s177 + $0x4d0] sm:$0xff] %v2344
        %2505 = vst [vmem:[%s177 + $0x4d8] sm:$0xff] %v2345
        %2506 = vst [vmem:[%s177 + $0x4e0] sm:$0xff] %v2346
        %2507 = vst [vmem:[%s177 + $0x4e8] sm:$0xff] %v2347
        %2508 = vst [vmem:[%s177 + $0x4f0] sm:$0xff] %v2348
        %2509 = vst [vmem:[%s177 + $0x4f8] sm:$0xff] %v2349
        %2510 = vst [vmem:[%s177 + $0x500] sm:$0xff] %v2318
        %2511 = vst [vmem:[%s177 + $0x508] sm:$0xff] %v2319
        %2512 = vst [vmem:[%s177 + $0x510] sm:$0xff] %v2320
        %2513 = vst [vmem:[%s177 + $0x518] sm:$0xff] %v2321
        %2514 = vst [vmem:[%s177 + $0x520] sm:$0xff] %v2322
        %2515 = vst [vmem:[%s177 + $0x528] sm:$0xff] %v2323
        %2516 = vst [vmem:[%s177 + $0x530] sm:$0xff] %v2324
        %2517 = vst [vmem:[%s177 + $0x538] sm:$0xff] %v2325
        %2518 = vst [vmem:[%s177 + $0x540] sm:$0xff] %v2326
        %2519 = vst [vmem:[%s177 + $0x548] sm:$0xff] %v2327
        %2520 = vst [vmem:[%s177 + $0x550] sm:$0xff] %v2328
        %2521 = vst [vmem:[%s177 + $0x558] sm:$0xff] %v2329
        %2522 = vst [vmem:[%s177 + $0x560] sm:$0xff] %v2330
        %2523 = vst [vmem:[%s177 + $0x568] sm:$0xff] %v2331
        %2524 = vst [vmem:[%s177 + $0x570] sm:$0xff] %v2332
        %2525 = vst [vmem:[%s177 + $0x578] sm:$0xff] %v2333
        %2526 = vst [vmem:[%s177 + $0x580] sm:$0xff] %v2334
        %2527 = vst [vmem:[%s177 + $0x588] sm:$0xff] %v2335
        %2528 = vst [vmem:[%s177 + $0x590] sm:$0xff] %v2336
        %2529 = vst [vmem:[%s177 + $0x598] sm:$0xff] %v2337
        %2530 = vst [vmem:[%s177 + $0x5a0] sm:$0xff] %v2338
        %2531 = vst [vmem:[%s177 + $0x5a8] sm:$0xff] %v2339
        %2532 = vst [vmem:[%s177 + $0x5b0] sm:$0xff] %v2340
        %2533 = vst [vmem:[%s177 + $0x5b8] sm:$0xff] %v2341
        %2534 = vst [vmem:[%s177 + $0x5c0] sm:$0xff] %v2342
        %2535 = vst [vmem:[%s177 + $0x5c8] sm:$0xff] %v2343
        %2536 = vst [vmem:[%s177 + $0x5d0] sm:$0xff] %v2344
        %2537 = vst [vmem:[%s177 + $0x5d8] sm:$0xff] %v2345
        %2538 = vst [vmem:[%s177 + $0x5e0] sm:$0xff] %v2346
        %2539 = vst [vmem:[%s177 + $0x5e8] sm:$0xff] %v2347
        %2540 = vst [vmem:[%s177 + $0x5f0] sm:$0xff] %v2348
        %2541 = vst [vmem:[%s177 + $0x5f8] sm:$0xff] %v2349
        %2542 = vst [vmem:[%s177 + $0x600] sm:$0xff] %v2318
        %2543 = vst [vmem:[%s177 + $0x608] sm:$0xff] %v2319
        %2544 = vst [vmem:[%s177 + $0x610] sm:$0xff] %v2320
        %2545 = vst [vmem:[%s177 + $0x618] sm:$0xff] %v2321
        %2546 = vst [vmem:[%s177 + $0x620] sm:$0xff] %v2322
        %2547 = vst [vmem:[%s177 + $0x628] sm:$0xff] %v2323
        %2548 = vst [vmem:[%s177 + $0x630] sm:$0xff] %v2324
        %2549 = vst [vmem:[%s177 + $0x638] sm:$0xff] %v2325
        %2550 = vst [vmem:[%s177 + $0x640] sm:$0xff] %v2326
        %2551 = vst [vmem:[%s177 + $0x648] sm:$0xff] %v2327
        %2552 = vst [vmem:[%s177 + $0x650] sm:$0xff] %v2328
        %2553 = vst [vmem:[%s177 + $0x658] sm:$0xff] %v2329
        %2554 = vst [vmem:[%s177 + $0x660] sm:$0xff] %v2330
        %2555 = vst [vmem:[%s177 + $0x668] sm:$0xff] %v2331
        %2556 = vst [vmem:[%s177 + $0x670] sm:$0xff] %v2332
        %2557 = vst [vmem:[%s177 + $0x678] sm:$0xff] %v2333
        %2558 = vst [vmem:[%s177 + $0x680] sm:$0xff] %v2334
        %2559 = vst [vmem:[%s177 + $0x688] sm:$0xff] %v2335
        %2560 = vst [vmem:[%s177 + $0x690] sm:$0xff] %v2336
        %2561 = vst [vmem:[%s177 + $0x698] sm:$0xff] %v2337
        %2562 = vst [vmem:[%s177 + $0x6a0] sm:$0xff] %v2338
        %2563 = vst [vmem:[%s177 + $0x6a8] sm:$0xff] %v2339
        %2564 = vst [vmem:[%s177 + $0x6b0] sm:$0xff] %v2340
        %2565 = vst [vmem:[%s177 + $0x6b8] sm:$0xff] %v2341
        %2566 = vst [vmem:[%s177 + $0x6c0] sm:$0xff] %v2342
        %2567 = vst [vmem:[%s177 + $0x6c8] sm:$0xff] %v2343
        %2568 = vst [vmem:[%s177 + $0x6d0] sm:$0xff] %v2344
        %2569 = vst [vmem:[%s177 + $0x6d8] sm:$0xff] %v2345
        %2570 = vst [vmem:[%s177 + $0x6e0] sm:$0xff] %v2346
        %2571 = vst [vmem:[%s177 + $0x6e8] sm:$0xff] %v2347
        %2572 = vst [vmem:[%s177 + $0x6f0] sm:$0xff] %v2348
        %2573 = vst [vmem:[%s177 + $0x6f8] sm:$0xff] %v2349
        %2574 = vst [vmem:[%s177 + $0x700] sm:$0xff] %v2318
        %2575 = vst [vmem:[%s177 + $0x708] sm:$0xff] %v2319
        %2576 = vst [vmem:[%s177 + $0x710] sm:$0xff] %v2320
        %2577 = vst [vmem:[%s177 + $0x718] sm:$0xff] %v2321
        %2578 = vst [vmem:[%s177 + $0x720] sm:$0xff] %v2322
        %2579 = vst [vmem:[%s177 + $0x728] sm:$0xff] %v2323
        %2580 = vst [vmem:[%s177 + $0x730] sm:$0xff] %v2324
        %2581 = vst [vmem:[%s177 + $0x738] sm:$0xff] %v2325
        %2582 = vst [vmem:[%s177 + $0x740] sm:$0xff] %v2326
        %2583 = vst [vmem:[%s177 + $0x748] sm:$0xff] %v2327
        %2584 = vst [vmem:[%s177 + $0x750] sm:$0xff] %v2328
        %2585 = vst [vmem:[%s177 + $0x758] sm:$0xff] %v2329
        %2586 = vst [vmem:[%s177 + $0x760] sm:$0xff] %v2330
        %2587 = vst [vmem:[%s177 + $0x768] sm:$0xff] %v2331
        %2588 = vst [vmem:[%s177 + $0x770] sm:$0xff] %v2332
        %2589 = vst [vmem:[%s177 + $0x778] sm:$0xff] %v2333
        %2590 = vst [vmem:[%s177 + $0x780] sm:$0xff] %v2334
        %2591 = vst [vmem:[%s177 + $0x788] sm:$0xff] %v2335
        %2592 = vst [vmem:[%s177 + $0x790] sm:$0xff] %v2336
        %2593 = vst [vmem:[%s177 + $0x798] sm:$0xff] %v2337
        %2594 = vst [vmem:[%s177 + $0x7a0] sm:$0xff] %v2338
        %2595 = vst [vmem:[%s177 + $0x7a8] sm:$0xff] %v2339
        %2596 = vst [vmem:[%s177 + $0x7b0] sm:$0xff] %v2340
        %2597 = vst [vmem:[%s177 + $0x7b8] sm:$0xff] %v2341
        %2598 = vst [vmem:[%s177 + $0x7c0] sm:$0xff] %v2342
        %2599 = vst [vmem:[%s177 + $0x7c8] sm:$0xff] %v2343
        %2600 = vst [vmem:[%s177 + $0x7d0] sm:$0xff] %v2344
        %2601 = vst [vmem:[%s177 + $0x7d8] sm:$0xff] %v2345
        %2602 = vst [vmem:[%s177 + $0x7e0] sm:$0xff] %v2346
        %2603 = vst [vmem:[%s177 + $0x7e8] sm:$0xff] %v2347
        %2604 = vst [vmem:[%s177 + $0x7f0] sm:$0xff] %v2348
        %2605 = vst [vmem:[%s177 + $0x7f8] sm:$0xff] %v2349
        %v2606 = vperm.slane %v2286, 1
        %v2607 = vperm.slane %v2287, 1
        %v2608 = vperm.slane %v2288, 1
        %v2609 = vperm.slane %v2289, 1
        %v2610 = vperm.slane %v2290, 1
        %v2611 = vperm.slane %v2291, 1
        %v2612 = vperm.slane %v2292, 1
        %v2613 = vperm.slane %v2293, 1
        %v2614 = vperm.slane %v2294, 1
        %v2615 = vperm.slane %v2295, 1
        %v2616 = vperm.slane %v2296, 1
        %v2617 = vperm.slane %v2297, 1
        %v2618 = vperm.slane %v2298, 1
        %v2619 = vperm.slane %v2299, 1
        %v2620 = vperm.slane %v2300, 1
        %v2621 = vperm.slane %v2301, 1
        %v2622 = vperm.slane %v2302, 1
        %v2623 = vperm.slane %v2303, 1
        %v2624 = vperm.slane %v2304, 1
        %v2625 = vperm.slane %v2305, 1
        %v2626 = vperm.slane %v2306, 1
        %v2627 = vperm.slane %v2307, 1
        %v2628 = vperm.slane %v2308, 1
        %v2629 = vperm.slane %v2309, 1
        %v2630 = vperm.slane %v2310, 1
        %v2631 = vperm.slane %v2311, 1
        %v2632 = vperm.slane %v2312, 1
        %v2633 = vperm.slane %v2313, 1
        %v2634 = vperm.slane %v2314, 1
        %v2635 = vperm.slane %v2315, 1
        %v2636 = vperm.slane %v2316, 1
        %v2637 = vperm.slane %v2317, 1
        %2638 = vst [vmem:[%s177 + $0x800] sm:$0xff] %v2606
        %2639 = vst [vmem:[%s177 + $0x808] sm:$0xff] %v2607
        %2640 = vst [vmem:[%s177 + $0x810] sm:$0xff] %v2608
        %2641 = vst [vmem:[%s177 + $0x818] sm:$0xff] %v2609
        %2642 = vst [vmem:[%s177 + $0x820] sm:$0xff] %v2610
        %2643 = vst [vmem:[%s177 + $0x828] sm:$0xff] %v2611
        %2644 = vst [vmem:[%s177 + $0x830] sm:$0xff] %v2612
        %2645 = vst [vmem:[%s177 + $0x838] sm:$0xff] %v2613
        %2646 = vst [vmem:[%s177 + $0x840] sm:$0xff] %v2614
        %2647 = vst [vmem:[%s177 + $0x848] sm:$0xff] %v2615
        %2648 = vst [vmem:[%s177 + $0x850] sm:$0xff] %v2616
        %2649 = vst [vmem:[%s177 + $0x858] sm:$0xff] %v2617
        %2650 = vst [vmem:[%s177 + $0x860] sm:$0xff] %v2618
        %2651 = vst [vmem:[%s177 + $0x868] sm:$0xff] %v2619
        %2652 = vst [vmem:[%s177 + $0x870] sm:$0xff] %v2620
        %2653 = vst [vmem:[%s177 + $0x878] sm:$0xff] %v2621
        %2654 = vst [vmem:[%s177 + $0x880] sm:$0xff] %v2622
        %2655 = vst [vmem:[%s177 + $0x888] sm:$0xff] %v2623
        %2656 = vst [vmem:[%s177 + $0x890] sm:$0xff] %v2624
        %2657 = vst [vmem:[%s177 + $0x898] sm:$0xff] %v2625
        %2658 = vst [vmem:[%s177 + $0x8a0] sm:$0xff] %v2626
        %2659 = vst [vmem:[%s177 + $0x8a8] sm:$0xff] %v2627
        %2660 = vst [vmem:[%s177 + $0x8b0] sm:$0xff] %v2628
        %2661 = vst [vmem:[%s177 + $0x8b8] sm:$0xff] %v2629
        %2662 = vst [vmem:[%s177 + $0x8c0] sm:$0xff] %v2630
        %2663 = vst [vmem:[%s177 + $0x8c8] sm:$0xff] %v2631
        %2664 = vst [vmem:[%s177 + $0x8d0] sm:$0xff] %v2632
        %2665 = vst [vmem:[%s177 + $0x8d8] sm:$0xff] %v2633
        %2666 = vst [vmem:[%s177 + $0x8e0] sm:$0xff] %v2634
        %2667 = vst [vmem:[%s177 + $0x8e8] sm:$0xff] %v2635
        %2668 = vst [vmem:[%s177 + $0x8f0] sm:$0xff] %v2636
        %2669 = vst [vmem:[%s177 + $0x8f8] sm:$0xff] %v2637
        %2670 = vst [vmem:[%s177 + $0x900] sm:$0xff] %v2606
        %2671 = vst [vmem:[%s177 + $0x908] sm:$0xff] %v2607
        %2672 = vst [vmem:[%s177 + $0x910] sm:$0xff] %v2608
        %2673 = vst [vmem:[%s177 + $0x918] sm:$0xff] %v2609
        %2674 = vst [vmem:[%s177 + $0x920] sm:$0xff] %v2610
        %2675 = vst [vmem:[%s177 + $0x928] sm:$0xff] %v2611
        %2676 = vst [vmem:[%s177 + $0x930] sm:$0xff] %v2612
        %2677 = vst [vmem:[%s177 + $0x938] sm:$0xff] %v2613
        %2678 = vst [vmem:[%s177 + $0x940] sm:$0xff] %v2614
        %2679 = vst [vmem:[%s177 + $0x948] sm:$0xff] %v2615
        %2680 = vst [vmem:[%s177 + $0x950] sm:$0xff] %v2616
        %2681 = vst [vmem:[%s177 + $0x958] sm:$0xff] %v2617
        %2682 = vst [vmem:[%s177 + $0x960] sm:$0xff] %v2618
        %2683 = vst [vmem:[%s177 + $0x968] sm:$0xff] %v2619
        %2684 = vst [vmem:[%s177 + $0x970] sm:$0xff] %v2620
        %2685 = vst [vmem:[%s177 + $0x978] sm:$0xff] %v2621
        %2686 = vst [vmem:[%s177 + $0x980] sm:$0xff] %v2622
        %2687 = vst [vmem:[%s177 + $0x988] sm:$0xff] %v2623
        %2688 = vst [vmem:[%s177 + $0x990] sm:$0xff] %v2624
        %2689 = vst [vmem:[%s177 + $0x998] sm:$0xff] %v2625
        %2690 = vst [vmem:[%s177 + $0x9a0] sm:$0xff] %v2626
        %2691 = vst [vmem:[%s177 + $0x9a8] sm:$0xff] %v2627
        %2692 = vst [vmem:[%s177 + $0x9b0] sm:$0xff] %v2628
        %2693 = vst [vmem:[%s177 + $0x9b8] sm:$0xff] %v2629
        %2694 = vst [vmem:[%s177 + $0x9c0] sm:$0xff] %v2630
        %2695 = vst [vmem:[%s177 + $0x9c8] sm:$0xff] %v2631
        %2696 = vst [vmem:[%s177 + $0x9d0] sm:$0xff] %v2632
        %2697 = vst [vmem:[%s177 + $0x9d8] sm:$0xff] %v2633
        %2698 = vst [vmem:[%s177 + $0x9e0] sm:$0xff] %v2634
        %2699 = vst [vmem:[%s177 + $0x9e8] sm:$0xff] %v2635
        %2700 = vst [vmem:[%s177 + $0x9f0] sm:$0xff] %v2636
        %2701 = vst [vmem:[%s177 + $0x9f8] sm:$0xff] %v2637
        %2702 = vst [vmem:[%s177 + $0xa00] sm:$0xff] %v2606
        %2703 = vst [vmem:[%s177 + $0xa08] sm:$0xff] %v2607
        %2704 = vst [vmem:[%s177 + $0xa10] sm:$0xff] %v2608
        %2705 = vst [vmem:[%s177 + $0xa18] sm:$0xff] %v2609
        %2706 = vst [vmem:[%s177 + $0xa20] sm:$0xff] %v2610
        %2707 = vst [vmem:[%s177 + $0xa28] sm:$0xff] %v2611
        %2708 = vst [vmem:[%s177 + $0xa30] sm:$0xff] %v2612
        %2709 = vst [vmem:[%s177 + $0xa38] sm:$0xff] %v2613
        %2710 = vst [vmem:[%s177 + $0xa40] sm:$0xff] %v2614
        %2711 = vst [vmem:[%s177 + $0xa48] sm:$0xff] %v2615
        %2712 = vst [vmem:[%s177 + $0xa50] sm:$0xff] %v2616
        %2713 = vst [vmem:[%s177 + $0xa58] sm:$0xff] %v2617
        %2714 = vst [vmem:[%s177 + $0xa60] sm:$0xff] %v2618
        %2715 = vst [vmem:[%s177 + $0xa68] sm:$0xff] %v2619
        %2716 = vst [vmem:[%s177 + $0xa70] sm:$0xff] %v2620
        %2717 = vst [vmem:[%s177 + $0xa78] sm:$0xff] %v2621
        %2718 = vst [vmem:[%s177 + $0xa80] sm:$0xff] %v2622
        %2719 = vst [vmem:[%s177 + $0xa88] sm:$0xff] %v2623
        %2720 = vst [vmem:[%s177 + $0xa90] sm:$0xff] %v2624
        %2721 = vst [vmem:[%s177 + $0xa98] sm:$0xff] %v2625
        %2722 = vst [vmem:[%s177 + $0xaa0] sm:$0xff] %v2626
        %2723 = vst [vmem:[%s177 + $0xaa8] sm:$0xff] %v2627
        %2724 = vst [vmem:[%s177 + $0xab0] sm:$0xff] %v2628
        %2725 = vst [vmem:[%s177 + $0xab8] sm:$0xff] %v2629
        %2726 = vst [vmem:[%s177 + $0xac0] sm:$0xff] %v2630
        %2727 = vst [vmem:[%s177 + $0xac8] sm:$0xff] %v2631
        %2728 = vst [vmem:[%s177 + $0xad0] sm:$0xff] %v2632
        %2729 = vst [vmem:[%s177 + $0xad8] sm:$0xff] %v2633
        %2730 = vst [vmem:[%s177 + $0xae0] sm:$0xff] %v2634
        %2731 = vst [vmem:[%s177 + $0xae8] sm:$0xff] %v2635
        %2732 = vst [vmem:[%s177 + $0xaf0] sm:$0xff] %v2636
        %2733 = vst [vmem:[%s177 + $0xaf8] sm:$0xff] %v2637
        %2734 = vst [vmem:[%s177 + $0xb00] sm:$0xff] %v2606
        %2735 = vst [vmem:[%s177 + $0xb08] sm:$0xff] %v2607
        %2736 = vst [vmem:[%s177 + $0xb10] sm:$0xff] %v2608
        %2737 = vst [vmem:[%s177 + $0xb18] sm:$0xff] %v2609
        %2738 = vst [vmem:[%s177 + $0xb20] sm:$0xff] %v2610
        %2739 = vst [vmem:[%s177 + $0xb28] sm:$0xff] %v2611
        %2740 = vst [vmem:[%s177 + $0xb30] sm:$0xff] %v2612
        %2741 = vst [vmem:[%s177 + $0xb38] sm:$0xff] %v2613
        %2742 = vst [vmem:[%s177 + $0xb40] sm:$0xff] %v2614
        %2743 = vst [vmem:[%s177 + $0xb48] sm:$0xff] %v2615
        %2744 = vst [vmem:[%s177 + $0xb50] sm:$0xff] %v2616
        %2745 = vst [vmem:[%s177 + $0xb58] sm:$0xff] %v2617
        %2746 = vst [vmem:[%s177 + $0xb60] sm:$0xff] %v2618
        %2747 = vst [vmem:[%s177 + $0xb68] sm:$0xff] %v2619
        %2748 = vst [vmem:[%s177 + $0xb70] sm:$0xff] %v2620
        %2749 = vst [vmem:[%s177 + $0xb78] sm:$0xff] %v2621
        %2750 = vst [vmem:[%s177 + $0xb80] sm:$0xff] %v2622
        %2751 = vst [vmem:[%s177 + $0xb88] sm:$0xff] %v2623
        %2752 = vst [vmem:[%s177 + $0xb90] sm:$0xff] %v2624
        %2753 = vst [vmem:[%s177 + $0xb98] sm:$0xff] %v2625
        %2754 = vst [vmem:[%s177 + $0xba0] sm:$0xff] %v2626
        %2755 = vst [vmem:[%s177 + $0xba8] sm:$0xff] %v2627
        %2756 = vst [vmem:[%s177 + $0xbb0] sm:$0xff] %v2628
        %2757 = vst [vmem:[%s177 + $0xbb8] sm:$0xff] %v2629
        %2758 = vst [vmem:[%s177 + $0xbc0] sm:$0xff] %v2630
        %2759 = vst [vmem:[%s177 + $0xbc8] sm:$0xff] %v2631
        %2760 = vst [vmem:[%s177 + $0xbd0] sm:$0xff] %v2632
        %2761 = vst [vmem:[%s177 + $0xbd8] sm:$0xff] %v2633
        %2762 = vst [vmem:[%s177 + $0xbe0] sm:$0xff] %v2634
        %2763 = vst [vmem:[%s177 + $0xbe8] sm:$0xff] %v2635
        %2764 = vst [vmem:[%s177 + $0xbf0] sm:$0xff] %v2636
        %2765 = vst [vmem:[%s177 + $0xbf8] sm:$0xff] %v2637
        %2766 = vst [vmem:[%s177 + $0xc00] sm:$0xff] %v2606
        %2767 = vst [vmem:[%s177 + $0xc08] sm:$0xff] %v2607
        %2768 = vst [vmem:[%s177 + $0xc10] sm:$0xff] %v2608
        %2769 = vst [vmem:[%s177 + $0xc18] sm:$0xff] %v2609
        %2770 = vst [vmem:[%s177 + $0xc20] sm:$0xff] %v2610
        %2771 = vst [vmem:[%s177 + $0xc28] sm:$0xff] %v2611
        %2772 = vst [vmem:[%s177 + $0xc30] sm:$0xff] %v2612
        %2773 = vst [vmem:[%s177 + $0xc38] sm:$0xff] %v2613
        %2774 = vst [vmem:[%s177 + $0xc40] sm:$0xff] %v2614
        %2775 = vst [vmem:[%s177 + $0xc48] sm:$0xff] %v2615
        %2776 = vst [vmem:[%s177 + $0xc50] sm:$0xff] %v2616
        %2777 = vst [vmem:[%s177 + $0xc58] sm:$0xff] %v2617
        %2778 = vst [vmem:[%s177 + $0xc60] sm:$0xff] %v2618
        %2779 = vst [vmem:[%s177 + $0xc68] sm:$0xff] %v2619
        %2780 = vst [vmem:[%s177 + $0xc70] sm:$0xff] %v2620
        %2781 = vst [vmem:[%s177 + $0xc78] sm:$0xff] %v2621
        %2782 = vst [vmem:[%s177 + $0xc80] sm:$0xff] %v2622
        %2783 = vst [vmem:[%s177 + $0xc88] sm:$0xff] %v2623
        %2784 = vst [vmem:[%s177 + $0xc90] sm:$0xff] %v2624
        %2785 = vst [vmem:[%s177 + $0xc98] sm:$0xff] %v2625
        %2786 = vst [vmem:[%s177 + $0xca0] sm:$0xff] %v2626
        %2787 = vst [vmem:[%s177 + $0xca8] sm:$0xff] %v2627
        %2788 = vst [vmem:[%s177 + $0xcb0] sm:$0xff] %v2628
        %2789 = vst [vmem:[%s177 + $0xcb8] sm:$0xff] %v2629
        %2790 = vst [vmem:[%s177 + $0xcc0] sm:$0xff] %v2630
        %2791 = vst [vmem:[%s177 + $0xcc8] sm:$0xff] %v2631
        %2792 = vst [vmem:[%s177 + $0xcd0] sm:$0xff] %v2632
        %2793 = vst [vmem:[%s177 + $0xcd8] sm:$0xff] %v2633
        %2794 = vst [vmem:[%s177 + $0xce0] sm:$0xff] %v2634
        %2795 = vst [vmem:[%s177 + $0xce8] sm:$0xff] %v2635
        %2796 = vst [vmem:[%s177 + $0xcf0] sm:$0xff] %v2636
        %2797 = vst [vmem:[%s177 + $0xcf8] sm:$0xff] %v2637
        %2798 = vst [vmem:[%s177 + $0xd00] sm:$0xff] %v2606
        %2799 = vst [vmem:[%s177 + $0xd08] sm:$0xff] %v2607
        %2800 = vst [vmem:[%s177 + $0xd10] sm:$0xff] %v2608
        %2801 = vst [vmem:[%s177 + $0xd18] sm:$0xff] %v2609
        %2802 = vst [vmem:[%s177 + $0xd20] sm:$0xff] %v2610
        %2803 = vst [vmem:[%s177 + $0xd28] sm:$0xff] %v2611
        %2804 = vst [vmem:[%s177 + $0xd30] sm:$0xff] %v2612
        %2805 = vst [vmem:[%s177 + $0xd38] sm:$0xff] %v2613
        %2806 = vst [vmem:[%s177 + $0xd40] sm:$0xff] %v2614
        %2807 = vst [vmem:[%s177 + $0xd48] sm:$0xff] %v2615
        %2808 = vst [vmem:[%s177 + $0xd50] sm:$0xff] %v2616
        %2809 = vst [vmem:[%s177 + $0xd58] sm:$0xff] %v2617
        %2810 = vst [vmem:[%s177 + $0xd60] sm:$0xff] %v2618
        %2811 = vst [vmem:[%s177 + $0xd68] sm:$0xff] %v2619
        %2812 = vst [vmem:[%s177 + $0xd70] sm:$0xff] %v2620
        %2813 = vst [vmem:[%s177 + $0xd78] sm:$0xff] %v2621
        %2814 = vst [vmem:[%s177 + $0xd80] sm:$0xff] %v2622
        %2815 = vst [vmem:[%s177 + $0xd88] sm:$0xff] %v2623
        %2816 = vst [vmem:[%s177 + $0xd90] sm:$0xff] %v2624
        %2817 = vst [vmem:[%s177 + $0xd98] sm:$0xff] %v2625
        %2818 = vst [vmem:[%s177 + $0xda0] sm:$0xff] %v2626
        %2819 = vst [vmem:[%s177 + $0xda8] sm:$0xff] %v2627
        %2820 = vst [vmem:[%s177 + $0xdb0] sm:$0xff] %v2628
        %2821 = vst [vmem:[%s177 + $0xdb8] sm:$0xff] %v2629
        %2822 = vst [vmem:[%s177 + $0xdc0] sm:$0xff] %v2630
        %2823 = vst [vmem:[%s177 + $0xdc8] sm:$0xff] %v2631
        %2824 = vst [vmem:[%s177 + $0xdd0] sm:$0xff] %v2632
        %2825 = vst [vmem:[%s177 + $0xdd8] sm:$0xff] %v2633
        %2826 = vst [vmem:[%s177 + $0xde0] sm:$0xff] %v2634
        %2827 = vst [vmem:[%s177 + $0xde8] sm:$0xff] %v2635
        %2828 = vst [vmem:[%s177 + $0xdf0] sm:$0xff] %v2636
        %2829 = vst [vmem:[%s177 + $0xdf8] sm:$0xff] %v2637
        %2830 = vst [vmem:[%s177 + $0xe00] sm:$0xff] %v2606
        %2831 = vst [vmem:[%s177 + $0xe08] sm:$0xff] %v2607
        %2832 = vst [vmem:[%s177 + $0xe10] sm:$0xff] %v2608
        %2833 = vst [vmem:[%s177 + $0xe18] sm:$0xff] %v2609
        %2834 = vst [vmem:[%s177 + $0xe20] sm:$0xff] %v2610
        %2835 = vst [vmem:[%s177 + $0xe28] sm:$0xff] %v2611
        %2836 = vst [vmem:[%s177 + $0xe30] sm:$0xff] %v2612
        %2837 = vst [vmem:[%s177 + $0xe38] sm:$0xff] %v2613
        %2838 = vst [vmem:[%s177 + $0xe40] sm:$0xff] %v2614
        %2839 = vst [vmem:[%s177 + $0xe48] sm:$0xff] %v2615
        %2840 = vst [vmem:[%s177 + $0xe50] sm:$0xff] %v2616
        %2841 = vst [vmem:[%s177 + $0xe58] sm:$0xff] %v2617
        %2842 = vst [vmem:[%s177 + $0xe60] sm:$0xff] %v2618
        %2843 = vst [vmem:[%s177 + $0xe68] sm:$0xff] %v2619
        %2844 = vst [vmem:[%s177 + $0xe70] sm:$0xff] %v2620
        %2845 = vst [vmem:[%s177 + $0xe78] sm:$0xff] %v2621
        %2846 = vst [vmem:[%s177 + $0xe80] sm:$0xff] %v2622
        %2847 = vst [vmem:[%s177 + $0xe88] sm:$0xff] %v2623
        %2848 = vst [vmem:[%s177 + $0xe90] sm:$0xff] %v2624
        %2849 = vst [vmem:[%s177 + $0xe98] sm:$0xff] %v2625
        %2850 = vst [vmem:[%s177 + $0xea0] sm:$0xff] %v2626
        %2851 = vst [vmem:[%s177 + $0xea8] sm:$0xff] %v2627
        %2852 = vst [vmem:[%s177 + $0xeb0] sm:$0xff] %v2628
        %2853 = vst [vmem:[%s177 + $0xeb8] sm:$0xff] %v2629
        %2854 = vst [vmem:[%s177 + $0xec0] sm:$0xff] %v2630
        %2855 = vst [vmem:[%s177 + $0xec8] sm:$0xff] %v2631
        %2856 = vst [vmem:[%s177 + $0xed0] sm:$0xff] %v2632
        %2857 = vst [vmem:[%s177 + $0xed8] sm:$0xff] %v2633
        %2858 = vst [vmem:[%s177 + $0xee0] sm:$0xff] %v2634
        %2859 = vst [vmem:[%s177 + $0xee8] sm:$0xff] %v2635
        %2860 = vst [vmem:[%s177 + $0xef0] sm:$0xff] %v2636
        %2861 = vst [vmem:[%s177 + $0xef8] sm:$0xff] %v2637
        %2862 = vst [vmem:[%s177 + $0xf00] sm:$0xff] %v2606
        %2863 = vst [vmem:[%s177 + $0xf08] sm:$0xff] %v2607
        %2864 = vst [vmem:[%s177 + $0xf10] sm:$0xff] %v2608
        %2865 = vst [vmem:[%s177 + $0xf18] sm:$0xff] %v2609
        %2866 = vst [vmem:[%s177 + $0xf20] sm:$0xff] %v2610
        %2867 = vst [vmem:[%s177 + $0xf28] sm:$0xff] %v2611
        %2868 = vst [vmem:[%s177 + $0xf30] sm:$0xff] %v2612
        %2869 = vst [vmem:[%s177 + $0xf38] sm:$0xff] %v2613
        %2870 = vst [vmem:[%s177 + $0xf40] sm:$0xff] %v2614
        %2871 = vst [vmem:[%s177 + $0xf48] sm:$0xff] %v2615
        %2872 = vst [vmem:[%s177 + $0xf50] sm:$0xff] %v2616
        %2873 = vst [vmem:[%s177 + $0xf58] sm:$0xff] %v2617
        %2874 = vst [vmem:[%s177 + $0xf60] sm:$0xff] %v2618
        %2875 = vst [vmem:[%s177 + $0xf68] sm:$0xff] %v2619
        %2876 = vst [vmem:[%s177 + $0xf70] sm:$0xff] %v2620
        %2877 = vst [vmem:[%s177 + $0xf78] sm:$0xff] %v2621
        %2878 = vst [vmem:[%s177 + $0xf80] sm:$0xff] %v2622
        %2879 = vst [vmem:[%s177 + $0xf88] sm:$0xff] %v2623
        %2880 = vst [vmem:[%s177 + $0xf90] sm:$0xff] %v2624
        %2881 = vst [vmem:[%s177 + $0xf98] sm:$0xff] %v2625
        %2882 = vst [vmem:[%s177 + $0xfa0] sm:$0xff] %v2626
        %2883 = vst [vmem:[%s177 + $0xfa8] sm:$0xff] %v2627
        %2884 = vst [vmem:[%s177 + $0xfb0] sm:$0xff] %v2628
        %2885 = vst [vmem:[%s177 + $0xfb8] sm:$0xff] %v2629
        %2886 = vst [vmem:[%s177 + $0xfc0] sm:$0xff] %v2630
        %2887 = vst [vmem:[%s177 + $0xfc8] sm:$0xff] %v2631
        %2888 = vst [vmem:[%s177 + $0xfd0] sm:$0xff] %v2632
        %2889 = vst [vmem:[%s177 + $0xfd8] sm:$0xff] %v2633
        %2890 = vst [vmem:[%s177 + $0xfe0] sm:$0xff] %v2634
        %2891 = vst [vmem:[%s177 + $0xfe8] sm:$0xff] %v2635
        %2892 = vst [vmem:[%s177 + $0xff0] sm:$0xff] %v2636
        %2893 = vst [vmem:[%s177 + $0xff8] sm:$0xff] %v2637
        %v2894 = vperm.slane %v2286, 2
        %v2895 = vperm.slane %v2287, 2
        %v2896 = vperm.slane %v2288, 2
        %v2897 = vperm.slane %v2289, 2
        %v2898 = vperm.slane %v2290, 2
        %v2899 = vperm.slane %v2291, 2
        %v2900 = vperm.slane %v2292, 2
        %v2901 = vperm.slane %v2293, 2
        %v2902 = vperm.slane %v2294, 2
        %v2903 = vperm.slane %v2295, 2
        %v2904 = vperm.slane %v2296, 2
        %v2905 = vperm.slane %v2297, 2
        %v2906 = vperm.slane %v2298, 2
        %v2907 = vperm.slane %v2299, 2
        %v2908 = vperm.slane %v2300, 2
        %v2909 = vperm.slane %v2301, 2
        %v2910 = vperm.slane %v2302, 2
        %v2911 = vperm.slane %v2303, 2
        %v2912 = vperm.slane %v2304, 2
        %v2913 = vperm.slane %v2305, 2
        %v2914 = vperm.slane %v2306, 2
        %v2915 = vperm.slane %v2307, 2
        %v2916 = vperm.slane %v2308, 2
        %v2917 = vperm.slane %v2309, 2
        %v2918 = vperm.slane %v2310, 2
        %v2919 = vperm.slane %v2311, 2
        %v2920 = vperm.slane %v2312, 2
        %v2921 = vperm.slane %v2313, 2
        %v2922 = vperm.slane %v2314, 2
        %v2923 = vperm.slane %v2315, 2
        %v2924 = vperm.slane %v2316, 2
        %v2925 = vperm.slane %v2317, 2
        %2926 = vst [vmem:[%s177 + $0x1000] sm:$0xff] %v2894
        %2927 = vst [vmem:[%s177 + $0x1008] sm:$0xff] %v2895
        %2928 = vst [vmem:[%s177 + $0x1010] sm:$0xff] %v2896
        %2929 = vst [vmem:[%s177 + $0x1018] sm:$0xff] %v2897
        %2930 = vst [vmem:[%s177 + $0x1020] sm:$0xff] %v2898
        %2931 = vst [vmem:[%s177 + $0x1028] sm:$0xff] %v2899
        %2932 = vst [vmem:[%s177 + $0x1030] sm:$0xff] %v2900
        %2933 = vst [vmem:[%s177 + $0x1038] sm:$0xff] %v2901
        %2934 = vst [vmem:[%s177 + $0x1040] sm:$0xff] %v2902
        %2935 = vst [vmem:[%s177 + $0x1048] sm:$0xff] %v2903
        %2936 = vst [vmem:[%s177 + $0x1050] sm:$0xff] %v2904
        %2937 = vst [vmem:[%s177 + $0x1058] sm:$0xff] %v2905
        %2938 = vst [vmem:[%s177 + $0x1060] sm:$0xff] %v2906
        %2939 = vst [vmem:[%s177 + $0x1068] sm:$0xff] %v2907
        %2940 = vst [vmem:[%s177 + $0x1070] sm:$0xff] %v2908
        %2941 = vst [vmem:[%s177 + $0x1078] sm:$0xff] %v2909
        %2942 = vst [vmem:[%s177 + $0x1080] sm:$0xff] %v2910
        %2943 = vst [vmem:[%s177 + $0x1088] sm:$0xff] %v2911
        %2944 = vst [vmem:[%s177 + $0x1090] sm:$0xff] %v2912
        %2945 = vst [vmem:[%s177 + $0x1098] sm:$0xff] %v2913
        %2946 = vst [vmem:[%s177 + $0x10a0] sm:$0xff] %v2914
        %2947 = vst [vmem:[%s177 + $0x10a8] sm:$0xff] %v2915
        %2948 = vst [vmem:[%s177 + $0x10b0] sm:$0xff] %v2916
        %2949 = vst [vmem:[%s177 + $0x10b8] sm:$0xff] %v2917
        %2950 = vst [vmem:[%s177 + $0x10c0] sm:$0xff] %v2918
        %2951 = vst [vmem:[%s177 + $0x10c8] sm:$0xff] %v2919
        %2952 = vst [vmem:[%s177 + $0x10d0] sm:$0xff] %v2920
        %2953 = vst [vmem:[%s177 + $0x10d8] sm:$0xff] %v2921
        %2954 = vst [vmem:[%s177 + $0x10e0] sm:$0xff] %v2922
        %2955 = vst [vmem:[%s177 + $0x10e8] sm:$0xff] %v2923
        %2956 = vst [vmem:[%s177 + $0x10f0] sm:$0xff] %v2924
        %2957 = vst [vmem:[%s177 + $0x10f8] sm:$0xff] %v2925
        %2958 = vst [vmem:[%s177 + $0x1100] sm:$0xff] %v2894
        %2959 = vst [vmem:[%s177 + $0x1108] sm:$0xff] %v2895
        %2960 = vst [vmem:[%s177 + $0x1110] sm:$0xff] %v2896
        %2961 = vst [vmem:[%s177 + $0x1118] sm:$0xff] %v2897
        %2962 = vst [vmem:[%s177 + $0x1120] sm:$0xff] %v2898
        %2963 = vst [vmem:[%s177 + $0x1128] sm:$0xff] %v2899
        %2964 = vst [vmem:[%s177 + $0x1130] sm:$0xff] %v2900
        %2965 = vst [vmem:[%s177 + $0x1138] sm:$0xff] %v2901
        %2966 = vst [vmem:[%s177 + $0x1140] sm:$0xff] %v2902
        %2967 = vst [vmem:[%s177 + $0x1148] sm:$0xff] %v2903
        %2968 = vst [vmem:[%s177 + $0x1150] sm:$0xff] %v2904
        %2969 = vst [vmem:[%s177 + $0x1158] sm:$0xff] %v2905
        %2970 = vst [vmem:[%s177 + $0x1160] sm:$0xff] %v2906
        %2971 = vst [vmem:[%s177 + $0x1168] sm:$0xff] %v2907
        %2972 = vst [vmem:[%s177 + $0x1170] sm:$0xff] %v2908
        %2973 = vst [vmem:[%s177 + $0x1178] sm:$0xff] %v2909
        %2974 = vst [vmem:[%s177 + $0x1180] sm:$0xff] %v2910
        %2975 = vst [vmem:[%s177 + $0x1188] sm:$0xff] %v2911
        %2976 = vst [vmem:[%s177 + $0x1190] sm:$0xff] %v2912
        %2977 = vst [vmem:[%s177 + $0x1198] sm:$0xff] %v2913
        %2978 = vst [vmem:[%s177 + $0x11a0] sm:$0xff] %v2914
        %2979 = vst [vmem:[%s177 + $0x11a8] sm:$0xff] %v2915
        %2980 = vst [vmem:[%s177 + $0x11b0] sm:$0xff] %v2916
        %2981 = vst [vmem:[%s177 + $0x11b8] sm:$0xff] %v2917
        %2982 = vst [vmem:[%s177 + $0x11c0] sm:$0xff] %v2918
        %2983 = vst [vmem:[%s177 + $0x11c8] sm:$0xff] %v2919
        %2984 = vst [vmem:[%s177 + $0x11d0] sm:$0xff] %v2920
        %2985 = vst [vmem:[%s177 + $0x11d8] sm:$0xff] %v2921
        %2986 = vst [vmem:[%s177 + $0x11e0] sm:$0xff] %v2922
        %2987 = vst [vmem:[%s177 + $0x11e8] sm:$0xff] %v2923
        %2988 = vst [vmem:[%s177 + $0x11f0] sm:$0xff] %v2924
        %2989 = vst [vmem:[%s177 + $0x11f8] sm:$0xff] %v2925
        %2990 = vst [vmem:[%s177 + $0x1200] sm:$0xff] %v2894
        %2991 = vst [vmem:[%s177 + $0x1208] sm:$0xff] %v2895
        %2992 = vst [vmem:[%s177 + $0x1210] sm:$0xff] %v2896
        %2993 = vst [vmem:[%s177 + $0x1218] sm:$0xff] %v2897
        %2994 = vst [vmem:[%s177 + $0x1220] sm:$0xff] %v2898
        %2995 = vst [vmem:[%s177 + $0x1228] sm:$0xff] %v2899
        %2996 = vst [vmem:[%s177 + $0x1230] sm:$0xff] %v2900
        %2997 = vst [vmem:[%s177 + $0x1238] sm:$0xff] %v2901
        %2998 = vst [vmem:[%s177 + $0x1240] sm:$0xff] %v2902
        %2999 = vst [vmem:[%s177 + $0x1248] sm:$0xff] %v2903
        %3000 = vst [vmem:[%s177 + $0x1250] sm:$0xff] %v2904
        %3001 = vst [vmem:[%s177 + $0x1258] sm:$0xff] %v2905
        %3002 = vst [vmem:[%s177 + $0x1260] sm:$0xff] %v2906
        %3003 = vst [vmem:[%s177 + $0x1268] sm:$0xff] %v2907
        %3004 = vst [vmem:[%s177 + $0x1270] sm:$0xff] %v2908
        %3005 = vst [vmem:[%s177 + $0x1278] sm:$0xff] %v2909
        %3006 = vst [vmem:[%s177 + $0x1280] sm:$0xff] %v2910
        %3007 = vst [vmem:[%s177 + $0x1288] sm:$0xff] %v2911
        %3008 = vst [vmem:[%s177 + $0x1290] sm:$0xff] %v2912
        %3009 = vst [vmem:[%s177 + $0x1298] sm:$0xff] %v2913
        %3010 = vst [vmem:[%s177 + $0x12a0] sm:$0xff] %v2914
        %3011 = vst [vmem:[%s177 + $0x12a8] sm:$0xff] %v2915
        %3012 = vst [vmem:[%s177 + $0x12b0] sm:$0xff] %v2916
        %3013 = vst [vmem:[%s177 + $0x12b8] sm:$0xff] %v2917
        %3014 = vst [vmem:[%s177 + $0x12c0] sm:$0xff] %v2918
        %3015 = vst [vmem:[%s177 + $0x12c8] sm:$0xff] %v2919
        %3016 = vst [vmem:[%s177 + $0x12d0] sm:$0xff] %v2920
        %3017 = vst [vmem:[%s177 + $0x12d8] sm:$0xff] %v2921
        %3018 = vst [vmem:[%s177 + $0x12e0] sm:$0xff] %v2922
        %3019 = vst [vmem:[%s177 + $0x12e8] sm:$0xff] %v2923
        %3020 = vst [vmem:[%s177 + $0x12f0] sm:$0xff] %v2924
        %3021 = vst [vmem:[%s177 + $0x12f8] sm:$0xff] %v2925
        %3022 = vst [vmem:[%s177 + $0x1300] sm:$0xff] %v2894
        %3023 = vst [vmem:[%s177 + $0x1308] sm:$0xff] %v2895
        %3024 = vst [vmem:[%s177 + $0x1310] sm:$0xff] %v2896
        %3025 = vst [vmem:[%s177 + $0x1318] sm:$0xff] %v2897
        %3026 = vst [vmem:[%s177 + $0x1320] sm:$0xff] %v2898
        %3027 = vst [vmem:[%s177 + $0x1328] sm:$0xff] %v2899
        %3028 = vst [vmem:[%s177 + $0x1330] sm:$0xff] %v2900
        %3029 = vst [vmem:[%s177 + $0x1338] sm:$0xff] %v2901
        %3030 = vst [vmem:[%s177 + $0x1340] sm:$0xff] %v2902
        %3031 = vst [vmem:[%s177 + $0x1348] sm:$0xff] %v2903
        %3032 = vst [vmem:[%s177 + $0x1350] sm:$0xff] %v2904
        %3033 = vst [vmem:[%s177 + $0x1358] sm:$0xff] %v2905
        %3034 = vst [vmem:[%s177 + $0x1360] sm:$0xff] %v2906
        %3035 = vst [vmem:[%s177 + $0x1368] sm:$0xff] %v2907
        %3036 = vst [vmem:[%s177 + $0x1370] sm:$0xff] %v2908
        %3037 = vst [vmem:[%s177 + $0x1378] sm:$0xff] %v2909
        %3038 = vst [vmem:[%s177 + $0x1380] sm:$0xff] %v2910
        %3039 = vst [vmem:[%s177 + $0x1388] sm:$0xff] %v2911
        %3040 = vst [vmem:[%s177 + $0x1390] sm:$0xff] %v2912
        %3041 = vst [vmem:[%s177 + $0x1398] sm:$0xff] %v2913
        %3042 = vst [vmem:[%s177 + $0x13a0] sm:$0xff] %v2914
        %3043 = vst [vmem:[%s177 + $0x13a8] sm:$0xff] %v2915
        %3044 = vst [vmem:[%s177 + $0x13b0] sm:$0xff] %v2916
        %3045 = vst [vmem:[%s177 + $0x13b8] sm:$0xff] %v2917
        %3046 = vst [vmem:[%s177 + $0x13c0] sm:$0xff] %v2918
        %3047 = vst [vmem:[%s177 + $0x13c8] sm:$0xff] %v2919
        %3048 = vst [vmem:[%s177 + $0x13d0] sm:$0xff] %v2920
        %3049 = vst [vmem:[%s177 + $0x13d8] sm:$0xff] %v2921
        %3050 = vst [vmem:[%s177 + $0x13e0] sm:$0xff] %v2922
        %3051 = vst [vmem:[%s177 + $0x13e8] sm:$0xff] %v2923
        %3052 = vst [vmem:[%s177 + $0x13f0] sm:$0xff] %v2924
        %3053 = vst [vmem:[%s177 + $0x13f8] sm:$0xff] %v2925
        %3054 = vst [vmem:[%s177 + $0x1400] sm:$0xff] %v2894
        %3055 = vst [vmem:[%s177 + $0x1408] sm:$0xff] %v2895
        %3056 = vst [vmem:[%s177 + $0x1410] sm:$0xff] %v2896
        %3057 = vst [vmem:[%s177 + $0x1418] sm:$0xff] %v2897
        %3058 = vst [vmem:[%s177 + $0x1420] sm:$0xff] %v2898
        %3059 = vst [vmem:[%s177 + $0x1428] sm:$0xff] %v2899
        %3060 = vst [vmem:[%s177 + $0x1430] sm:$0xff] %v2900
        %3061 = vst [vmem:[%s177 + $0x1438] sm:$0xff] %v2901
        %3062 = vst [vmem:[%s177 + $0x1440] sm:$0xff] %v2902
        %3063 = vst [vmem:[%s177 + $0x1448] sm:$0xff] %v2903
        %3064 = vst [vmem:[%s177 + $0x1450] sm:$0xff] %v2904
        %3065 = vst [vmem:[%s177 + $0x1458] sm:$0xff] %v2905
        %3066 = vst [vmem:[%s177 + $0x1460] sm:$0xff] %v2906
        %3067 = vst [vmem:[%s177 + $0x1468] sm:$0xff] %v2907
        %3068 = vst [vmem:[%s177 + $0x1470] sm:$0xff] %v2908
        %3069 = vst [vmem:[%s177 + $0x1478] sm:$0xff] %v2909
        %3070 = vst [vmem:[%s177 + $0x1480] sm:$0xff] %v2910
        %3071 = vst [vmem:[%s177 + $0x1488] sm:$0xff] %v2911
        %3072 = vst [vmem:[%s177 + $0x1490] sm:$0xff] %v2912
        %3073 = vst [vmem:[%s177 + $0x1498] sm:$0xff] %v2913
        %3074 = vst [vmem:[%s177 + $0x14a0] sm:$0xff] %v2914
        %3075 = vst [vmem:[%s177 + $0x14a8] sm:$0xff] %v2915
        %3076 = vst [vmem:[%s177 + $0x14b0] sm:$0xff] %v2916
        %3077 = vst [vmem:[%s177 + $0x14b8] sm:$0xff] %v2917
        %3078 = vst [vmem:[%s177 + $0x14c0] sm:$0xff] %v2918
        %3079 = vst [vmem:[%s177 + $0x14c8] sm:$0xff] %v2919
        %3080 = vst [vmem:[%s177 + $0x14d0] sm:$0xff] %v2920
        %3081 = vst [vmem:[%s177 + $0x14d8] sm:$0xff] %v2921
        %3082 = vst [vmem:[%s177 + $0x14e0] sm:$0xff] %v2922
        %3083 = vst [vmem:[%s177 + $0x14e8] sm:$0xff] %v2923
        %3084 = vst [vmem:[%s177 + $0x14f0] sm:$0xff] %v2924
        %3085 = vst [vmem:[%s177 + $0x14f8] sm:$0xff] %v2925
        %3086 = vst [vmem:[%s177 + $0x1500] sm:$0xff] %v2894
        %3087 = vst [vmem:[%s177 + $0x1508] sm:$0xff] %v2895
        %3088 = vst [vmem:[%s177 + $0x1510] sm:$0xff] %v2896
        %3089 = vst [vmem:[%s177 + $0x1518] sm:$0xff] %v2897
        %3090 = vst [vmem:[%s177 + $0x1520] sm:$0xff] %v2898
        %3091 = vst [vmem:[%s177 + $0x1528] sm:$0xff] %v2899
        %3092 = vst [vmem:[%s177 + $0x1530] sm:$0xff] %v2900
        %3093 = vst [vmem:[%s177 + $0x1538] sm:$0xff] %v2901
        %3094 = vst [vmem:[%s177 + $0x1540] sm:$0xff] %v2902
        %3095 = vst [vmem:[%s177 + $0x1548] sm:$0xff] %v2903
        %3096 = vst [vmem:[%s177 + $0x1550] sm:$0xff] %v2904
        %3097 = vst [vmem:[%s177 + $0x1558] sm:$0xff] %v2905
        %3098 = vst [vmem:[%s177 + $0x1560] sm:$0xff] %v2906
        %3099 = vst [vmem:[%s177 + $0x1568] sm:$0xff] %v2907
        %3100 = vst [vmem:[%s177 + $0x1570] sm:$0xff] %v2908
        %3101 = vst [vmem:[%s177 + $0x1578] sm:$0xff] %v2909
        %3102 = vst [vmem:[%s177 + $0x1580] sm:$0xff] %v2910
        %3103 = vst [vmem:[%s177 + $0x1588] sm:$0xff] %v2911
        %3104 = vst [vmem:[%s177 + $0x1590] sm:$0xff] %v2912
        %3105 = vst [vmem:[%s177 + $0x1598] sm:$0xff] %v2913
        %3106 = vst [vmem:[%s177 + $0x15a0] sm:$0xff] %v2914
        %3107 = vst [vmem:[%s177 + $0x15a8] sm:$0xff] %v2915
        %3108 = vst [vmem:[%s177 + $0x15b0] sm:$0xff] %v2916
        %3109 = vst [vmem:[%s177 + $0x15b8] sm:$0xff] %v2917
        %3110 = vst [vmem:[%s177 + $0x15c0] sm:$0xff] %v2918
        %3111 = vst [vmem:[%s177 + $0x15c8] sm:$0xff] %v2919
        %3112 = vst [vmem:[%s177 + $0x15d0] sm:$0xff] %v2920
        %3113 = vst [vmem:[%s177 + $0x15d8] sm:$0xff] %v2921
        %3114 = vst [vmem:[%s177 + $0x15e0] sm:$0xff] %v2922
        %3115 = vst [vmem:[%s177 + $0x15e8] sm:$0xff] %v2923
        %3116 = vst [vmem:[%s177 + $0x15f0] sm:$0xff] %v2924
        %3117 = vst [vmem:[%s177 + $0x15f8] sm:$0xff] %v2925
        %3118 = vst [vmem:[%s177 + $0x1600] sm:$0xff] %v2894
        %3119 = vst [vmem:[%s177 + $0x1608] sm:$0xff] %v2895
        %3120 = vst [vmem:[%s177 + $0x1610] sm:$0xff] %v2896
        %3121 = vst [vmem:[%s177 + $0x1618] sm:$0xff] %v2897
        %3122 = vst [vmem:[%s177 + $0x1620] sm:$0xff] %v2898
        %3123 = vst [vmem:[%s177 + $0x1628] sm:$0xff] %v2899
        %3124 = vst [vmem:[%s177 + $0x1630] sm:$0xff] %v2900
        %3125 = vst [vmem:[%s177 + $0x1638] sm:$0xff] %v2901
        %3126 = vst [vmem:[%s177 + $0x1640] sm:$0xff] %v2902
        %3127 = vst [vmem:[%s177 + $0x1648] sm:$0xff] %v2903
        %3128 = vst [vmem:[%s177 + $0x1650] sm:$0xff] %v2904
        %3129 = vst [vmem:[%s177 + $0x1658] sm:$0xff] %v2905
        %3130 = vst [vmem:[%s177 + $0x1660] sm:$0xff] %v2906
        %3131 = vst [vmem:[%s177 + $0x1668] sm:$0xff] %v2907
        %3132 = vst [vmem:[%s177 + $0x1670] sm:$0xff] %v2908
        %3133 = vst [vmem:[%s177 + $0x1678] sm:$0xff] %v2909
        %3134 = vst [vmem:[%s177 + $0x1680] sm:$0xff] %v2910
        %3135 = vst [vmem:[%s177 + $0x1688] sm:$0xff] %v2911
        %3136 = vst [vmem:[%s177 + $0x1690] sm:$0xff] %v2912
        %3137 = vst [vmem:[%s177 + $0x1698] sm:$0xff] %v2913
        %3138 = vst [vmem:[%s177 + $0x16a0] sm:$0xff] %v2914
        %3139 = vst [vmem:[%s177 + $0x16a8] sm:$0xff] %v2915
        %3140 = vst [vmem:[%s177 + $0x16b0] sm:$0xff] %v2916
        %3141 = vst [vmem:[%s177 + $0x16b8] sm:$0xff] %v2917
        %3142 = vst [vmem:[%s177 + $0x16c0] sm:$0xff] %v2918
        %3143 = vst [vmem:[%s177 + $0x16c8] sm:$0xff] %v2919
        %3144 = vst [vmem:[%s177 + $0x16d0] sm:$0xff] %v2920
        %3145 = vst [vmem:[%s177 + $0x16d8] sm:$0xff] %v2921
        %3146 = vst [vmem:[%s177 + $0x16e0] sm:$0xff] %v2922
        %3147 = vst [vmem:[%s177 + $0x16e8] sm:$0xff] %v2923
        %3148 = vst [vmem:[%s177 + $0x16f0] sm:$0xff] %v2924
        %3149 = vst [vmem:[%s177 + $0x16f8] sm:$0xff] %v2925
        %3150 = vst [vmem:[%s177 + $0x1700] sm:$0xff] %v2894
        %3151 = vst [vmem:[%s177 + $0x1708] sm:$0xff] %v2895
        %3152 = vst [vmem:[%s177 + $0x1710] sm:$0xff] %v2896
        %3153 = vst [vmem:[%s177 + $0x1718] sm:$0xff] %v2897
        %3154 = vst [vmem:[%s177 + $0x1720] sm:$0xff] %v2898
        %3155 = vst [vmem:[%s177 + $0x1728] sm:$0xff] %v2899
        %3156 = vst [vmem:[%s177 + $0x1730] sm:$0xff] %v2900
        %3157 = vst [vmem:[%s177 + $0x1738] sm:$0xff] %v2901
        %3158 = vst [vmem:[%s177 + $0x1740] sm:$0xff] %v2902
        %3159 = vst [vmem:[%s177 + $0x1748] sm:$0xff] %v2903
        %3160 = vst [vmem:[%s177 + $0x1750] sm:$0xff] %v2904
        %3161 = vst [vmem:[%s177 + $0x1758] sm:$0xff] %v2905
        %3162 = vst [vmem:[%s177 + $0x1760] sm:$0xff] %v2906
        %3163 = vst [vmem:[%s177 + $0x1768] sm:$0xff] %v2907
        %3164 = vst [vmem:[%s177 + $0x1770] sm:$0xff] %v2908
        %3165 = vst [vmem:[%s177 + $0x1778] sm:$0xff] %v2909
        %3166 = vst [vmem:[%s177 + $0x1780] sm:$0xff] %v2910
        %3167 = vst [vmem:[%s177 + $0x1788] sm:$0xff] %v2911
        %3168 = vst [vmem:[%s177 + $0x1790] sm:$0xff] %v2912
        %3169 = vst [vmem:[%s177 + $0x1798] sm:$0xff] %v2913
        %3170 = vst [vmem:[%s177 + $0x17a0] sm:$0xff] %v2914
        %3171 = vst [vmem:[%s177 + $0x17a8] sm:$0xff] %v2915
        %3172 = vst [vmem:[%s177 + $0x17b0] sm:$0xff] %v2916
        %3173 = vst [vmem:[%s177 + $0x17b8] sm:$0xff] %v2917
        %3174 = vst [vmem:[%s177 + $0x17c0] sm:$0xff] %v2918
        %3175 = vst [vmem:[%s177 + $0x17c8] sm:$0xff] %v2919
        %3176 = vst [vmem:[%s177 + $0x17d0] sm:$0xff] %v2920
        %3177 = vst [vmem:[%s177 + $0x17d8] sm:$0xff] %v2921
        %3178 = vst [vmem:[%s177 + $0x17e0] sm:$0xff] %v2922
        %3179 = vst [vmem:[%s177 + $0x17e8] sm:$0xff] %v2923
        %3180 = vst [vmem:[%s177 + $0x17f0] sm:$0xff] %v2924
        %3181 = vst [vmem:[%s177 + $0x17f8] sm:$0xff] %v2925
        %v3182 = vperm.slane %v2286, 3
        %v3183 = vperm.slane %v2287, 3
        %v3184 = vperm.slane %v2288, 3
        %v3185 = vperm.slane %v2289, 3
        %v3186 = vperm.slane %v2290, 3
        %v3187 = vperm.slane %v2291, 3
        %v3188 = vperm.slane %v2292, 3
        %v3189 = vperm.slane %v2293, 3
        %v3190 = vperm.slane %v2294, 3
        %v3191 = vperm.slane %v2295, 3
        %v3192 = vperm.slane %v2296, 3
        %v3193 = vperm.slane %v2297, 3
        %v3194 = vperm.slane %v2298, 3
        %v3195 = vperm.slane %v2299, 3
        %v3196 = vperm.slane %v2300, 3
        %v3197 = vperm.slane %v2301, 3
        %v3198 = vperm.slane %v2302, 3
        %v3199 = vperm.slane %v2303, 3
        %v3200 = vperm.slane %v2304, 3
        %v3201 = vperm.slane %v2305, 3
        %v3202 = vperm.slane %v2306, 3
        %v3203 = vperm.slane %v2307, 3
        %v3204 = vperm.slane %v2308, 3
        %v3205 = vperm.slane %v2309, 3
        %v3206 = vperm.slane %v2310, 3
        %v3207 = vperm.slane %v2311, 3
        %v3208 = vperm.slane %v2312, 3
        %v3209 = vperm.slane %v2313, 3
        %v3210 = vperm.slane %v2314, 3
        %v3211 = vperm.slane %v2315, 3
        %v3212 = vperm.slane %v2316, 3
        %v3213 = vperm.slane %v2317, 3
        %3214 = vst [vmem:[%s177 + $0x1800] sm:$0xff] %v3182
        %3215 = vst [vmem:[%s177 + $0x1808] sm:$0xff] %v3183
        %3216 = vst [vmem:[%s177 + $0x1810] sm:$0xff] %v3184
        %3217 = vst [vmem:[%s177 + $0x1818] sm:$0xff] %v3185
        %3218 = vst [vmem:[%s177 + $0x1820] sm:$0xff] %v3186
        %3219 = vst [vmem:[%s177 + $0x1828] sm:$0xff] %v3187
        %3220 = vst [vmem:[%s177 + $0x1830] sm:$0xff] %v3188
        %3221 = vst [vmem:[%s177 + $0x1838] sm:$0xff] %v3189
        %3222 = vst [vmem:[%s177 + $0x1840] sm:$0xff] %v3190
        %3223 = vst [vmem:[%s177 + $0x1848] sm:$0xff] %v3191
        %3224 = vst [vmem:[%s177 + $0x1850] sm:$0xff] %v3192
        %3225 = vst [vmem:[%s177 + $0x1858] sm:$0xff] %v3193
        %3226 = vst [vmem:[%s177 + $0x1860] sm:$0xff] %v3194
        %3227 = vst [vmem:[%s177 + $0x1868] sm:$0xff] %v3195
        %3228 = vst [vmem:[%s177 + $0x1870] sm:$0xff] %v3196
        %3229 = vst [vmem:[%s177 + $0x1878] sm:$0xff] %v3197
        %3230 = vst [vmem:[%s177 + $0x1880] sm:$0xff] %v3198
        %3231 = vst [vmem:[%s177 + $0x1888] sm:$0xff] %v3199
        %3232 = vst [vmem:[%s177 + $0x1890] sm:$0xff] %v3200
        %3233 = vst [vmem:[%s177 + $0x1898] sm:$0xff] %v3201
        %3234 = vst [vmem:[%s177 + $0x18a0] sm:$0xff] %v3202
        %3235 = vst [vmem:[%s177 + $0x18a8] sm:$0xff] %v3203
        %3236 = vst [vmem:[%s177 + $0x18b0] sm:$0xff] %v3204
        %3237 = vst [vmem:[%s177 + $0x18b8] sm:$0xff] %v3205
        %3238 = vst [vmem:[%s177 + $0x18c0] sm:$0xff] %v3206
        %3239 = vst [vmem:[%s177 + $0x18c8] sm:$0xff] %v3207
        %3240 = vst [vmem:[%s177 + $0x18d0] sm:$0xff] %v3208
        %3241 = vst [vmem:[%s177 + $0x18d8] sm:$0xff] %v3209
        %3242 = vst [vmem:[%s177 + $0x18e0] sm:$0xff] %v3210
        %3243 = vst [vmem:[%s177 + $0x18e8] sm:$0xff] %v3211
        %3244 = vst [vmem:[%s177 + $0x18f0] sm:$0xff] %v3212
        %3245 = vst [vmem:[%s177 + $0x18f8] sm:$0xff] %v3213
        %3246 = vst [vmem:[%s177 + $0x1900] sm:$0xff] %v3182
        %3247 = vst [vmem:[%s177 + $0x1908] sm:$0xff] %v3183
        %3248 = vst [vmem:[%s177 + $0x1910] sm:$0xff] %v3184
        %3249 = vst [vmem:[%s177 + $0x1918] sm:$0xff] %v3185
        %3250 = vst [vmem:[%s177 + $0x1920] sm:$0xff] %v3186
        %3251 = vst [vmem:[%s177 + $0x1928] sm:$0xff] %v3187
        %3252 = vst [vmem:[%s177 + $0x1930] sm:$0xff] %v3188
        %3253 = vst [vmem:[%s177 + $0x1938] sm:$0xff] %v3189
        %3254 = vst [vmem:[%s177 + $0x1940] sm:$0xff] %v3190
        %3255 = vst [vmem:[%s177 + $0x1948] sm:$0xff] %v3191
        %3256 = vst [vmem:[%s177 + $0x1950] sm:$0xff] %v3192
        %3257 = vst [vmem:[%s177 + $0x1958] sm:$0xff] %v3193
        %3258 = vst [vmem:[%s177 + $0x1960] sm:$0xff] %v3194
        %3259 = vst [vmem:[%s177 + $0x1968] sm:$0xff] %v3195
        %3260 = vst [vmem:[%s177 + $0x1970] sm:$0xff] %v3196
        %3261 = vst [vmem:[%s177 + $0x1978] sm:$0xff] %v3197
        %3262 = vst [vmem:[%s177 + $0x1980] sm:$0xff] %v3198
        %3263 = vst [vmem:[%s177 + $0x1988] sm:$0xff] %v3199
        %3264 = vst [vmem:[%s177 + $0x1990] sm:$0xff] %v3200
        %3265 = vst [vmem:[%s177 + $0x1998] sm:$0xff] %v3201
        %3266 = vst [vmem:[%s177 + $0x19a0] sm:$0xff] %v3202
        %3267 = vst [vmem:[%s177 + $0x19a8] sm:$0xff] %v3203
        %3268 = vst [vmem:[%s177 + $0x19b0] sm:$0xff] %v3204
        %3269 = vst [vmem:[%s177 + $0x19b8] sm:$0xff] %v3205
        %3270 = vst [vmem:[%s177 + $0x19c0] sm:$0xff] %v3206
        %3271 = vst [vmem:[%s177 + $0x19c8] sm:$0xff] %v3207
        %3272 = vst [vmem:[%s177 + $0x19d0] sm:$0xff] %v3208
        %3273 = vst [vmem:[%s177 + $0x19d8] sm:$0xff] %v3209
        %3274 = vst [vmem:[%s177 + $0x19e0] sm:$0xff] %v3210
        %3275 = vst [vmem:[%s177 + $0x19e8] sm:$0xff] %v3211
        %3276 = vst [vmem:[%s177 + $0x19f0] sm:$0xff] %v3212
        %3277 = vst [vmem:[%s177 + $0x19f8] sm:$0xff] %v3213
        %3278 = vst [vmem:[%s177 + $0x1a00] sm:$0xff] %v3182
        %3279 = vst [vmem:[%s177 + $0x1a08] sm:$0xff] %v3183
        %3280 = vst [vmem:[%s177 + $0x1a10] sm:$0xff] %v3184
        %3281 = vst [vmem:[%s177 + $0x1a18] sm:$0xff] %v3185
        %3282 = vst [vmem:[%s177 + $0x1a20] sm:$0xff] %v3186
        %3283 = vst [vmem:[%s177 + $0x1a28] sm:$0xff] %v3187
        %3284 = vst [vmem:[%s177 + $0x1a30] sm:$0xff] %v3188
        %3285 = vst [vmem:[%s177 + $0x1a38] sm:$0xff] %v3189
        %3286 = vst [vmem:[%s177 + $0x1a40] sm:$0xff] %v3190
        %3287 = vst [vmem:[%s177 + $0x1a48] sm:$0xff] %v3191
        %3288 = vst [vmem:[%s177 + $0x1a50] sm:$0xff] %v3192
        %3289 = vst [vmem:[%s177 + $0x1a58] sm:$0xff] %v3193
        %3290 = vst [vmem:[%s177 + $0x1a60] sm:$0xff] %v3194
        %3291 = vst [vmem:[%s177 + $0x1a68] sm:$0xff] %v3195
        %3292 = vst [vmem:[%s177 + $0x1a70] sm:$0xff] %v3196
        %3293 = vst [vmem:[%s177 + $0x1a78] sm:$0xff] %v3197
        %3294 = vst [vmem:[%s177 + $0x1a80] sm:$0xff] %v3198
        %3295 = vst [vmem:[%s177 + $0x1a88] sm:$0xff] %v3199
        %3296 = vst [vmem:[%s177 + $0x1a90] sm:$0xff] %v3200
        %3297 = vst [vmem:[%s177 + $0x1a98] sm:$0xff] %v3201
        %3298 = vst [vmem:[%s177 + $0x1aa0] sm:$0xff] %v3202
        %3299 = vst [vmem:[%s177 + $0x1aa8] sm:$0xff] %v3203
        %3300 = vst [vmem:[%s177 + $0x1ab0] sm:$0xff] %v3204
        %3301 = vst [vmem:[%s177 + $0x1ab8] sm:$0xff] %v3205
        %3302 = vst [vmem:[%s177 + $0x1ac0] sm:$0xff] %v3206
        %3303 = vst [vmem:[%s177 + $0x1ac8] sm:$0xff] %v3207
        %3304 = vst [vmem:[%s177 + $0x1ad0] sm:$0xff] %v3208
        %3305 = vst [vmem:[%s177 + $0x1ad8] sm:$0xff] %v3209
        %3306 = vst [vmem:[%s177 + $0x1ae0] sm:$0xff] %v3210
        %3307 = vst [vmem:[%s177 + $0x1ae8] sm:$0xff] %v3211
        %3308 = vst [vmem:[%s177 + $0x1af0] sm:$0xff] %v3212
        %3309 = vst [vmem:[%s177 + $0x1af8] sm:$0xff] %v3213
        %3310 = vst [vmem:[%s177 + $0x1b00] sm:$0xff] %v3182
        %3311 = vst [vmem:[%s177 + $0x1b08] sm:$0xff] %v3183
        %3312 = vst [vmem:[%s177 + $0x1b10] sm:$0xff] %v3184
        %3313 = vst [vmem:[%s177 + $0x1b18] sm:$0xff] %v3185
        %3314 = vst [vmem:[%s177 + $0x1b20] sm:$0xff] %v3186
        %3315 = vst [vmem:[%s177 + $0x1b28] sm:$0xff] %v3187
        %3316 = vst [vmem:[%s177 + $0x1b30] sm:$0xff] %v3188
        %3317 = vst [vmem:[%s177 + $0x1b38] sm:$0xff] %v3189
        %3318 = vst [vmem:[%s177 + $0x1b40] sm:$0xff] %v3190
        %3319 = vst [vmem:[%s177 + $0x1b48] sm:$0xff] %v3191
        %3320 = vst [vmem:[%s177 + $0x1b50] sm:$0xff] %v3192
        %3321 = vst [vmem:[%s177 + $0x1b58] sm:$0xff] %v3193
        %3322 = vst [vmem:[%s177 + $0x1b60] sm:$0xff] %v3194
        %3323 = vst [vmem:[%s177 + $0x1b68] sm:$0xff] %v3195
        %3324 = vst [vmem:[%s177 + $0x1b70] sm:$0xff] %v3196
        %3325 = vst [vmem:[%s177 + $0x1b78] sm:$0xff] %v3197
        %3326 = vst [vmem:[%s177 + $0x1b80] sm:$0xff] %v3198
        %3327 = vst [vmem:[%s177 + $0x1b88] sm:$0xff] %v3199
        %3328 = vst [vmem:[%s177 + $0x1b90] sm:$0xff] %v3200
        %3329 = vst [vmem:[%s177 + $0x1b98] sm:$0xff] %v3201
        %3330 = vst [vmem:[%s177 + $0x1ba0] sm:$0xff] %v3202
        %3331 = vst [vmem:[%s177 + $0x1ba8] sm:$0xff] %v3203
        %3332 = vst [vmem:[%s177 + $0x1bb0] sm:$0xff] %v3204
        %3333 = vst [vmem:[%s177 + $0x1bb8] sm:$0xff] %v3205
        %3334 = vst [vmem:[%s177 + $0x1bc0] sm:$0xff] %v3206
        %3335 = vst [vmem:[%s177 + $0x1bc8] sm:$0xff] %v3207
        %3336 = vst [vmem:[%s177 + $0x1bd0] sm:$0xff] %v3208
        %3337 = vst [vmem:[%s177 + $0x1bd8] sm:$0xff] %v3209
        %3338 = vst [vmem:[%s177 + $0x1be0] sm:$0xff] %v3210
        %3339 = vst [vmem:[%s177 + $0x1be8] sm:$0xff] %v3211
        %3340 = vst [vmem:[%s177 + $0x1bf0] sm:$0xff] %v3212
        %3341 = vst [vmem:[%s177 + $0x1bf8] sm:$0xff] %v3213
        %3342 = vst [vmem:[%s177 + $0x1c00] sm:$0xff] %v3182
        %3343 = vst [vmem:[%s177 + $0x1c08] sm:$0xff] %v3183
        %3344 = vst [vmem:[%s177 + $0x1c10] sm:$0xff] %v3184
        %3345 = vst [vmem:[%s177 + $0x1c18] sm:$0xff] %v3185
        %3346 = vst [vmem:[%s177 + $0x1c20] sm:$0xff] %v3186
        %3347 = vst [vmem:[%s177 + $0x1c28] sm:$0xff] %v3187
        %3348 = vst [vmem:[%s177 + $0x1c30] sm:$0xff] %v3188
        %3349 = vst [vmem:[%s177 + $0x1c38] sm:$0xff] %v3189
        %3350 = vst [vmem:[%s177 + $0x1c40] sm:$0xff] %v3190
        %3351 = vst [vmem:[%s177 + $0x1c48] sm:$0xff] %v3191
        %3352 = vst [vmem:[%s177 + $0x1c50] sm:$0xff] %v3192
        %3353 = vst [vmem:[%s177 + $0x1c58] sm:$0xff] %v3193
        %3354 = vst [vmem:[%s177 + $0x1c60] sm:$0xff] %v3194
        %3355 = vst [vmem:[%s177 + $0x1c68] sm:$0xff] %v3195
        %3356 = vst [vmem:[%s177 + $0x1c70] sm:$0xff] %v3196
        %3357 = vst [vmem:[%s177 + $0x1c78] sm:$0xff] %v3197
        %3358 = vst [vmem:[%s177 + $0x1c80] sm:$0xff] %v3198
        %3359 = vst [vmem:[%s177 + $0x1c88] sm:$0xff] %v3199
        %3360 = vst [vmem:[%s177 + $0x1c90] sm:$0xff] %v3200
        %3361 = vst [vmem:[%s177 + $0x1c98] sm:$0xff] %v3201
        %3362 = vst [vmem:[%s177 + $0x1ca0] sm:$0xff] %v3202
        %3363 = vst [vmem:[%s177 + $0x1ca8] sm:$0xff] %v3203
        %3364 = vst [vmem:[%s177 + $0x1cb0] sm:$0xff] %v3204
        %3365 = vst [vmem:[%s177 + $0x1cb8] sm:$0xff] %v3205
        %3366 = vst [vmem:[%s177 + $0x1cc0] sm:$0xff] %v3206
        %3367 = vst [vmem:[%s177 + $0x1cc8] sm:$0xff] %v3207
        %3368 = vst [vmem:[%s177 + $0x1cd0] sm:$0xff] %v3208
        %3369 = vst [vmem:[%s177 + $0x1cd8] sm:$0xff] %v3209
        %3370 = vst [vmem:[%s177 + $0x1ce0] sm:$0xff] %v3210
        %3371 = vst [vmem:[%s177 + $0x1ce8] sm:$0xff] %v3211
        %3372 = vst [vmem:[%s177 + $0x1cf0] sm:$0xff] %v3212
        %3373 = vst [vmem:[%s177 + $0x1cf8] sm:$0xff] %v3213
        %3374 = vst [vmem:[%s177 + $0x1d00] sm:$0xff] %v3182
        %3375 = vst [vmem:[%s177 + $0x1d08] sm:$0xff] %v3183
        %3376 = vst [vmem:[%s177 + $0x1d10] sm:$0xff] %v3184
        %3377 = vst [vmem:[%s177 + $0x1d18] sm:$0xff] %v3185
        %3378 = vst [vmem:[%s177 + $0x1d20] sm:$0xff] %v3186
        %3379 = vst [vmem:[%s177 + $0x1d28] sm:$0xff] %v3187
        %3380 = vst [vmem:[%s177 + $0x1d30] sm:$0xff] %v3188
        %3381 = vst [vmem:[%s177 + $0x1d38] sm:$0xff] %v3189
        %3382 = vst [vmem:[%s177 + $0x1d40] sm:$0xff] %v3190
        %3383 = vst [vmem:[%s177 + $0x1d48] sm:$0xff] %v3191
        %3384 = vst [vmem:[%s177 + $0x1d50] sm:$0xff] %v3192
        %3385 = vst [vmem:[%s177 + $0x1d58] sm:$0xff] %v3193
        %3386 = vst [vmem:[%s177 + $0x1d60] sm:$0xff] %v3194
        %3387 = vst [vmem:[%s177 + $0x1d68] sm:$0xff] %v3195
        %3388 = vst [vmem:[%s177 + $0x1d70] sm:$0xff] %v3196
        %3389 = vst [vmem:[%s177 + $0x1d78] sm:$0xff] %v3197
        %3390 = vst [vmem:[%s177 + $0x1d80] sm:$0xff] %v3198
        %3391 = vst [vmem:[%s177 + $0x1d88] sm:$0xff] %v3199
        %3392 = vst [vmem:[%s177 + $0x1d90] sm:$0xff] %v3200
        %3393 = vst [vmem:[%s177 + $0x1d98] sm:$0xff] %v3201
        %3394 = vst [vmem:[%s177 + $0x1da0] sm:$0xff] %v3202
        %3395 = vst [vmem:[%s177 + $0x1da8] sm:$0xff] %v3203
        %3396 = vst [vmem:[%s177 + $0x1db0] sm:$0xff] %v3204
        %3397 = vst [vmem:[%s177 + $0x1db8] sm:$0xff] %v3205
        %3398 = vst [vmem:[%s177 + $0x1dc0] sm:$0xff] %v3206
        %3399 = vst [vmem:[%s177 + $0x1dc8] sm:$0xff] %v3207
        %3400 = vst [vmem:[%s177 + $0x1dd0] sm:$0xff] %v3208
        %3401 = vst [vmem:[%s177 + $0x1dd8] sm:$0xff] %v3209
        %3402 = vst [vmem:[%s177 + $0x1de0] sm:$0xff] %v3210
        %3403 = vst [vmem:[%s177 + $0x1de8] sm:$0xff] %v3211
        %3404 = vst [vmem:[%s177 + $0x1df0] sm:$0xff] %v3212
        %3405 = vst [vmem:[%s177 + $0x1df8] sm:$0xff] %v3213
        %3406 = vst [vmem:[%s177 + $0x1e00] sm:$0xff] %v3182
        %3407 = vst [vmem:[%s177 + $0x1e08] sm:$0xff] %v3183
        %3408 = vst [vmem:[%s177 + $0x1e10] sm:$0xff] %v3184
        %3409 = vst [vmem:[%s177 + $0x1e18] sm:$0xff] %v3185
        %3410 = vst [vmem:[%s177 + $0x1e20] sm:$0xff] %v3186
        %3411 = vst [vmem:[%s177 + $0x1e28] sm:$0xff] %v3187
        %3412 = vst [vmem:[%s177 + $0x1e30] sm:$0xff] %v3188
        %3413 = vst [vmem:[%s177 + $0x1e38] sm:$0xff] %v3189
        %3414 = vst [vmem:[%s177 + $0x1e40] sm:$0xff] %v3190
        %3415 = vst [vmem:[%s177 + $0x1e48] sm:$0xff] %v3191
        %3416 = vst [vmem:[%s177 + $0x1e50] sm:$0xff] %v3192
        %3417 = vst [vmem:[%s177 + $0x1e58] sm:$0xff] %v3193
        %3418 = vst [vmem:[%s177 + $0x1e60] sm:$0xff] %v3194
        %3419 = vst [vmem:[%s177 + $0x1e68] sm:$0xff] %v3195
        %3420 = vst [vmem:[%s177 + $0x1e70] sm:$0xff] %v3196
        %3421 = vst [vmem:[%s177 + $0x1e78] sm:$0xff] %v3197
        %3422 = vst [vmem:[%s177 + $0x1e80] sm:$0xff] %v3198
        %3423 = vst [vmem:[%s177 + $0x1e88] sm:$0xff] %v3199
        %3424 = vst [vmem:[%s177 + $0x1e90] sm:$0xff] %v3200
        %3425 = vst [vmem:[%s177 + $0x1e98] sm:$0xff] %v3201
        %3426 = vst [vmem:[%s177 + $0x1ea0] sm:$0xff] %v3202
        %3427 = vst [vmem:[%s177 + $0x1ea8] sm:$0xff] %v3203
        %3428 = vst [vmem:[%s177 + $0x1eb0] sm:$0xff] %v3204
        %3429 = vst [vmem:[%s177 + $0x1eb8] sm:$0xff] %v3205
        %3430 = vst [vmem:[%s177 + $0x1ec0] sm:$0xff] %v3206
        %3431 = vst [vmem:[%s177 + $0x1ec8] sm:$0xff] %v3207
        %3432 = vst [vmem:[%s177 + $0x1ed0] sm:$0xff] %v3208
        %3433 = vst [vmem:[%s177 + $0x1ed8] sm:$0xff] %v3209
        %3434 = vst [vmem:[%s177 + $0x1ee0] sm:$0xff] %v3210
        %3435 = vst [vmem:[%s177 + $0x1ee8] sm:$0xff] %v3211
        %3436 = vst [vmem:[%s177 + $0x1ef0] sm:$0xff] %v3212
        %3437 = vst [vmem:[%s177 + $0x1ef8] sm:$0xff] %v3213
        %3438 = vst [vmem:[%s177 + $0x1f00] sm:$0xff] %v3182
        %3439 = vst [vmem:[%s177 + $0x1f08] sm:$0xff] %v3183
        %3440 = vst [vmem:[%s177 + $0x1f10] sm:$0xff] %v3184
        %3441 = vst [vmem:[%s177 + $0x1f18] sm:$0xff] %v3185
        %3442 = vst [vmem:[%s177 + $0x1f20] sm:$0xff] %v3186
        %3443 = vst [vmem:[%s177 + $0x1f28] sm:$0xff] %v3187
        %3444 = vst [vmem:[%s177 + $0x1f30] sm:$0xff] %v3188
        %3445 = vst [vmem:[%s177 + $0x1f38] sm:$0xff] %v3189
        %3446 = vst [vmem:[%s177 + $0x1f40] sm:$0xff] %v3190
        %3447 = vst [vmem:[%s177 + $0x1f48] sm:$0xff] %v3191
        %3448 = vst [vmem:[%s177 + $0x1f50] sm:$0xff] %v3192
        %3449 = vst [vmem:[%s177 + $0x1f58] sm:$0xff] %v3193
        %3450 = vst [vmem:[%s177 + $0x1f60] sm:$0xff] %v3194
        %3451 = vst [vmem:[%s177 + $0x1f68] sm:$0xff] %v3195
        %3452 = vst [vmem:[%s177 + $0x1f70] sm:$0xff] %v3196
        %3453 = vst [vmem:[%s177 + $0x1f78] sm:$0xff] %v3197
        %3454 = vst [vmem:[%s177 + $0x1f80] sm:$0xff] %v3198
        %3455 = vst [vmem:[%s177 + $0x1f88] sm:$0xff] %v3199
        %3456 = vst [vmem:[%s177 + $0x1f90] sm:$0xff] %v3200
        %3457 = vst [vmem:[%s177 + $0x1f98] sm:$0xff] %v3201
        %3458 = vst [vmem:[%s177 + $0x1fa0] sm:$0xff] %v3202
        %3459 = vst [vmem:[%s177 + $0x1fa8] sm:$0xff] %v3203
        %3460 = vst [vmem:[%s177 + $0x1fb0] sm:$0xff] %v3204
        %3461 = vst [vmem:[%s177 + $0x1fb8] sm:$0xff] %v3205
        %3462 = vst [vmem:[%s177 + $0x1fc0] sm:$0xff] %v3206
        %3463 = vst [vmem:[%s177 + $0x1fc8] sm:$0xff] %v3207
        %3464 = vst [vmem:[%s177 + $0x1fd0] sm:$0xff] %v3208
        %3465 = vst [vmem:[%s177 + $0x1fd8] sm:$0xff] %v3209
        %3466 = vst [vmem:[%s177 + $0x1fe0] sm:$0xff] %v3210
        %3467 = vst [vmem:[%s177 + $0x1fe8] sm:$0xff] %v3211
        %3468 = vst [vmem:[%s177 + $0x1ff0] sm:$0xff] %v3212
        %3469 = vst [vmem:[%s177 + $0x1ff8] sm:$0xff] %v3213
        %v3470 = vperm.slane %v2286, 4
        %v3471 = vperm.slane %v2287, 4
        %v3472 = vperm.slane %v2288, 4
        %v3473 = vperm.slane %v2289, 4
        %v3474 = vperm.slane %v2290, 4
        %v3475 = vperm.slane %v2291, 4
        %v3476 = vperm.slane %v2292, 4
        %v3477 = vperm.slane %v2293, 4
        %v3478 = vperm.slane %v2294, 4
        %v3479 = vperm.slane %v2295, 4
        %v3480 = vperm.slane %v2296, 4
        %v3481 = vperm.slane %v2297, 4
        %v3482 = vperm.slane %v2298, 4
        %v3483 = vperm.slane %v2299, 4
        %v3484 = vperm.slane %v2300, 4
        %v3485 = vperm.slane %v2301, 4
        %v3486 = vperm.slane %v2302, 4
        %v3487 = vperm.slane %v2303, 4
        %v3488 = vperm.slane %v2304, 4
        %v3489 = vperm.slane %v2305, 4
        %v3490 = vperm.slane %v2306, 4
        %v3491 = vperm.slane %v2307, 4
        %v3492 = vperm.slane %v2308, 4
        %v3493 = vperm.slane %v2309, 4
        %v3494 = vperm.slane %v2310, 4
        %v3495 = vperm.slane %v2311, 4
        %v3496 = vperm.slane %v2312, 4
        %v3497 = vperm.slane %v2313, 4
        %v3498 = vperm.slane %v2314, 4
        %v3499 = vperm.slane %v2315, 4
        %v3500 = vperm.slane %v2316, 4
        %v3501 = vperm.slane %v2317, 4
        %3502 = vst [vmem:[%s177 + $0x2000] sm:$0xff] %v3470
        %3503 = vst [vmem:[%s177 + $0x2008] sm:$0xff] %v3471
        %3504 = vst [vmem:[%s177 + $0x2010] sm:$0xff] %v3472
        %3505 = vst [vmem:[%s177 + $0x2018] sm:$0xff] %v3473
        %3506 = vst [vmem:[%s177 + $0x2020] sm:$0xff] %v3474
        %3507 = vst [vmem:[%s177 + $0x2028] sm:$0xff] %v3475
        %3508 = vst [vmem:[%s177 + $0x2030] sm:$0xff] %v3476
        %3509 = vst [vmem:[%s177 + $0x2038] sm:$0xff] %v3477
        %3510 = vst [vmem:[%s177 + $0x2040] sm:$0xff] %v3478
        %3511 = vst [vmem:[%s177 + $0x2048] sm:$0xff] %v3479
        %3512 = vst [vmem:[%s177 + $0x2050] sm:$0xff] %v3480
        %3513 = vst [vmem:[%s177 + $0x2058] sm:$0xff] %v3481
        %3514 = vst [vmem:[%s177 + $0x2060] sm:$0xff] %v3482
        %3515 = vst [vmem:[%s177 + $0x2068] sm:$0xff] %v3483
        %3516 = vst [vmem:[%s177 + $0x2070] sm:$0xff] %v3484
        %3517 = vst [vmem:[%s177 + $0x2078] sm:$0xff] %v3485
        %3518 = vst [vmem:[%s177 + $0x2080] sm:$0xff] %v3486
        %3519 = vst [vmem:[%s177 + $0x2088] sm:$0xff] %v3487
        %3520 = vst [vmem:[%s177 + $0x2090] sm:$0xff] %v3488
        %3521 = vst [vmem:[%s177 + $0x2098] sm:$0xff] %v3489
        %3522 = vst [vmem:[%s177 + $0x20a0] sm:$0xff] %v3490
        %3523 = vst [vmem:[%s177 + $0x20a8] sm:$0xff] %v3491
        %3524 = vst [vmem:[%s177 + $0x20b0] sm:$0xff] %v3492
        %3525 = vst [vmem:[%s177 + $0x20b8] sm:$0xff] %v3493
        %3526 = vst [vmem:[%s177 + $0x20c0] sm:$0xff] %v3494
        %3527 = vst [vmem:[%s177 + $0x20c8] sm:$0xff] %v3495
        %3528 = vst [vmem:[%s177 + $0x20d0] sm:$0xff] %v3496
        %3529 = vst [vmem:[%s177 + $0x20d8] sm:$0xff] %v3497
        %3530 = vst [vmem:[%s177 + $0x20e0] sm:$0xff] %v3498
        %3531 = vst [vmem:[%s177 + $0x20e8] sm:$0xff] %v3499
        %3532 = vst [vmem:[%s177 + $0x20f0] sm:$0xff] %v3500
        %3533 = vst [vmem:[%s177 + $0x20f8] sm:$0xff] %v3501
        %3534 = vst [vmem:[%s177 + $0x2100] sm:$0xff] %v3470
        %3535 = vst [vmem:[%s177 + $0x2108] sm:$0xff] %v3471
        %3536 = vst [vmem:[%s177 + $0x2110] sm:$0xff] %v3472
        %3537 = vst [vmem:[%s177 + $0x2118] sm:$0xff] %v3473
        %3538 = vst [vmem:[%s177 + $0x2120] sm:$0xff] %v3474
        %3539 = vst [vmem:[%s177 + $0x2128] sm:$0xff] %v3475
        %3540 = vst [vmem:[%s177 + $0x2130] sm:$0xff] %v3476
        %3541 = vst [vmem:[%s177 + $0x2138] sm:$0xff] %v3477
        %3542 = vst [vmem:[%s177 + $0x2140] sm:$0xff] %v3478
        %3543 = vst [vmem:[%s177 + $0x2148] sm:$0xff] %v3479
        %3544 = vst [vmem:[%s177 + $0x2150] sm:$0xff] %v3480
        %3545 = vst [vmem:[%s177 + $0x2158] sm:$0xff] %v3481
        %3546 = vst [vmem:[%s177 + $0x2160] sm:$0xff] %v3482
        %3547 = vst [vmem:[%s177 + $0x2168] sm:$0xff] %v3483
        %3548 = vst [vmem:[%s177 + $0x2170] sm:$0xff] %v3484
        %3549 = vst [vmem:[%s177 + $0x2178] sm:$0xff] %v3485
        %3550 = vst [vmem:[%s177 + $0x2180] sm:$0xff] %v3486
        %3551 = vst [vmem:[%s177 + $0x2188] sm:$0xff] %v3487
        %3552 = vst [vmem:[%s177 + $0x2190] sm:$0xff] %v3488
        %3553 = vst [vmem:[%s177 + $0x2198] sm:$0xff] %v3489
        %3554 = vst [vmem:[%s177 + $0x21a0] sm:$0xff] %v3490
        %3555 = vst [vmem:[%s177 + $0x21a8] sm:$0xff] %v3491
        %3556 = vst [vmem:[%s177 + $0x21b0] sm:$0xff] %v3492
        %3557 = vst [vmem:[%s177 + $0x21b8] sm:$0xff] %v3493
        %3558 = vst [vmem:[%s177 + $0x21c0] sm:$0xff] %v3494
        %3559 = vst [vmem:[%s177 + $0x21c8] sm:$0xff] %v3495
        %3560 = vst [vmem:[%s177 + $0x21d0] sm:$0xff] %v3496
        %3561 = vst [vmem:[%s177 + $0x21d8] sm:$0xff] %v3497
        %3562 = vst [vmem:[%s177 + $0x21e0] sm:$0xff] %v3498
        %3563 = vst [vmem:[%s177 + $0x21e8] sm:$0xff] %v3499
        %3564 = vst [vmem:[%s177 + $0x21f0] sm:$0xff] %v3500
        %3565 = vst [vmem:[%s177 + $0x21f8] sm:$0xff] %v3501
        %3566 = vst [vmem:[%s177 + $0x2200] sm:$0xff] %v3470
        %3567 = vst [vmem:[%s177 + $0x2208] sm:$0xff] %v3471
        %3568 = vst [vmem:[%s177 + $0x2210] sm:$0xff] %v3472
        %3569 = vst [vmem:[%s177 + $0x2218] sm:$0xff] %v3473
        %3570 = vst [vmem:[%s177 + $0x2220] sm:$0xff] %v3474
        %3571 = vst [vmem:[%s177 + $0x2228] sm:$0xff] %v3475
        %3572 = vst [vmem:[%s177 + $0x2230] sm:$0xff] %v3476
        %3573 = vst [vmem:[%s177 + $0x2238] sm:$0xff] %v3477
        %3574 = vst [vmem:[%s177 + $0x2240] sm:$0xff] %v3478
        %3575 = vst [vmem:[%s177 + $0x2248] sm:$0xff] %v3479
        %3576 = vst [vmem:[%s177 + $0x2250] sm:$0xff] %v3480
        %3577 = vst [vmem:[%s177 + $0x2258] sm:$0xff] %v3481
        %3578 = vst [vmem:[%s177 + $0x2260] sm:$0xff] %v3482
        %3579 = vst [vmem:[%s177 + $0x2268] sm:$0xff] %v3483
        %3580 = vst [vmem:[%s177 + $0x2270] sm:$0xff] %v3484
        %3581 = vst [vmem:[%s177 + $0x2278] sm:$0xff] %v3485
        %3582 = vst [vmem:[%s177 + $0x2280] sm:$0xff] %v3486
        %3583 = vst [vmem:[%s177 + $0x2288] sm:$0xff] %v3487
        %3584 = vst [vmem:[%s177 + $0x2290] sm:$0xff] %v3488
        %3585 = vst [vmem:[%s177 + $0x2298] sm:$0xff] %v3489
        %3586 = vst [vmem:[%s177 + $0x22a0] sm:$0xff] %v3490
        %3587 = vst [vmem:[%s177 + $0x22a8] sm:$0xff] %v3491
        %3588 = vst [vmem:[%s177 + $0x22b0] sm:$0xff] %v3492
        %3589 = vst [vmem:[%s177 + $0x22b8] sm:$0xff] %v3493
        %3590 = vst [vmem:[%s177 + $0x22c0] sm:$0xff] %v3494
        %3591 = vst [vmem:[%s177 + $0x22c8] sm:$0xff] %v3495
        %3592 = vst [vmem:[%s177 + $0x22d0] sm:$0xff] %v3496
        %3593 = vst [vmem:[%s177 + $0x22d8] sm:$0xff] %v3497
        %3594 = vst [vmem:[%s177 + $0x22e0] sm:$0xff] %v3498
        %3595 = vst [vmem:[%s177 + $0x22e8] sm:$0xff] %v3499
        %3596 = vst [vmem:[%s177 + $0x22f0] sm:$0xff] %v3500
        %3597 = vst [vmem:[%s177 + $0x22f8] sm:$0xff] %v3501
        %3598 = vst [vmem:[%s177 + $0x2300] sm:$0xff] %v3470
        %3599 = vst [vmem:[%s177 + $0x2308] sm:$0xff] %v3471
        %3600 = vst [vmem:[%s177 + $0x2310] sm:$0xff] %v3472
        %3601 = vst [vmem:[%s177 + $0x2318] sm:$0xff] %v3473
        %3602 = vst [vmem:[%s177 + $0x2320] sm:$0xff] %v3474
        %3603 = vst [vmem:[%s177 + $0x2328] sm:$0xff] %v3475
        %3604 = vst [vmem:[%s177 + $0x2330] sm:$0xff] %v3476
        %3605 = vst [vmem:[%s177 + $0x2338] sm:$0xff] %v3477
        %3606 = vst [vmem:[%s177 + $0x2340] sm:$0xff] %v3478
        %3607 = vst [vmem:[%s177 + $0x2348] sm:$0xff] %v3479
        %3608 = vst [vmem:[%s177 + $0x2350] sm:$0xff] %v3480
        %3609 = vst [vmem:[%s177 + $0x2358] sm:$0xff] %v3481
        %3610 = vst [vmem:[%s177 + $0x2360] sm:$0xff] %v3482
        %3611 = vst [vmem:[%s177 + $0x2368] sm:$0xff] %v3483
        %3612 = vst [vmem:[%s177 + $0x2370] sm:$0xff] %v3484
        %3613 = vst [vmem:[%s177 + $0x2378] sm:$0xff] %v3485
        %3614 = vst [vmem:[%s177 + $0x2380] sm:$0xff] %v3486
        %3615 = vst [vmem:[%s177 + $0x2388] sm:$0xff] %v3487
        %3616 = vst [vmem:[%s177 + $0x2390] sm:$0xff] %v3488
        %3617 = vst [vmem:[%s177 + $0x2398] sm:$0xff] %v3489
        %3618 = vst [vmem:[%s177 + $0x23a0] sm:$0xff] %v3490
        %3619 = vst [vmem:[%s177 + $0x23a8] sm:$0xff] %v3491
        %3620 = vst [vmem:[%s177 + $0x23b0] sm:$0xff] %v3492
        %3621 = vst [vmem:[%s177 + $0x23b8] sm:$0xff] %v3493
        %3622 = vst [vmem:[%s177 + $0x23c0] sm:$0xff] %v3494
        %3623 = vst [vmem:[%s177 + $0x23c8] sm:$0xff] %v3495
        %3624 = vst [vmem:[%s177 + $0x23d0] sm:$0xff] %v3496
        %3625 = vst [vmem:[%s177 + $0x23d8] sm:$0xff] %v3497
        %3626 = vst [vmem:[%s177 + $0x23e0] sm:$0xff] %v3498
        %3627 = vst [vmem:[%s177 + $0x23e8] sm:$0xff] %v3499
        %3628 = vst [vmem:[%s177 + $0x23f0] sm:$0xff] %v3500
        %3629 = vst [vmem:[%s177 + $0x23f8] sm:$0xff] %v3501
        %3630 = vst [vmem:[%s177 + $0x2400] sm:$0xff] %v3470
        %3631 = vst [vmem:[%s177 + $0x2408] sm:$0xff] %v3471
        %3632 = vst [vmem:[%s177 + $0x2410] sm:$0xff] %v3472
        %3633 = vst [vmem:[%s177 + $0x2418] sm:$0xff] %v3473
        %3634 = vst [vmem:[%s177 + $0x2420] sm:$0xff] %v3474
        %3635 = vst [vmem:[%s177 + $0x2428] sm:$0xff] %v3475
        %3636 = vst [vmem:[%s177 + $0x2430] sm:$0xff] %v3476
        %3637 = vst [vmem:[%s177 + $0x2438] sm:$0xff] %v3477
        %3638 = vst [vmem:[%s177 + $0x2440] sm:$0xff] %v3478
        %3639 = vst [vmem:[%s177 + $0x2448] sm:$0xff] %v3479
        %3640 = vst [vmem:[%s177 + $0x2450] sm:$0xff] %v3480
        %3641 = vst [vmem:[%s177 + $0x2458] sm:$0xff] %v3481
        %3642 = vst [vmem:[%s177 + $0x2460] sm:$0xff] %v3482
        %3643 = vst [vmem:[%s177 + $0x2468] sm:$0xff] %v3483
        %3644 = vst [vmem:[%s177 + $0x2470] sm:$0xff] %v3484
        %3645 = vst [vmem:[%s177 + $0x2478] sm:$0xff] %v3485
        %3646 = vst [vmem:[%s177 + $0x2480] sm:$0xff] %v3486
        %3647 = vst [vmem:[%s177 + $0x2488] sm:$0xff] %v3487
        %3648 = vst [vmem:[%s177 + $0x2490] sm:$0xff] %v3488
        %3649 = vst [vmem:[%s177 + $0x2498] sm:$0xff] %v3489
        %3650 = vst [vmem:[%s177 + $0x24a0] sm:$0xff] %v3490
        %3651 = vst [vmem:[%s177 + $0x24a8] sm:$0xff] %v3491
        %3652 = vst [vmem:[%s177 + $0x24b0] sm:$0xff] %v3492
        %3653 = vst [vmem:[%s177 + $0x24b8] sm:$0xff] %v3493
        %3654 = vst [vmem:[%s177 + $0x24c0] sm:$0xff] %v3494
        %3655 = vst [vmem:[%s177 + $0x24c8] sm:$0xff] %v3495
        %3656 = vst [vmem:[%s177 + $0x24d0] sm:$0xff] %v3496
        %3657 = vst [vmem:[%s177 + $0x24d8] sm:$0xff] %v3497
        %3658 = vst [vmem:[%s177 + $0x24e0] sm:$0xff] %v3498
        %3659 = vst [vmem:[%s177 + $0x24e8] sm:$0xff] %v3499
        %3660 = vst [vmem:[%s177 + $0x24f0] sm:$0xff] %v3500
        %3661 = vst [vmem:[%s177 + $0x24f8] sm:$0xff] %v3501
        %3662 = vst [vmem:[%s177 + $0x2500] sm:$0xff] %v3470
        %3663 = vst [vmem:[%s177 + $0x2508] sm:$0xff] %v3471
        %3664 = vst [vmem:[%s177 + $0x2510] sm:$0xff] %v3472
        %3665 = vst [vmem:[%s177 + $0x2518] sm:$0xff] %v3473
        %3666 = vst [vmem:[%s177 + $0x2520] sm:$0xff] %v3474
        %3667 = vst [vmem:[%s177 + $0x2528] sm:$0xff] %v3475
        %3668 = vst [vmem:[%s177 + $0x2530] sm:$0xff] %v3476
        %3669 = vst [vmem:[%s177 + $0x2538] sm:$0xff] %v3477
        %3670 = vst [vmem:[%s177 + $0x2540] sm:$0xff] %v3478
        %3671 = vst [vmem:[%s177 + $0x2548] sm:$0xff] %v3479
        %3672 = vst [vmem:[%s177 + $0x2550] sm:$0xff] %v3480
        %3673 = vst [vmem:[%s177 + $0x2558] sm:$0xff] %v3481
        %3674 = vst [vmem:[%s177 + $0x2560] sm:$0xff] %v3482
        %3675 = vst [vmem:[%s177 + $0x2568] sm:$0xff] %v3483
        %3676 = vst [vmem:[%s177 + $0x2570] sm:$0xff] %v3484
        %3677 = vst [vmem:[%s177 + $0x2578] sm:$0xff] %v3485
        %3678 = vst [vmem:[%s177 + $0x2580] sm:$0xff] %v3486
        %3679 = vst [vmem:[%s177 + $0x2588] sm:$0xff] %v3487
        %3680 = vst [vmem:[%s177 + $0x2590] sm:$0xff] %v3488
        %3681 = vst [vmem:[%s177 + $0x2598] sm:$0xff] %v3489
        %3682 = vst [vmem:[%s177 + $0x25a0] sm:$0xff] %v3490
        %3683 = vst [vmem:[%s177 + $0x25a8] sm:$0xff] %v3491
        %3684 = vst [vmem:[%s177 + $0x25b0] sm:$0xff] %v3492
        %3685 = vst [vmem:[%s177 + $0x25b8] sm:$0xff] %v3493
        %3686 = vst [vmem:[%s177 + $0x25c0] sm:$0xff] %v3494
        %3687 = vst [vmem:[%s177 + $0x25c8] sm:$0xff] %v3495
        %3688 = vst [vmem:[%s177 + $0x25d0] sm:$0xff] %v3496
        %3689 = vst [vmem:[%s177 + $0x25d8] sm:$0xff] %v3497
        %3690 = vst [vmem:[%s177 + $0x25e0] sm:$0xff] %v3498
        %3691 = vst [vmem:[%s177 + $0x25e8] sm:$0xff] %v3499
        %3692 = vst [vmem:[%s177 + $0x25f0] sm:$0xff] %v3500
        %3693 = vst [vmem:[%s177 + $0x25f8] sm:$0xff] %v3501
        %3694 = vst [vmem:[%s177 + $0x2600] sm:$0xff] %v3470
        %3695 = vst [vmem:[%s177 + $0x2608] sm:$0xff] %v3471
        %3696 = vst [vmem:[%s177 + $0x2610] sm:$0xff] %v3472
        %3697 = vst [vmem:[%s177 + $0x2618] sm:$0xff] %v3473
        %3698 = vst [vmem:[%s177 + $0x2620] sm:$0xff] %v3474
        %3699 = vst [vmem:[%s177 + $0x2628] sm:$0xff] %v3475
        %3700 = vst [vmem:[%s177 + $0x2630] sm:$0xff] %v3476
        %3701 = vst [vmem:[%s177 + $0x2638] sm:$0xff] %v3477
        %3702 = vst [vmem:[%s177 + $0x2640] sm:$0xff] %v3478
        %3703 = vst [vmem:[%s177 + $0x2648] sm:$0xff] %v3479
        %3704 = vst [vmem:[%s177 + $0x2650] sm:$0xff] %v3480
        %3705 = vst [vmem:[%s177 + $0x2658] sm:$0xff] %v3481
        %3706 = vst [vmem:[%s177 + $0x2660] sm:$0xff] %v3482
        %3707 = vst [vmem:[%s177 + $0x2668] sm:$0xff] %v3483
        %3708 = vst [vmem:[%s177 + $0x2670] sm:$0xff] %v3484
        %3709 = vst [vmem:[%s177 + $0x2678] sm:$0xff] %v3485
        %3710 = vst [vmem:[%s177 + $0x2680] sm:$0xff] %v3486
        %3711 = vst [vmem:[%s177 + $0x2688] sm:$0xff] %v3487
        %3712 = vst [vmem:[%s177 + $0x2690] sm:$0xff] %v3488
        %3713 = vst [vmem:[%s177 + $0x2698] sm:$0xff] %v3489
        %3714 = vst [vmem:[%s177 + $0x26a0] sm:$0xff] %v3490
        %3715 = vst [vmem:[%s177 + $0x26a8] sm:$0xff] %v3491
        %3716 = vst [vmem:[%s177 + $0x26b0] sm:$0xff] %v3492
        %3717 = vst [vmem:[%s177 + $0x26b8] sm:$0xff] %v3493
        %3718 = vst [vmem:[%s177 + $0x26c0] sm:$0xff] %v3494
        %3719 = vst [vmem:[%s177 + $0x26c8] sm:$0xff] %v3495
        %3720 = vst [vmem:[%s177 + $0x26d0] sm:$0xff] %v3496
        %3721 = vst [vmem:[%s177 + $0x26d8] sm:$0xff] %v3497
        %3722 = vst [vmem:[%s177 + $0x26e0] sm:$0xff] %v3498
        %3723 = vst [vmem:[%s177 + $0x26e8] sm:$0xff] %v3499
        %3724 = vst [vmem:[%s177 + $0x26f0] sm:$0xff] %v3500
        %3725 = vst [vmem:[%s177 + $0x26f8] sm:$0xff] %v3501
        %3726 = vst [vmem:[%s177 + $0x2700] sm:$0xff] %v3470
        %3727 = vst [vmem:[%s177 + $0x2708] sm:$0xff] %v3471
        %3728 = vst [vmem:[%s177 + $0x2710] sm:$0xff] %v3472
        %3729 = vst [vmem:[%s177 + $0x2718] sm:$0xff] %v3473
        %3730 = vst [vmem:[%s177 + $0x2720] sm:$0xff] %v3474
        %3731 = vst [vmem:[%s177 + $0x2728] sm:$0xff] %v3475
        %3732 = vst [vmem:[%s177 + $0x2730] sm:$0xff] %v3476
        %3733 = vst [vmem:[%s177 + $0x2738] sm:$0xff] %v3477
        %3734 = vst [vmem:[%s177 + $0x2740] sm:$0xff] %v3478
        %3735 = vst [vmem:[%s177 + $0x2748] sm:$0xff] %v3479
        %3736 = vst [vmem:[%s177 + $0x2750] sm:$0xff] %v3480
        %3737 = vst [vmem:[%s177 + $0x2758] sm:$0xff] %v3481
        %3738 = vst [vmem:[%s177 + $0x2760] sm:$0xff] %v3482
        %3739 = vst [vmem:[%s177 + $0x2768] sm:$0xff] %v3483
        %3740 = vst [vmem:[%s177 + $0x2770] sm:$0xff] %v3484
        %3741 = vst [vmem:[%s177 + $0x2778] sm:$0xff] %v3485
        %3742 = vst [vmem:[%s177 + $0x2780] sm:$0xff] %v3486
        %3743 = vst [vmem:[%s177 + $0x2788] sm:$0xff] %v3487
        %3744 = vst [vmem:[%s177 + $0x2790] sm:$0xff] %v3488
        %3745 = vst [vmem:[%s177 + $0x2798] sm:$0xff] %v3489
        %3746 = vst [vmem:[%s177 + $0x27a0] sm:$0xff] %v3490
        %3747 = vst [vmem:[%s177 + $0x27a8] sm:$0xff] %v3491
        %3748 = vst [vmem:[%s177 + $0x27b0] sm:$0xff] %v3492
        %3749 = vst [vmem:[%s177 + $0x27b8] sm:$0xff] %v3493
        %3750 = vst [vmem:[%s177 + $0x27c0] sm:$0xff] %v3494
        %3751 = vst [vmem:[%s177 + $0x27c8] sm:$0xff] %v3495
        %3752 = vst [vmem:[%s177 + $0x27d0] sm:$0xff] %v3496
        %3753 = vst [vmem:[%s177 + $0x27d8] sm:$0xff] %v3497
        %3754 = vst [vmem:[%s177 + $0x27e0] sm:$0xff] %v3498
        %3755 = vst [vmem:[%s177 + $0x27e8] sm:$0xff] %v3499
        %3756 = vst [vmem:[%s177 + $0x27f0] sm:$0xff] %v3500
        %3757 = vst [vmem:[%s177 + $0x27f8] sm:$0xff] %v3501
        %v3758 = vperm.slane %v2286, 5
        %v3759 = vperm.slane %v2287, 5
        %v3760 = vperm.slane %v2288, 5
        %v3761 = vperm.slane %v2289, 5
        %v3762 = vperm.slane %v2290, 5
        %v3763 = vperm.slane %v2291, 5
        %v3764 = vperm.slane %v2292, 5
        %v3765 = vperm.slane %v2293, 5
        %v3766 = vperm.slane %v2294, 5
        %v3767 = vperm.slane %v2295, 5
        %v3768 = vperm.slane %v2296, 5
        %v3769 = vperm.slane %v2297, 5
        %v3770 = vperm.slane %v2298, 5
        %v3771 = vperm.slane %v2299, 5
        %v3772 = vperm.slane %v2300, 5
        %v3773 = vperm.slane %v2301, 5
        %v3774 = vperm.slane %v2302, 5
        %v3775 = vperm.slane %v2303, 5
        %v3776 = vperm.slane %v2304, 5
        %v3777 = vperm.slane %v2305, 5
        %v3778 = vperm.slane %v2306, 5
        %v3779 = vperm.slane %v2307, 5
        %v3780 = vperm.slane %v2308, 5
        %v3781 = vperm.slane %v2309, 5
        %v3782 = vperm.slane %v2310, 5
        %v3783 = vperm.slane %v2311, 5
        %v3784 = vperm.slane %v2312, 5
        %v3785 = vperm.slane %v2313, 5
        %v3786 = vperm.slane %v2314, 5
        %v3787 = vperm.slane %v2315, 5
        %v3788 = vperm.slane %v2316, 5
        %v3789 = vperm.slane %v2317, 5
        %3790 = vst [vmem:[%s177 + $0x2800] sm:$0xff] %v3758
        %3791 = vst [vmem:[%s177 + $0x2808] sm:$0xff] %v3759
        %3792 = vst [vmem:[%s177 + $0x2810] sm:$0xff] %v3760
        %3793 = vst [vmem:[%s177 + $0x2818] sm:$0xff] %v3761
        %3794 = vst [vmem:[%s177 + $0x2820] sm:$0xff] %v3762
        %3795 = vst [vmem:[%s177 + $0x2828] sm:$0xff] %v3763
        %3796 = vst [vmem:[%s177 + $0x2830] sm:$0xff] %v3764
        %3797 = vst [vmem:[%s177 + $0x2838] sm:$0xff] %v3765
        %3798 = vst [vmem:[%s177 + $0x2840] sm:$0xff] %v3766
        %3799 = vst [vmem:[%s177 + $0x2848] sm:$0xff] %v3767
        %3800 = vst [vmem:[%s177 + $0x2850] sm:$0xff] %v3768
        %3801 = vst [vmem:[%s177 + $0x2858] sm:$0xff] %v3769
        %3802 = vst [vmem:[%s177 + $0x2860] sm:$0xff] %v3770
        %3803 = vst [vmem:[%s177 + $0x2868] sm:$0xff] %v3771
        %3804 = vst [vmem:[%s177 + $0x2870] sm:$0xff] %v3772
        %3805 = vst [vmem:[%s177 + $0x2878] sm:$0xff] %v3773
        %3806 = vst [vmem:[%s177 + $0x2880] sm:$0xff] %v3774
        %3807 = vst [vmem:[%s177 + $0x2888] sm:$0xff] %v3775
        %3808 = vst [vmem:[%s177 + $0x2890] sm:$0xff] %v3776
        %3809 = vst [vmem:[%s177 + $0x2898] sm:$0xff] %v3777
        %3810 = vst [vmem:[%s177 + $0x28a0] sm:$0xff] %v3778
        %3811 = vst [vmem:[%s177 + $0x28a8] sm:$0xff] %v3779
        %3812 = vst [vmem:[%s177 + $0x28b0] sm:$0xff] %v3780
        %3813 = vst [vmem:[%s177 + $0x28b8] sm:$0xff] %v3781
        %3814 = vst [vmem:[%s177 + $0x28c0] sm:$0xff] %v3782
        %3815 = vst [vmem:[%s177 + $0x28c8] sm:$0xff] %v3783
        %3816 = vst [vmem:[%s177 + $0x28d0] sm:$0xff] %v3784
        %3817 = vst [vmem:[%s177 + $0x28d8] sm:$0xff] %v3785
        %3818 = vst [vmem:[%s177 + $0x28e0] sm:$0xff] %v3786
        %3819 = vst [vmem:[%s177 + $0x28e8] sm:$0xff] %v3787
        %3820 = vst [vmem:[%s177 + $0x28f0] sm:$0xff] %v3788
        %3821 = vst [vmem:[%s177 + $0x28f8] sm:$0xff] %v3789
        %3822 = vst [vmem:[%s177 + $0x2900] sm:$0xff] %v3758
        %3823 = vst [vmem:[%s177 + $0x2908] sm:$0xff] %v3759
        %3824 = vst [vmem:[%s177 + $0x2910] sm:$0xff] %v3760
        %3825 = vst [vmem:[%s177 + $0x2918] sm:$0xff] %v3761
        %3826 = vst [vmem:[%s177 + $0x2920] sm:$0xff] %v3762
        %3827 = vst [vmem:[%s177 + $0x2928] sm:$0xff] %v3763
        %3828 = vst [vmem:[%s177 + $0x2930] sm:$0xff] %v3764
        %3829 = vst [vmem:[%s177 + $0x2938] sm:$0xff] %v3765
        %3830 = vst [vmem:[%s177 + $0x2940] sm:$0xff] %v3766
        %3831 = vst [vmem:[%s177 + $0x2948] sm:$0xff] %v3767
        %3832 = vst [vmem:[%s177 + $0x2950] sm:$0xff] %v3768
        %3833 = vst [vmem:[%s177 + $0x2958] sm:$0xff] %v3769
        %3834 = vst [vmem:[%s177 + $0x2960] sm:$0xff] %v3770
        %3835 = vst [vmem:[%s177 + $0x2968] sm:$0xff] %v3771
        %3836 = vst [vmem:[%s177 + $0x2970] sm:$0xff] %v3772
        %3837 = vst [vmem:[%s177 + $0x2978] sm:$0xff] %v3773
        %3838 = vst [vmem:[%s177 + $0x2980] sm:$0xff] %v3774
        %3839 = vst [vmem:[%s177 + $0x2988] sm:$0xff] %v3775
        %3840 = vst [vmem:[%s177 + $0x2990] sm:$0xff] %v3776
        %3841 = vst [vmem:[%s177 + $0x2998] sm:$0xff] %v3777
        %3842 = vst [vmem:[%s177 + $0x29a0] sm:$0xff] %v3778
        %3843 = vst [vmem:[%s177 + $0x29a8] sm:$0xff] %v3779
        %3844 = vst [vmem:[%s177 + $0x29b0] sm:$0xff] %v3780
        %3845 = vst [vmem:[%s177 + $0x29b8] sm:$0xff] %v3781
        %3846 = vst [vmem:[%s177 + $0x29c0] sm:$0xff] %v3782
        %3847 = vst [vmem:[%s177 + $0x29c8] sm:$0xff] %v3783
        %3848 = vst [vmem:[%s177 + $0x29d0] sm:$0xff] %v3784
        %3849 = vst [vmem:[%s177 + $0x29d8] sm:$0xff] %v3785
        %3850 = vst [vmem:[%s177 + $0x29e0] sm:$0xff] %v3786
        %3851 = vst [vmem:[%s177 + $0x29e8] sm:$0xff] %v3787
        %3852 = vst [vmem:[%s177 + $0x29f0] sm:$0xff] %v3788
        %3853 = vst [vmem:[%s177 + $0x29f8] sm:$0xff] %v3789
        %3854 = vst [vmem:[%s177 + $0x2a00] sm:$0xff] %v3758
        %3855 = vst [vmem:[%s177 + $0x2a08] sm:$0xff] %v3759
        %3856 = vst [vmem:[%s177 + $0x2a10] sm:$0xff] %v3760
        %3857 = vst [vmem:[%s177 + $0x2a18] sm:$0xff] %v3761
        %3858 = vst [vmem:[%s177 + $0x2a20] sm:$0xff] %v3762
        %3859 = vst [vmem:[%s177 + $0x2a28] sm:$0xff] %v3763
        %3860 = vst [vmem:[%s177 + $0x2a30] sm:$0xff] %v3764
        %3861 = vst [vmem:[%s177 + $0x2a38] sm:$0xff] %v3765
        %3862 = vst [vmem:[%s177 + $0x2a40] sm:$0xff] %v3766
        %3863 = vst [vmem:[%s177 + $0x2a48] sm:$0xff] %v3767
        %3864 = vst [vmem:[%s177 + $0x2a50] sm:$0xff] %v3768
        %3865 = vst [vmem:[%s177 + $0x2a58] sm:$0xff] %v3769
        %3866 = vst [vmem:[%s177 + $0x2a60] sm:$0xff] %v3770
        %3867 = vst [vmem:[%s177 + $0x2a68] sm:$0xff] %v3771
        %3868 = vst [vmem:[%s177 + $0x2a70] sm:$0xff] %v3772
        %3869 = vst [vmem:[%s177 + $0x2a78] sm:$0xff] %v3773
        %3870 = vst [vmem:[%s177 + $0x2a80] sm:$0xff] %v3774
        %3871 = vst [vmem:[%s177 + $0x2a88] sm:$0xff] %v3775
        %3872 = vst [vmem:[%s177 + $0x2a90] sm:$0xff] %v3776
        %3873 = vst [vmem:[%s177 + $0x2a98] sm:$0xff] %v3777
        %3874 = vst [vmem:[%s177 + $0x2aa0] sm:$0xff] %v3778
        %3875 = vst [vmem:[%s177 + $0x2aa8] sm:$0xff] %v3779
        %3876 = vst [vmem:[%s177 + $0x2ab0] sm:$0xff] %v3780
        %3877 = vst [vmem:[%s177 + $0x2ab8] sm:$0xff] %v3781
        %3878 = vst [vmem:[%s177 + $0x2ac0] sm:$0xff] %v3782
        %3879 = vst [vmem:[%s177 + $0x2ac8] sm:$0xff] %v3783
        %3880 = vst [vmem:[%s177 + $0x2ad0] sm:$0xff] %v3784
        %3881 = vst [vmem:[%s177 + $0x2ad8] sm:$0xff] %v3785
        %3882 = vst [vmem:[%s177 + $0x2ae0] sm:$0xff] %v3786
        %3883 = vst [vmem:[%s177 + $0x2ae8] sm:$0xff] %v3787
        %3884 = vst [vmem:[%s177 + $0x2af0] sm:$0xff] %v3788
        %3885 = vst [vmem:[%s177 + $0x2af8] sm:$0xff] %v3789
        %3886 = vst [vmem:[%s177 + $0x2b00] sm:$0xff] %v3758
        %3887 = vst [vmem:[%s177 + $0x2b08] sm:$0xff] %v3759
        %3888 = vst [vmem:[%s177 + $0x2b10] sm:$0xff] %v3760
        %3889 = vst [vmem:[%s177 + $0x2b18] sm:$0xff] %v3761
        %3890 = vst [vmem:[%s177 + $0x2b20] sm:$0xff] %v3762
        %3891 = vst [vmem:[%s177 + $0x2b28] sm:$0xff] %v3763
        %3892 = vst [vmem:[%s177 + $0x2b30] sm:$0xff] %v3764
        %3893 = vst [vmem:[%s177 + $0x2b38] sm:$0xff] %v3765
        %3894 = vst [vmem:[%s177 + $0x2b40] sm:$0xff] %v3766
        %3895 = vst [vmem:[%s177 + $0x2b48] sm:$0xff] %v3767
        %3896 = vst [vmem:[%s177 + $0x2b50] sm:$0xff] %v3768
        %3897 = vst [vmem:[%s177 + $0x2b58] sm:$0xff] %v3769
        %3898 = vst [vmem:[%s177 + $0x2b60] sm:$0xff] %v3770
        %3899 = vst [vmem:[%s177 + $0x2b68] sm:$0xff] %v3771
        %3900 = vst [vmem:[%s177 + $0x2b70] sm:$0xff] %v3772
        %3901 = vst [vmem:[%s177 + $0x2b78] sm:$0xff] %v3773
        %3902 = vst [vmem:[%s177 + $0x2b80] sm:$0xff] %v3774
        %3903 = vst [vmem:[%s177 + $0x2b88] sm:$0xff] %v3775
        %3904 = vst [vmem:[%s177 + $0x2b90] sm:$0xff] %v3776
        %3905 = vst [vmem:[%s177 + $0x2b98] sm:$0xff] %v3777
        %3906 = vst [vmem:[%s177 + $0x2ba0] sm:$0xff] %v3778
        %3907 = vst [vmem:[%s177 + $0x2ba8] sm:$0xff] %v3779
        %3908 = vst [vmem:[%s177 + $0x2bb0] sm:$0xff] %v3780
        %3909 = vst [vmem:[%s177 + $0x2bb8] sm:$0xff] %v3781
        %3910 = vst [vmem:[%s177 + $0x2bc0] sm:$0xff] %v3782
        %3911 = vst [vmem:[%s177 + $0x2bc8] sm:$0xff] %v3783
        %3912 = vst [vmem:[%s177 + $0x2bd0] sm:$0xff] %v3784
        %3913 = vst [vmem:[%s177 + $0x2bd8] sm:$0xff] %v3785
        %3914 = vst [vmem:[%s177 + $0x2be0] sm:$0xff] %v3786
        %3915 = vst [vmem:[%s177 + $0x2be8] sm:$0xff] %v3787
        %3916 = vst [vmem:[%s177 + $0x2bf0] sm:$0xff] %v3788
        %3917 = vst [vmem:[%s177 + $0x2bf8] sm:$0xff] %v3789
        %3918 = vst [vmem:[%s177 + $0x2c00] sm:$0xff] %v3758
        %3919 = vst [vmem:[%s177 + $0x2c08] sm:$0xff] %v3759
        %3920 = vst [vmem:[%s177 + $0x2c10] sm:$0xff] %v3760
        %3921 = vst [vmem:[%s177 + $0x2c18] sm:$0xff] %v3761
        %3922 = vst [vmem:[%s177 + $0x2c20] sm:$0xff] %v3762
        %3923 = vst [vmem:[%s177 + $0x2c28] sm:$0xff] %v3763
        %3924 = vst [vmem:[%s177 + $0x2c30] sm:$0xff] %v3764
        %3925 = vst [vmem:[%s177 + $0x2c38] sm:$0xff] %v3765
        %3926 = vst [vmem:[%s177 + $0x2c40] sm:$0xff] %v3766
        %3927 = vst [vmem:[%s177 + $0x2c48] sm:$0xff] %v3767
        %3928 = vst [vmem:[%s177 + $0x2c50] sm:$0xff] %v3768
        %3929 = vst [vmem:[%s177 + $0x2c58] sm:$0xff] %v3769
        %3930 = vst [vmem:[%s177 + $0x2c60] sm:$0xff] %v3770
        %3931 = vst [vmem:[%s177 + $0x2c68] sm:$0xff] %v3771
        %3932 = vst [vmem:[%s177 + $0x2c70] sm:$0xff] %v3772
        %3933 = vst [vmem:[%s177 + $0x2c78] sm:$0xff] %v3773
        %3934 = vst [vmem:[%s177 + $0x2c80] sm:$0xff] %v3774
        %3935 = vst [vmem:[%s177 + $0x2c88] sm:$0xff] %v3775
        %3936 = vst [vmem:[%s177 + $0x2c90] sm:$0xff] %v3776
        %3937 = vst [vmem:[%s177 + $0x2c98] sm:$0xff] %v3777
        %3938 = vst [vmem:[%s177 + $0x2ca0] sm:$0xff] %v3778
        %3939 = vst [vmem:[%s177 + $0x2ca8] sm:$0xff] %v3779
        %3940 = vst [vmem:[%s177 + $0x2cb0] sm:$0xff] %v3780
        %3941 = vst [vmem:[%s177 + $0x2cb8] sm:$0xff] %v3781
        %3942 = vst [vmem:[%s177 + $0x2cc0] sm:$0xff] %v3782
        %3943 = vst [vmem:[%s177 + $0x2cc8] sm:$0xff] %v3783
        %3944 = vst [vmem:[%s177 + $0x2cd0] sm:$0xff] %v3784
        %3945 = vst [vmem:[%s177 + $0x2cd8] sm:$0xff] %v3785
        %3946 = vst [vmem:[%s177 + $0x2ce0] sm:$0xff] %v3786
        %3947 = vst [vmem:[%s177 + $0x2ce8] sm:$0xff] %v3787
        %3948 = vst [vmem:[%s177 + $0x2cf0] sm:$0xff] %v3788
        %3949 = vst [vmem:[%s177 + $0x2cf8] sm:$0xff] %v3789
        %3950 = vst [vmem:[%s177 + $0x2d00] sm:$0xff] %v3758
        %3951 = vst [vmem:[%s177 + $0x2d08] sm:$0xff] %v3759
        %3952 = vst [vmem:[%s177 + $0x2d10] sm:$0xff] %v3760
        %3953 = vst [vmem:[%s177 + $0x2d18] sm:$0xff] %v3761
        %3954 = vst [vmem:[%s177 + $0x2d20] sm:$0xff] %v3762
        %3955 = vst [vmem:[%s177 + $0x2d28] sm:$0xff] %v3763
        %3956 = vst [vmem:[%s177 + $0x2d30] sm:$0xff] %v3764
        %3957 = vst [vmem:[%s177 + $0x2d38] sm:$0xff] %v3765
        %3958 = vst [vmem:[%s177 + $0x2d40] sm:$0xff] %v3766
        %3959 = vst [vmem:[%s177 + $0x2d48] sm:$0xff] %v3767
        %3960 = vst [vmem:[%s177 + $0x2d50] sm:$0xff] %v3768
        %3961 = vst [vmem:[%s177 + $0x2d58] sm:$0xff] %v3769
        %3962 = vst [vmem:[%s177 + $0x2d60] sm:$0xff] %v3770
        %3963 = vst [vmem:[%s177 + $0x2d68] sm:$0xff] %v3771
        %3964 = vst [vmem:[%s177 + $0x2d70] sm:$0xff] %v3772
        %3965 = vst [vmem:[%s177 + $0x2d78] sm:$0xff] %v3773
        %3966 = vst [vmem:[%s177 + $0x2d80] sm:$0xff] %v3774
        %3967 = vst [vmem:[%s177 + $0x2d88] sm:$0xff] %v3775
        %3968 = vst [vmem:[%s177 + $0x2d90] sm:$0xff] %v3776
        %3969 = vst [vmem:[%s177 + $0x2d98] sm:$0xff] %v3777
        %3970 = vst [vmem:[%s177 + $0x2da0] sm:$0xff] %v3778
        %3971 = vst [vmem:[%s177 + $0x2da8] sm:$0xff] %v3779
        %3972 = vst [vmem:[%s177 + $0x2db0] sm:$0xff] %v3780
        %3973 = vst [vmem:[%s177 + $0x2db8] sm:$0xff] %v3781
        %3974 = vst [vmem:[%s177 + $0x2dc0] sm:$0xff] %v3782
        %3975 = vst [vmem:[%s177 + $0x2dc8] sm:$0xff] %v3783
        %3976 = vst [vmem:[%s177 + $0x2dd0] sm:$0xff] %v3784
        %3977 = vst [vmem:[%s177 + $0x2dd8] sm:$0xff] %v3785
        %3978 = vst [vmem:[%s177 + $0x2de0] sm:$0xff] %v3786
        %3979 = vst [vmem:[%s177 + $0x2de8] sm:$0xff] %v3787
        %3980 = vst [vmem:[%s177 + $0x2df0] sm:$0xff] %v3788
        %3981 = vst [vmem:[%s177 + $0x2df8] sm:$0xff] %v3789
        %3982 = vst [vmem:[%s177 + $0x2e00] sm:$0xff] %v3758
        %3983 = vst [vmem:[%s177 + $0x2e08] sm:$0xff] %v3759
        %3984 = vst [vmem:[%s177 + $0x2e10] sm:$0xff] %v3760
        %3985 = vst [vmem:[%s177 + $0x2e18] sm:$0xff] %v3761
        %3986 = vst [vmem:[%s177 + $0x2e20] sm:$0xff] %v3762
        %3987 = vst [vmem:[%s177 + $0x2e28] sm:$0xff] %v3763
        %3988 = vst [vmem:[%s177 + $0x2e30] sm:$0xff] %v3764
        %3989 = vst [vmem:[%s177 + $0x2e38] sm:$0xff] %v3765
        %3990 = vst [vmem:[%s177 + $0x2e40] sm:$0xff] %v3766
        %3991 = vst [vmem:[%s177 + $0x2e48] sm:$0xff] %v3767
        %3992 = vst [vmem:[%s177 + $0x2e50] sm:$0xff] %v3768
        %3993 = vst [vmem:[%s177 + $0x2e58] sm:$0xff] %v3769
        %3994 = vst [vmem:[%s177 + $0x2e60] sm:$0xff] %v3770
        %3995 = vst [vmem:[%s177 + $0x2e68] sm:$0xff] %v3771
        %3996 = vst [vmem:[%s177 + $0x2e70] sm:$0xff] %v3772
        %3997 = vst [vmem:[%s177 + $0x2e78] sm:$0xff] %v3773
        %3998 = vst [vmem:[%s177 + $0x2e80] sm:$0xff] %v3774
        %3999 = vst [vmem:[%s177 + $0x2e88] sm:$0xff] %v3775
        %4000 = vst [vmem:[%s177 + $0x2e90] sm:$0xff] %v3776
        %4001 = vst [vmem:[%s177 + $0x2e98] sm:$0xff] %v3777
        %4002 = vst [vmem:[%s177 + $0x2ea0] sm:$0xff] %v3778
        %4003 = vst [vmem:[%s177 + $0x2ea8] sm:$0xff] %v3779
        %4004 = vst [vmem:[%s177 + $0x2eb0] sm:$0xff] %v3780
        %4005 = vst [vmem:[%s177 + $0x2eb8] sm:$0xff] %v3781
        %4006 = vst [vmem:[%s177 + $0x2ec0] sm:$0xff] %v3782
        %4007 = vst [vmem:[%s177 + $0x2ec8] sm:$0xff] %v3783
        %4008 = vst [vmem:[%s177 + $0x2ed0] sm:$0xff] %v3784
        %4009 = vst [vmem:[%s177 + $0x2ed8] sm:$0xff] %v3785
        %4010 = vst [vmem:[%s177 + $0x2ee0] sm:$0xff] %v3786
        %4011 = vst [vmem:[%s177 + $0x2ee8] sm:$0xff] %v3787
        %4012 = vst [vmem:[%s177 + $0x2ef0] sm:$0xff] %v3788
        %4013 = vst [vmem:[%s177 + $0x2ef8] sm:$0xff] %v3789
        %4014 = vst [vmem:[%s177 + $0x2f00] sm:$0xff] %v3758
        %4015 = vst [vmem:[%s177 + $0x2f08] sm:$0xff] %v3759
        %4016 = vst [vmem:[%s177 + $0x2f10] sm:$0xff] %v3760
        %4017 = vst [vmem:[%s177 + $0x2f18] sm:$0xff] %v3761
        %4018 = vst [vmem:[%s177 + $0x2f20] sm:$0xff] %v3762
        %4019 = vst [vmem:[%s177 + $0x2f28] sm:$0xff] %v3763
        %4020 = vst [vmem:[%s177 + $0x2f30] sm:$0xff] %v3764
        %4021 = vst [vmem:[%s177 + $0x2f38] sm:$0xff] %v3765
        %4022 = vst [vmem:[%s177 + $0x2f40] sm:$0xff] %v3766
        %4023 = vst [vmem:[%s177 + $0x2f48] sm:$0xff] %v3767
        %4024 = vst [vmem:[%s177 + $0x2f50] sm:$0xff] %v3768
        %4025 = vst [vmem:[%s177 + $0x2f58] sm:$0xff] %v3769
        %4026 = vst [vmem:[%s177 + $0x2f60] sm:$0xff] %v3770
        %4027 = vst [vmem:[%s177 + $0x2f68] sm:$0xff] %v3771
        %4028 = vst [vmem:[%s177 + $0x2f70] sm:$0xff] %v3772
        %4029 = vst [vmem:[%s177 + $0x2f78] sm:$0xff] %v3773
        %4030 = vst [vmem:[%s177 + $0x2f80] sm:$0xff] %v3774
        %4031 = vst [vmem:[%s177 + $0x2f88] sm:$0xff] %v3775
        %4032 = vst [vmem:[%s177 + $0x2f90] sm:$0xff] %v3776
        %4033 = vst [vmem:[%s177 + $0x2f98] sm:$0xff] %v3777
        %4034 = vst [vmem:[%s177 + $0x2fa0] sm:$0xff] %v3778
        %4035 = vst [vmem:[%s177 + $0x2fa8] sm:$0xff] %v3779
        %4036 = vst [vmem:[%s177 + $0x2fb0] sm:$0xff] %v3780
        %4037 = vst [vmem:[%s177 + $0x2fb8] sm:$0xff] %v3781
        %4038 = vst [vmem:[%s177 + $0x2fc0] sm:$0xff] %v3782
        %4039 = vst [vmem:[%s177 + $0x2fc8] sm:$0xff] %v3783
        %4040 = vst [vmem:[%s177 + $0x2fd0] sm:$0xff] %v3784
        %4041 = vst [vmem:[%s177 + $0x2fd8] sm:$0xff] %v3785
        %4042 = vst [vmem:[%s177 + $0x2fe0] sm:$0xff] %v3786
        %4043 = vst [vmem:[%s177 + $0x2fe8] sm:$0xff] %v3787
        %4044 = vst [vmem:[%s177 + $0x2ff0] sm:$0xff] %v3788
        %4045 = vst [vmem:[%s177 + $0x2ff8] sm:$0xff] %v3789
        %v4046 = vperm.slane %v2286, 6
        %v4047 = vperm.slane %v2287, 6
        %v4048 = vperm.slane %v2288, 6
        %v4049 = vperm.slane %v2289, 6
        %v4050 = vperm.slane %v2290, 6
        %v4051 = vperm.slane %v2291, 6
        %v4052 = vperm.slane %v2292, 6
        %v4053 = vperm.slane %v2293, 6
        %v4054 = vperm.slane %v2294, 6
        %v4055 = vperm.slane %v2295, 6
        %v4056 = vperm.slane %v2296, 6
        %v4057 = vperm.slane %v2297, 6
        %v4058 = vperm.slane %v2298, 6
        %v4059 = vperm.slane %v2299, 6
        %v4060 = vperm.slane %v2300, 6
        %v4061 = vperm.slane %v2301, 6
        %v4062 = vperm.slane %v2302, 6
        %v4063 = vperm.slane %v2303, 6
        %v4064 = vperm.slane %v2304, 6
        %v4065 = vperm.slane %v2305, 6
        %v4066 = vperm.slane %v2306, 6
        %v4067 = vperm.slane %v2307, 6
        %v4068 = vperm.slane %v2308, 6
        %v4069 = vperm.slane %v2309, 6
        %v4070 = vperm.slane %v2310, 6
        %v4071 = vperm.slane %v2311, 6
        %v4072 = vperm.slane %v2312, 6
        %v4073 = vperm.slane %v2313, 6
        %v4074 = vperm.slane %v2314, 6
        %v4075 = vperm.slane %v2315, 6
        %v4076 = vperm.slane %v2316, 6
        %v4077 = vperm.slane %v2317, 6
        %4078 = vst [vmem:[%s177 + $0x3000] sm:$0xff] %v4046
        %4079 = vst [vmem:[%s177 + $0x3008] sm:$0xff] %v4047
        %4080 = vst [vmem:[%s177 + $0x3010] sm:$0xff] %v4048
        %4081 = vst [vmem:[%s177 + $0x3018] sm:$0xff] %v4049
        %4082 = vst [vmem:[%s177 + $0x3020] sm:$0xff] %v4050
        %4083 = vst [vmem:[%s177 + $0x3028] sm:$0xff] %v4051
        %4084 = vst [vmem:[%s177 + $0x3030] sm:$0xff] %v4052
        %4085 = vst [vmem:[%s177 + $0x3038] sm:$0xff] %v4053
        %4086 = vst [vmem:[%s177 + $0x3040] sm:$0xff] %v4054
        %4087 = vst [vmem:[%s177 + $0x3048] sm:$0xff] %v4055
        %4088 = vst [vmem:[%s177 + $0x3050] sm:$0xff] %v4056
        %4089 = vst [vmem:[%s177 + $0x3058] sm:$0xff] %v4057
        %4090 = vst [vmem:[%s177 + $0x3060] sm:$0xff] %v4058
        %4091 = vst [vmem:[%s177 + $0x3068] sm:$0xff] %v4059
        %4092 = vst [vmem:[%s177 + $0x3070] sm:$0xff] %v4060
        %4093 = vst [vmem:[%s177 + $0x3078] sm:$0xff] %v4061
        %4094 = vst [vmem:[%s177 + $0x3080] sm:$0xff] %v4062
        %4095 = vst [vmem:[%s177 + $0x3088] sm:$0xff] %v4063
        %4096 = vst [vmem:[%s177 + $0x3090] sm:$0xff] %v4064
        %4097 = vst [vmem:[%s177 + $0x3098] sm:$0xff] %v4065
        %4098 = vst [vmem:[%s177 + $0x30a0] sm:$0xff] %v4066
        %4099 = vst [vmem:[%s177 + $0x30a8] sm:$0xff] %v4067
        %4100 = vst [vmem:[%s177 + $0x30b0] sm:$0xff] %v4068
        %4101 = vst [vmem:[%s177 + $0x30b8] sm:$0xff] %v4069
        %4102 = vst [vmem:[%s177 + $0x30c0] sm:$0xff] %v4070
        %4103 = vst [vmem:[%s177 + $0x30c8] sm:$0xff] %v4071
        %4104 = vst [vmem:[%s177 + $0x30d0] sm:$0xff] %v4072
        %4105 = vst [vmem:[%s177 + $0x30d8] sm:$0xff] %v4073
        %4106 = vst [vmem:[%s177 + $0x30e0] sm:$0xff] %v4074
        %4107 = vst [vmem:[%s177 + $0x30e8] sm:$0xff] %v4075
        %4108 = vst [vmem:[%s177 + $0x30f0] sm:$0xff] %v4076
        %4109 = vst [vmem:[%s177 + $0x30f8] sm:$0xff] %v4077
        %4110 = vst [vmem:[%s177 + $0x3100] sm:$0xff] %v4046
        %4111 = vst [vmem:[%s177 + $0x3108] sm:$0xff] %v4047
        %4112 = vst [vmem:[%s177 + $0x3110] sm:$0xff] %v4048
        %4113 = vst [vmem:[%s177 + $0x3118] sm:$0xff] %v4049
        %4114 = vst [vmem:[%s177 + $0x3120] sm:$0xff] %v4050
        %4115 = vst [vmem:[%s177 + $0x3128] sm:$0xff] %v4051
        %4116 = vst [vmem:[%s177 + $0x3130] sm:$0xff] %v4052
        %4117 = vst [vmem:[%s177 + $0x3138] sm:$0xff] %v4053
        %4118 = vst [vmem:[%s177 + $0x3140] sm:$0xff] %v4054
        %4119 = vst [vmem:[%s177 + $0x3148] sm:$0xff] %v4055
        %4120 = vst [vmem:[%s177 + $0x3150] sm:$0xff] %v4056
        %4121 = vst [vmem:[%s177 + $0x3158] sm:$0xff] %v4057
        %4122 = vst [vmem:[%s177 + $0x3160] sm:$0xff] %v4058
        %4123 = vst [vmem:[%s177 + $0x3168] sm:$0xff] %v4059
        %4124 = vst [vmem:[%s177 + $0x3170] sm:$0xff] %v4060
        %4125 = vst [vmem:[%s177 + $0x3178] sm:$0xff] %v4061
        %4126 = vst [vmem:[%s177 + $0x3180] sm:$0xff] %v4062
        %4127 = vst [vmem:[%s177 + $0x3188] sm:$0xff] %v4063
        %4128 = vst [vmem:[%s177 + $0x3190] sm:$0xff] %v4064
        %4129 = vst [vmem:[%s177 + $0x3198] sm:$0xff] %v4065
        %4130 = vst [vmem:[%s177 + $0x31a0] sm:$0xff] %v4066
        %4131 = vst [vmem:[%s177 + $0x31a8] sm:$0xff] %v4067
        %4132 = vst [vmem:[%s177 + $0x31b0] sm:$0xff] %v4068
        %4133 = vst [vmem:[%s177 + $0x31b8] sm:$0xff] %v4069
        %4134 = vst [vmem:[%s177 + $0x31c0] sm:$0xff] %v4070
        %4135 = vst [vmem:[%s177 + $0x31c8] sm:$0xff] %v4071
        %4136 = vst [vmem:[%s177 + $0x31d0] sm:$0xff] %v4072
        %4137 = vst [vmem:[%s177 + $0x31d8] sm:$0xff] %v4073
        %4138 = vst [vmem:[%s177 + $0x31e0] sm:$0xff] %v4074
        %4139 = vst [vmem:[%s177 + $0x31e8] sm:$0xff] %v4075
        %4140 = vst [vmem:[%s177 + $0x31f0] sm:$0xff] %v4076
        %4141 = vst [vmem:[%s177 + $0x31f8] sm:$0xff] %v4077
        %4142 = vst [vmem:[%s177 + $0x3200] sm:$0xff] %v4046
        %4143 = vst [vmem:[%s177 + $0x3208] sm:$0xff] %v4047
        %4144 = vst [vmem:[%s177 + $0x3210] sm:$0xff] %v4048
        %4145 = vst [vmem:[%s177 + $0x3218] sm:$0xff] %v4049
        %4146 = vst [vmem:[%s177 + $0x3220] sm:$0xff] %v4050
        %4147 = vst [vmem:[%s177 + $0x3228] sm:$0xff] %v4051
        %4148 = vst [vmem:[%s177 + $0x3230] sm:$0xff] %v4052
        %4149 = vst [vmem:[%s177 + $0x3238] sm:$0xff] %v4053
        %4150 = vst [vmem:[%s177 + $0x3240] sm:$0xff] %v4054
        %4151 = vst [vmem:[%s177 + $0x3248] sm:$0xff] %v4055
        %4152 = vst [vmem:[%s177 + $0x3250] sm:$0xff] %v4056
        %4153 = vst [vmem:[%s177 + $0x3258] sm:$0xff] %v4057
        %4154 = vst [vmem:[%s177 + $0x3260] sm:$0xff] %v4058
        %4155 = vst [vmem:[%s177 + $0x3268] sm:$0xff] %v4059
        %4156 = vst [vmem:[%s177 + $0x3270] sm:$0xff] %v4060
        %4157 = vst [vmem:[%s177 + $0x3278] sm:$0xff] %v4061
        %4158 = vst [vmem:[%s177 + $0x3280] sm:$0xff] %v4062
        %4159 = vst [vmem:[%s177 + $0x3288] sm:$0xff] %v4063
        %4160 = vst [vmem:[%s177 + $0x3290] sm:$0xff] %v4064
        %4161 = vst [vmem:[%s177 + $0x3298] sm:$0xff] %v4065
        %4162 = vst [vmem:[%s177 + $0x32a0] sm:$0xff] %v4066
        %4163 = vst [vmem:[%s177 + $0x32a8] sm:$0xff] %v4067
        %4164 = vst [vmem:[%s177 + $0x32b0] sm:$0xff] %v4068
        %4165 = vst [vmem:[%s177 + $0x32b8] sm:$0xff] %v4069
        %4166 = vst [vmem:[%s177 + $0x32c0] sm:$0xff] %v4070
        %4167 = vst [vmem:[%s177 + $0x32c8] sm:$0xff] %v4071
        %4168 = vst [vmem:[%s177 + $0x32d0] sm:$0xff] %v4072
        %4169 = vst [vmem:[%s177 + $0x32d8] sm:$0xff] %v4073
        %4170 = vst [vmem:[%s177 + $0x32e0] sm:$0xff] %v4074
        %4171 = vst [vmem:[%s177 + $0x32e8] sm:$0xff] %v4075
        %4172 = vst [vmem:[%s177 + $0x32f0] sm:$0xff] %v4076
        %4173 = vst [vmem:[%s177 + $0x32f8] sm:$0xff] %v4077
        %4174 = vst [vmem:[%s177 + $0x3300] sm:$0xff] %v4046
        %4175 = vst [vmem:[%s177 + $0x3308] sm:$0xff] %v4047
        %4176 = vst [vmem:[%s177 + $0x3310] sm:$0xff] %v4048
        %4177 = vst [vmem:[%s177 + $0x3318] sm:$0xff] %v4049
        %4178 = vst [vmem:[%s177 + $0x3320] sm:$0xff] %v4050
        %4179 = vst [vmem:[%s177 + $0x3328] sm:$0xff] %v4051
        %4180 = vst [vmem:[%s177 + $0x3330] sm:$0xff] %v4052
        %4181 = vst [vmem:[%s177 + $0x3338] sm:$0xff] %v4053
        %4182 = vst [vmem:[%s177 + $0x3340] sm:$0xff] %v4054
        %4183 = vst [vmem:[%s177 + $0x3348] sm:$0xff] %v4055
        %4184 = vst [vmem:[%s177 + $0x3350] sm:$0xff] %v4056
        %4185 = vst [vmem:[%s177 + $0x3358] sm:$0xff] %v4057
        %4186 = vst [vmem:[%s177 + $0x3360] sm:$0xff] %v4058
        %4187 = vst [vmem:[%s177 + $0x3368] sm:$0xff] %v4059
        %4188 = vst [vmem:[%s177 + $0x3370] sm:$0xff] %v4060
        %4189 = vst [vmem:[%s177 + $0x3378] sm:$0xff] %v4061
        %4190 = vst [vmem:[%s177 + $0x3380] sm:$0xff] %v4062
        %4191 = vst [vmem:[%s177 + $0x3388] sm:$0xff] %v4063
        %4192 = vst [vmem:[%s177 + $0x3390] sm:$0xff] %v4064
        %4193 = vst [vmem:[%s177 + $0x3398] sm:$0xff] %v4065
        %4194 = vst [vmem:[%s177 + $0x33a0] sm:$0xff] %v4066
        %4195 = vst [vmem:[%s177 + $0x33a8] sm:$0xff] %v4067
        %4196 = vst [vmem:[%s177 + $0x33b0] sm:$0xff] %v4068
        %4197 = vst [vmem:[%s177 + $0x33b8] sm:$0xff] %v4069
        %4198 = vst [vmem:[%s177 + $0x33c0] sm:$0xff] %v4070
        %4199 = vst [vmem:[%s177 + $0x33c8] sm:$0xff] %v4071
        %4200 = vst [vmem:[%s177 + $0x33d0] sm:$0xff] %v4072
        %4201 = vst [vmem:[%s177 + $0x33d8] sm:$0xff] %v4073
        %4202 = vst [vmem:[%s177 + $0x33e0] sm:$0xff] %v4074
        %4203 = vst [vmem:[%s177 + $0x33e8] sm:$0xff] %v4075
        %4204 = vst [vmem:[%s177 + $0x33f0] sm:$0xff] %v4076
        %4205 = vst [vmem:[%s177 + $0x33f8] sm:$0xff] %v4077
        %4206 = vst [vmem:[%s177 + $0x3400] sm:$0xff] %v4046
        %4207 = vst [vmem:[%s177 + $0x3408] sm:$0xff] %v4047
        %4208 = vst [vmem:[%s177 + $0x3410] sm:$0xff] %v4048
        %4209 = vst [vmem:[%s177 + $0x3418] sm:$0xff] %v4049
        %4210 = vst [vmem:[%s177 + $0x3420] sm:$0xff] %v4050
        %4211 = vst [vmem:[%s177 + $0x3428] sm:$0xff] %v4051
        %4212 = vst [vmem:[%s177 + $0x3430] sm:$0xff] %v4052
        %4213 = vst [vmem:[%s177 + $0x3438] sm:$0xff] %v4053
        %4214 = vst [vmem:[%s177 + $0x3440] sm:$0xff] %v4054
        %4215 = vst [vmem:[%s177 + $0x3448] sm:$0xff] %v4055
        %4216 = vst [vmem:[%s177 + $0x3450] sm:$0xff] %v4056
        %4217 = vst [vmem:[%s177 + $0x3458] sm:$0xff] %v4057
        %4218 = vst [vmem:[%s177 + $0x3460] sm:$0xff] %v4058
        %4219 = vst [vmem:[%s177 + $0x3468] sm:$0xff] %v4059
        %4220 = vst [vmem:[%s177 + $0x3470] sm:$0xff] %v4060
        %4221 = vst [vmem:[%s177 + $0x3478] sm:$0xff] %v4061
        %4222 = vst [vmem:[%s177 + $0x3480] sm:$0xff] %v4062
        %4223 = vst [vmem:[%s177 + $0x3488] sm:$0xff] %v4063
        %4224 = vst [vmem:[%s177 + $0x3490] sm:$0xff] %v4064
        %4225 = vst [vmem:[%s177 + $0x3498] sm:$0xff] %v4065
        %4226 = vst [vmem:[%s177 + $0x34a0] sm:$0xff] %v4066
        %4227 = vst [vmem:[%s177 + $0x34a8] sm:$0xff] %v4067
        %4228 = vst [vmem:[%s177 + $0x34b0] sm:$0xff] %v4068
        %4229 = vst [vmem:[%s177 + $0x34b8] sm:$0xff] %v4069
        %4230 = vst [vmem:[%s177 + $0x34c0] sm:$0xff] %v4070
        %4231 = vst [vmem:[%s177 + $0x34c8] sm:$0xff] %v4071
        %4232 = vst [vmem:[%s177 + $0x34d0] sm:$0xff] %v4072
        %4233 = vst [vmem:[%s177 + $0x34d8] sm:$0xff] %v4073
        %4234 = vst [vmem:[%s177 + $0x34e0] sm:$0xff] %v4074
        %4235 = vst [vmem:[%s177 + $0x34e8] sm:$0xff] %v4075
        %4236 = vst [vmem:[%s177 + $0x34f0] sm:$0xff] %v4076
        %4237 = vst [vmem:[%s177 + $0x34f8] sm:$0xff] %v4077
        %4238 = vst [vmem:[%s177 + $0x3500] sm:$0xff] %v4046
        %4239 = vst [vmem:[%s177 + $0x3508] sm:$0xff] %v4047
        %4240 = vst [vmem:[%s177 + $0x3510] sm:$0xff] %v4048
        %4241 = vst [vmem:[%s177 + $0x3518] sm:$0xff] %v4049
        %4242 = vst [vmem:[%s177 + $0x3520] sm:$0xff] %v4050
        %4243 = vst [vmem:[%s177 + $0x3528] sm:$0xff] %v4051
        %4244 = vst [vmem:[%s177 + $0x3530] sm:$0xff] %v4052
        %4245 = vst [vmem:[%s177 + $0x3538] sm:$0xff] %v4053
        %4246 = vst [vmem:[%s177 + $0x3540] sm:$0xff] %v4054
        %4247 = vst [vmem:[%s177 + $0x3548] sm:$0xff] %v4055
        %4248 = vst [vmem:[%s177 + $0x3550] sm:$0xff] %v4056
        %4249 = vst [vmem:[%s177 + $0x3558] sm:$0xff] %v4057
        %4250 = vst [vmem:[%s177 + $0x3560] sm:$0xff] %v4058
        %4251 = vst [vmem:[%s177 + $0x3568] sm:$0xff] %v4059
        %4252 = vst [vmem:[%s177 + $0x3570] sm:$0xff] %v4060
        %4253 = vst [vmem:[%s177 + $0x3578] sm:$0xff] %v4061
        %4254 = vst [vmem:[%s177 + $0x3580] sm:$0xff] %v4062
        %4255 = vst [vmem:[%s177 + $0x3588] sm:$0xff] %v4063
        %4256 = vst [vmem:[%s177 + $0x3590] sm:$0xff] %v4064
        %4257 = vst [vmem:[%s177 + $0x3598] sm:$0xff] %v4065
        %4258 = vst [vmem:[%s177 + $0x35a0] sm:$0xff] %v4066
        %4259 = vst [vmem:[%s177 + $0x35a8] sm:$0xff] %v4067
        %4260 = vst [vmem:[%s177 + $0x35b0] sm:$0xff] %v4068
        %4261 = vst [vmem:[%s177 + $0x35b8] sm:$0xff] %v4069
        %4262 = vst [vmem:[%s177 + $0x35c0] sm:$0xff] %v4070
        %4263 = vst [vmem:[%s177 + $0x35c8] sm:$0xff] %v4071
        %4264 = vst [vmem:[%s177 + $0x35d0] sm:$0xff] %v4072
        %4265 = vst [vmem:[%s177 + $0x35d8] sm:$0xff] %v4073
        %4266 = vst [vmem:[%s177 + $0x35e0] sm:$0xff] %v4074
        %4267 = vst [vmem:[%s177 + $0x35e8] sm:$0xff] %v4075
        %4268 = vst [vmem:[%s177 + $0x35f0] sm:$0xff] %v4076
        %4269 = vst [vmem:[%s177 + $0x35f8] sm:$0xff] %v4077
        %4270 = vst [vmem:[%s177 + $0x3600] sm:$0xff] %v4046
        %4271 = vst [vmem:[%s177 + $0x3608] sm:$0xff] %v4047
        %4272 = vst [vmem:[%s177 + $0x3610] sm:$0xff] %v4048
        %4273 = vst [vmem:[%s177 + $0x3618] sm:$0xff] %v4049
        %4274 = vst [vmem:[%s177 + $0x3620] sm:$0xff] %v4050
        %4275 = vst [vmem:[%s177 + $0x3628] sm:$0xff] %v4051
        %4276 = vst [vmem:[%s177 + $0x3630] sm:$0xff] %v4052
        %4277 = vst [vmem:[%s177 + $0x3638] sm:$0xff] %v4053
        %4278 = vst [vmem:[%s177 + $0x3640] sm:$0xff] %v4054
        %4279 = vst [vmem:[%s177 + $0x3648] sm:$0xff] %v4055
        %4280 = vst [vmem:[%s177 + $0x3650] sm:$0xff] %v4056
        %4281 = vst [vmem:[%s177 + $0x3658] sm:$0xff] %v4057
        %4282 = vst [vmem:[%s177 + $0x3660] sm:$0xff] %v4058
        %4283 = vst [vmem:[%s177 + $0x3668] sm:$0xff] %v4059
        %4284 = vst [vmem:[%s177 + $0x3670] sm:$0xff] %v4060
        %4285 = vst [vmem:[%s177 + $0x3678] sm:$0xff] %v4061
        %4286 = vst [vmem:[%s177 + $0x3680] sm:$0xff] %v4062
        %4287 = vst [vmem:[%s177 + $0x3688] sm:$0xff] %v4063
        %4288 = vst [vmem:[%s177 + $0x3690] sm:$0xff] %v4064
        %4289 = vst [vmem:[%s177 + $0x3698] sm:$0xff] %v4065
        %4290 = vst [vmem:[%s177 + $0x36a0] sm:$0xff] %v4066
        %4291 = vst [vmem:[%s177 + $0x36a8] sm:$0xff] %v4067
        %4292 = vst [vmem:[%s177 + $0x36b0] sm:$0xff] %v4068
        %4293 = vst [vmem:[%s177 + $0x36b8] sm:$0xff] %v4069
        %4294 = vst [vmem:[%s177 + $0x36c0] sm:$0xff] %v4070
        %4295 = vst [vmem:[%s177 + $0x36c8] sm:$0xff] %v4071
        %4296 = vst [vmem:[%s177 + $0x36d0] sm:$0xff] %v4072
        %4297 = vst [vmem:[%s177 + $0x36d8] sm:$0xff] %v4073
        %4298 = vst [vmem:[%s177 + $0x36e0] sm:$0xff] %v4074
        %4299 = vst [vmem:[%s177 + $0x36e8] sm:$0xff] %v4075
        %4300 = vst [vmem:[%s177 + $0x36f0] sm:$0xff] %v4076
        %4301 = vst [vmem:[%s177 + $0x36f8] sm:$0xff] %v4077
        %4302 = vst [vmem:[%s177 + $0x3700] sm:$0xff] %v4046
        %4303 = vst [vmem:[%s177 + $0x3708] sm:$0xff] %v4047
        %4304 = vst [vmem:[%s177 + $0x3710] sm:$0xff] %v4048
        %4305 = vst [vmem:[%s177 + $0x3718] sm:$0xff] %v4049
        %4306 = vst [vmem:[%s177 + $0x3720] sm:$0xff] %v4050
        %4307 = vst [vmem:[%s177 + $0x3728] sm:$0xff] %v4051
        %4308 = vst [vmem:[%s177 + $0x3730] sm:$0xff] %v4052
        %4309 = vst [vmem:[%s177 + $0x3738] sm:$0xff] %v4053
        %4310 = vst [vmem:[%s177 + $0x3740] sm:$0xff] %v4054
        %4311 = vst [vmem:[%s177 + $0x3748] sm:$0xff] %v4055
        %4312 = vst [vmem:[%s177 + $0x3750] sm:$0xff] %v4056
        %4313 = vst [vmem:[%s177 + $0x3758] sm:$0xff] %v4057
        %4314 = vst [vmem:[%s177 + $0x3760] sm:$0xff] %v4058
        %4315 = vst [vmem:[%s177 + $0x3768] sm:$0xff] %v4059
        %4316 = vst [vmem:[%s177 + $0x3770] sm:$0xff] %v4060
        %4317 = vst [vmem:[%s177 + $0x3778] sm:$0xff] %v4061
        %4318 = vst [vmem:[%s177 + $0x3780] sm:$0xff] %v4062
        %4319 = vst [vmem:[%s177 + $0x3788] sm:$0xff] %v4063
        %4320 = vst [vmem:[%s177 + $0x3790] sm:$0xff] %v4064
        %4321 = vst [vmem:[%s177 + $0x3798] sm:$0xff] %v4065
        %4322 = vst [vmem:[%s177 + $0x37a0] sm:$0xff] %v4066
        %4323 = vst [vmem:[%s177 + $0x37a8] sm:$0xff] %v4067
        %4324 = vst [vmem:[%s177 + $0x37b0] sm:$0xff] %v4068
        %4325 = vst [vmem:[%s177 + $0x37b8] sm:$0xff] %v4069
        %4326 = vst [vmem:[%s177 + $0x37c0] sm:$0xff] %v4070
        %4327 = vst [vmem:[%s177 + $0x37c8] sm:$0xff] %v4071
        %4328 = vst [vmem:[%s177 + $0x37d0] sm:$0xff] %v4072
        %4329 = vst [vmem:[%s177 + $0x37d8] sm:$0xff] %v4073
        %4330 = vst [vmem:[%s177 + $0x37e0] sm:$0xff] %v4074
        %4331 = vst [vmem:[%s177 + $0x37e8] sm:$0xff] %v4075
        %4332 = vst [vmem:[%s177 + $0x37f0] sm:$0xff] %v4076
        %4333 = vst [vmem:[%s177 + $0x37f8] sm:$0xff] %v4077
        %v4334 = vperm.slane %v2286, 7
        %v4335 = vperm.slane %v2287, 7
        %v4336 = vperm.slane %v2288, 7
        %v4337 = vperm.slane %v2289, 7
        %v4338 = vperm.slane %v2290, 7
        %v4339 = vperm.slane %v2291, 7
        %v4340 = vperm.slane %v2292, 7
        %v4341 = vperm.slane %v2293, 7
        %v4342 = vperm.slane %v2294, 7
        %v4343 = vperm.slane %v2295, 7
        %v4344 = vperm.slane %v2296, 7
        %v4345 = vperm.slane %v2297, 7
        %v4346 = vperm.slane %v2298, 7
        %v4347 = vperm.slane %v2299, 7
        %v4348 = vperm.slane %v2300, 7
        %v4349 = vperm.slane %v2301, 7
        %v4350 = vperm.slane %v2302, 7
        %v4351 = vperm.slane %v2303, 7
        %v4352 = vperm.slane %v2304, 7
        %v4353 = vperm.slane %v2305, 7
        %v4354 = vperm.slane %v2306, 7
        %v4355 = vperm.slane %v2307, 7
        %v4356 = vperm.slane %v2308, 7
        %v4357 = vperm.slane %v2309, 7
        %v4358 = vperm.slane %v2310, 7
        %v4359 = vperm.slane %v2311, 7
        %v4360 = vperm.slane %v2312, 7
        %v4361 = vperm.slane %v2313, 7
        %v4362 = vperm.slane %v2314, 7
        %v4363 = vperm.slane %v2315, 7
        %v4364 = vperm.slane %v2316, 7
        %v4365 = vperm.slane %v2317, 7
        %4366 = vst [vmem:[%s177 + $0x3800] sm:$0xff] %v4334
        %4367 = vst [vmem:[%s177 + $0x3808] sm:$0xff] %v4335
        %4368 = vst [vmem:[%s177 + $0x3810] sm:$0xff] %v4336
        %4369 = vst [vmem:[%s177 + $0x3818] sm:$0xff] %v4337
        %4370 = vst [vmem:[%s177 + $0x3820] sm:$0xff] %v4338
        %4371 = vst [vmem:[%s177 + $0x3828] sm:$0xff] %v4339
        %4372 = vst [vmem:[%s177 + $0x3830] sm:$0xff] %v4340
        %4373 = vst [vmem:[%s177 + $0x3838] sm:$0xff] %v4341
        %4374 = vst [vmem:[%s177 + $0x3840] sm:$0xff] %v4342
        %4375 = vst [vmem:[%s177 + $0x3848] sm:$0xff] %v4343
        %4376 = vst [vmem:[%s177 + $0x3850] sm:$0xff] %v4344
        %4377 = vst [vmem:[%s177 + $0x3858] sm:$0xff] %v4345
        %4378 = vst [vmem:[%s177 + $0x3860] sm:$0xff] %v4346
        %4379 = vst [vmem:[%s177 + $0x3868] sm:$0xff] %v4347
        %4380 = vst [vmem:[%s177 + $0x3870] sm:$0xff] %v4348
        %4381 = vst [vmem:[%s177 + $0x3878] sm:$0xff] %v4349
        %4382 = vst [vmem:[%s177 + $0x3880] sm:$0xff] %v4350
        %4383 = vst [vmem:[%s177 + $0x3888] sm:$0xff] %v4351
        %4384 = vst [vmem:[%s177 + $0x3890] sm:$0xff] %v4352
        %4385 = vst [vmem:[%s177 + $0x3898] sm:$0xff] %v4353
        %4386 = vst [vmem:[%s177 + $0x38a0] sm:$0xff] %v4354
        %4387 = vst [vmem:[%s177 + $0x38a8] sm:$0xff] %v4355
        %4388 = vst [vmem:[%s177 + $0x38b0] sm:$0xff] %v4356
        %4389 = vst [vmem:[%s177 + $0x38b8] sm:$0xff] %v4357
        %4390 = vst [vmem:[%s177 + $0x38c0] sm:$0xff] %v4358
        %4391 = vst [vmem:[%s177 + $0x38c8] sm:$0xff] %v4359
        %4392 = vst [vmem:[%s177 + $0x38d0] sm:$0xff] %v4360
        %4393 = vst [vmem:[%s177 + $0x38d8] sm:$0xff] %v4361
        %4394 = vst [vmem:[%s177 + $0x38e0] sm:$0xff] %v4362
        %4395 = vst [vmem:[%s177 + $0x38e8] sm:$0xff] %v4363
        %4396 = vst [vmem:[%s177 + $0x38f0] sm:$0xff] %v4364
        %4397 = vst [vmem:[%s177 + $0x38f8] sm:$0xff] %v4365
        %4398 = vst [vmem:[%s177 + $0x3900] sm:$0xff] %v4334
        %4399 = vst [vmem:[%s177 + $0x3908] sm:$0xff] %v4335
        %4400 = vst [vmem:[%s177 + $0x3910] sm:$0xff] %v4336
        %4401 = vst [vmem:[%s177 + $0x3918] sm:$0xff] %v4337
        %4402 = vst [vmem:[%s177 + $0x3920] sm:$0xff] %v4338
        %4403 = vst [vmem:[%s177 + $0x3928] sm:$0xff] %v4339
        %4404 = vst [vmem:[%s177 + $0x3930] sm:$0xff] %v4340
        %4405 = vst [vmem:[%s177 + $0x3938] sm:$0xff] %v4341
        %4406 = vst [vmem:[%s177 + $0x3940] sm:$0xff] %v4342
        %4407 = vst [vmem:[%s177 + $0x3948] sm:$0xff] %v4343
        %4408 = vst [vmem:[%s177 + $0x3950] sm:$0xff] %v4344
        %4409 = vst [vmem:[%s177 + $0x3958] sm:$0xff] %v4345
        %4410 = vst [vmem:[%s177 + $0x3960] sm:$0xff] %v4346
        %4411 = vst [vmem:[%s177 + $0x3968] sm:$0xff] %v4347
        %4412 = vst [vmem:[%s177 + $0x3970] sm:$0xff] %v4348
        %4413 = vst [vmem:[%s177 + $0x3978] sm:$0xff] %v4349
        %4414 = vst [vmem:[%s177 + $0x3980] sm:$0xff] %v4350
        %4415 = vst [vmem:[%s177 + $0x3988] sm:$0xff] %v4351
        %4416 = vst [vmem:[%s177 + $0x3990] sm:$0xff] %v4352
        %4417 = vst [vmem:[%s177 + $0x3998] sm:$0xff] %v4353
        %4418 = vst [vmem:[%s177 + $0x39a0] sm:$0xff] %v4354
        %4419 = vst [vmem:[%s177 + $0x39a8] sm:$0xff] %v4355
        %4420 = vst [vmem:[%s177 + $0x39b0] sm:$0xff] %v4356
        %4421 = vst [vmem:[%s177 + $0x39b8] sm:$0xff] %v4357
        %4422 = vst [vmem:[%s177 + $0x39c0] sm:$0xff] %v4358
        %4423 = vst [vmem:[%s177 + $0x39c8] sm:$0xff] %v4359
        %4424 = vst [vmem:[%s177 + $0x39d0] sm:$0xff] %v4360
        %4425 = vst [vmem:[%s177 + $0x39d8] sm:$0xff] %v4361
        %4426 = vst [vmem:[%s177 + $0x39e0] sm:$0xff] %v4362
        %4427 = vst [vmem:[%s177 + $0x39e8] sm:$0xff] %v4363
        %4428 = vst [vmem:[%s177 + $0x39f0] sm:$0xff] %v4364
        %4429 = vst [vmem:[%s177 + $0x39f8] sm:$0xff] %v4365
        %4430 = vst [vmem:[%s177 + $0x3a00] sm:$0xff] %v4334
        %4431 = vst [vmem:[%s177 + $0x3a08] sm:$0xff] %v4335
        %4432 = vst [vmem:[%s177 + $0x3a10] sm:$0xff] %v4336
        %4433 = vst [vmem:[%s177 + $0x3a18] sm:$0xff] %v4337
        %4434 = vst [vmem:[%s177 + $0x3a20] sm:$0xff] %v4338
        %4435 = vst [vmem:[%s177 + $0x3a28] sm:$0xff] %v4339
        %4436 = vst [vmem:[%s177 + $0x3a30] sm:$0xff] %v4340
        %4437 = vst [vmem:[%s177 + $0x3a38] sm:$0xff] %v4341
        %4438 = vst [vmem:[%s177 + $0x3a40] sm:$0xff] %v4342
        %4439 = vst [vmem:[%s177 + $0x3a48] sm:$0xff] %v4343
        %4440 = vst [vmem:[%s177 + $0x3a50] sm:$0xff] %v4344
        %4441 = vst [vmem:[%s177 + $0x3a58] sm:$0xff] %v4345
        %4442 = vst [vmem:[%s177 + $0x3a60] sm:$0xff] %v4346
        %4443 = vst [vmem:[%s177 + $0x3a68] sm:$0xff] %v4347
        %4444 = vst [vmem:[%s177 + $0x3a70] sm:$0xff] %v4348
        %4445 = vst [vmem:[%s177 + $0x3a78] sm:$0xff] %v4349
        %4446 = vst [vmem:[%s177 + $0x3a80] sm:$0xff] %v4350
        %4447 = vst [vmem:[%s177 + $0x3a88] sm:$0xff] %v4351
        %4448 = vst [vmem:[%s177 + $0x3a90] sm:$0xff] %v4352
        %4449 = vst [vmem:[%s177 + $0x3a98] sm:$0xff] %v4353
        %4450 = vst [vmem:[%s177 + $0x3aa0] sm:$0xff] %v4354
        %4451 = vst [vmem:[%s177 + $0x3aa8] sm:$0xff] %v4355
        %4452 = vst [vmem:[%s177 + $0x3ab0] sm:$0xff] %v4356
        %4453 = vst [vmem:[%s177 + $0x3ab8] sm:$0xff] %v4357
        %4454 = vst [vmem:[%s177 + $0x3ac0] sm:$0xff] %v4358
        %4455 = vst [vmem:[%s177 + $0x3ac8] sm:$0xff] %v4359
        %4456 = vst [vmem:[%s177 + $0x3ad0] sm:$0xff] %v4360
        %4457 = vst [vmem:[%s177 + $0x3ad8] sm:$0xff] %v4361
        %4458 = vst [vmem:[%s177 + $0x3ae0] sm:$0xff] %v4362
        %4459 = vst [vmem:[%s177 + $0x3ae8] sm:$0xff] %v4363
        %4460 = vst [vmem:[%s177 + $0x3af0] sm:$0xff] %v4364
        %4461 = vst [vmem:[%s177 + $0x3af8] sm:$0xff] %v4365
        %4462 = vst [vmem:[%s177 + $0x3b00] sm:$0xff] %v4334
        %4463 = vst [vmem:[%s177 + $0x3b08] sm:$0xff] %v4335
        %4464 = vst [vmem:[%s177 + $0x3b10] sm:$0xff] %v4336
        %4465 = vst [vmem:[%s177 + $0x3b18] sm:$0xff] %v4337
        %4466 = vst [vmem:[%s177 + $0x3b20] sm:$0xff] %v4338
        %4467 = vst [vmem:[%s177 + $0x3b28] sm:$0xff] %v4339
        %4468 = vst [vmem:[%s177 + $0x3b30] sm:$0xff] %v4340
        %4469 = vst [vmem:[%s177 + $0x3b38] sm:$0xff] %v4341
        %4470 = vst [vmem:[%s177 + $0x3b40] sm:$0xff] %v4342
        %4471 = vst [vmem:[%s177 + $0x3b48] sm:$0xff] %v4343
        %4472 = vst [vmem:[%s177 + $0x3b50] sm:$0xff] %v4344
        %4473 = vst [vmem:[%s177 + $0x3b58] sm:$0xff] %v4345
        %4474 = vst [vmem:[%s177 + $0x3b60] sm:$0xff] %v4346
        %4475 = vst [vmem:[%s177 + $0x3b68] sm:$0xff] %v4347
        %4476 = vst [vmem:[%s177 + $0x3b70] sm:$0xff] %v4348
        %4477 = vst [vmem:[%s177 + $0x3b78] sm:$0xff] %v4349
        %4478 = vst [vmem:[%s177 + $0x3b80] sm:$0xff] %v4350
        %4479 = vst [vmem:[%s177 + $0x3b88] sm:$0xff] %v4351
        %4480 = vst [vmem:[%s177 + $0x3b90] sm:$0xff] %v4352
        %4481 = vst [vmem:[%s177 + $0x3b98] sm:$0xff] %v4353
        %4482 = vst [vmem:[%s177 + $0x3ba0] sm:$0xff] %v4354
        %4483 = vst [vmem:[%s177 + $0x3ba8] sm:$0xff] %v4355
        %4484 = vst [vmem:[%s177 + $0x3bb0] sm:$0xff] %v4356
        %4485 = vst [vmem:[%s177 + $0x3bb8] sm:$0xff] %v4357
        %4486 = vst [vmem:[%s177 + $0x3bc0] sm:$0xff] %v4358
        %4487 = vst [vmem:[%s177 + $0x3bc8] sm:$0xff] %v4359
        %4488 = vst [vmem:[%s177 + $0x3bd0] sm:$0xff] %v4360
        %4489 = vst [vmem:[%s177 + $0x3bd8] sm:$0xff] %v4361
        %4490 = vst [vmem:[%s177 + $0x3be0] sm:$0xff] %v4362
        %4491 = vst [vmem:[%s177 + $0x3be8] sm:$0xff] %v4363
        %4492 = vst [vmem:[%s177 + $0x3bf0] sm:$0xff] %v4364
        %4493 = vst [vmem:[%s177 + $0x3bf8] sm:$0xff] %v4365
        %4494 = vst [vmem:[%s177 + $0x3c00] sm:$0xff] %v4334
        %4495 = vst [vmem:[%s177 + $0x3c08] sm:$0xff] %v4335
        %4496 = vst [vmem:[%s177 + $0x3c10] sm:$0xff] %v4336
        %4497 = vst [vmem:[%s177 + $0x3c18] sm:$0xff] %v4337
        %4498 = vst [vmem:[%s177 + $0x3c20] sm:$0xff] %v4338
        %4499 = vst [vmem:[%s177 + $0x3c28] sm:$0xff] %v4339
        %4500 = vst [vmem:[%s177 + $0x3c30] sm:$0xff] %v4340
        %4501 = vst [vmem:[%s177 + $0x3c38] sm:$0xff] %v4341
        %4502 = vst [vmem:[%s177 + $0x3c40] sm:$0xff] %v4342
        %4503 = vst [vmem:[%s177 + $0x3c48] sm:$0xff] %v4343
        %4504 = vst [vmem:[%s177 + $0x3c50] sm:$0xff] %v4344
        %4505 = vst [vmem:[%s177 + $0x3c58] sm:$0xff] %v4345
        %4506 = vst [vmem:[%s177 + $0x3c60] sm:$0xff] %v4346
        %4507 = vst [vmem:[%s177 + $0x3c68] sm:$0xff] %v4347
        %4508 = vst [vmem:[%s177 + $0x3c70] sm:$0xff] %v4348
        %4509 = vst [vmem:[%s177 + $0x3c78] sm:$0xff] %v4349
        %4510 = vst [vmem:[%s177 + $0x3c80] sm:$0xff] %v4350
        %4511 = vst [vmem:[%s177 + $0x3c88] sm:$0xff] %v4351
        %4512 = vst [vmem:[%s177 + $0x3c90] sm:$0xff] %v4352
        %4513 = vst [vmem:[%s177 + $0x3c98] sm:$0xff] %v4353
        %4514 = vst [vmem:[%s177 + $0x3ca0] sm:$0xff] %v4354
        %4515 = vst [vmem:[%s177 + $0x3ca8] sm:$0xff] %v4355
        %4516 = vst [vmem:[%s177 + $0x3cb0] sm:$0xff] %v4356
        %4517 = vst [vmem:[%s177 + $0x3cb8] sm:$0xff] %v4357
        %4518 = vst [vmem:[%s177 + $0x3cc0] sm:$0xff] %v4358
        %4519 = vst [vmem:[%s177 + $0x3cc8] sm:$0xff] %v4359
        %4520 = vst [vmem:[%s177 + $0x3cd0] sm:$0xff] %v4360
        %4521 = vst [vmem:[%s177 + $0x3cd8] sm:$0xff] %v4361
        %4522 = vst [vmem:[%s177 + $0x3ce0] sm:$0xff] %v4362
        %4523 = vst [vmem:[%s177 + $0x3ce8] sm:$0xff] %v4363
        %4524 = vst [vmem:[%s177 + $0x3cf0] sm:$0xff] %v4364
        %4525 = vst [vmem:[%s177 + $0x3cf8] sm:$0xff] %v4365
        %4526 = vst [vmem:[%s177 + $0x3d00] sm:$0xff] %v4334
        %4527 = vst [vmem:[%s177 + $0x3d08] sm:$0xff] %v4335
        %4528 = vst [vmem:[%s177 + $0x3d10] sm:$0xff] %v4336
        %4529 = vst [vmem:[%s177 + $0x3d18] sm:$0xff] %v4337
        %4530 = vst [vmem:[%s177 + $0x3d20] sm:$0xff] %v4338
        %4531 = vst [vmem:[%s177 + $0x3d28] sm:$0xff] %v4339
        %4532 = vst [vmem:[%s177 + $0x3d30] sm:$0xff] %v4340
        %4533 = vst [vmem:[%s177 + $0x3d38] sm:$0xff] %v4341
        %4534 = vst [vmem:[%s177 + $0x3d40] sm:$0xff] %v4342
        %4535 = vst [vmem:[%s177 + $0x3d48] sm:$0xff] %v4343
        %4536 = vst [vmem:[%s177 + $0x3d50] sm:$0xff] %v4344
        %4537 = vst [vmem:[%s177 + $0x3d58] sm:$0xff] %v4345
        %4538 = vst [vmem:[%s177 + $0x3d60] sm:$0xff] %v4346
        %4539 = vst [vmem:[%s177 + $0x3d68] sm:$0xff] %v4347
        %4540 = vst [vmem:[%s177 + $0x3d70] sm:$0xff] %v4348
        %4541 = vst [vmem:[%s177 + $0x3d78] sm:$0xff] %v4349
        %4542 = vst [vmem:[%s177 + $0x3d80] sm:$0xff] %v4350
        %4543 = vst [vmem:[%s177 + $0x3d88] sm:$0xff] %v4351
        %4544 = vst [vmem:[%s177 + $0x3d90] sm:$0xff] %v4352
        %4545 = vst [vmem:[%s177 + $0x3d98] sm:$0xff] %v4353
        %4546 = vst [vmem:[%s177 + $0x3da0] sm:$0xff] %v4354
        %4547 = vst [vmem:[%s177 + $0x3da8] sm:$0xff] %v4355
        %4548 = vst [vmem:[%s177 + $0x3db0] sm:$0xff] %v4356
        %4549 = vst [vmem:[%s177 + $0x3db8] sm:$0xff] %v4357
        %4550 = vst [vmem:[%s177 + $0x3dc0] sm:$0xff] %v4358
        %4551 = vst [vmem:[%s177 + $0x3dc8] sm:$0xff] %v4359
        %4552 = vst [vmem:[%s177 + $0x3dd0] sm:$0xff] %v4360
        %4553 = vst [vmem:[%s177 + $0x3dd8] sm:$0xff] %v4361
        %4554 = vst [vmem:[%s177 + $0x3de0] sm:$0xff] %v4362
        %4555 = vst [vmem:[%s177 + $0x3de8] sm:$0xff] %v4363
        %4556 = vst [vmem:[%s177 + $0x3df0] sm:$0xff] %v4364
        %4557 = vst [vmem:[%s177 + $0x3df8] sm:$0xff] %v4365
        %4558 = vst [vmem:[%s177 + $0x3e00] sm:$0xff] %v4334
        %4559 = vst [vmem:[%s177 + $0x3e08] sm:$0xff] %v4335
        %4560 = vst [vmem:[%s177 + $0x3e10] sm:$0xff] %v4336
        %4561 = vst [vmem:[%s177 + $0x3e18] sm:$0xff] %v4337
        %4562 = vst [vmem:[%s177 + $0x3e20] sm:$0xff] %v4338
        %4563 = vst [vmem:[%s177 + $0x3e28] sm:$0xff] %v4339
        %4564 = vst [vmem:[%s177 + $0x3e30] sm:$0xff] %v4340
        %4565 = vst [vmem:[%s177 + $0x3e38] sm:$0xff] %v4341
        %4566 = vst [vmem:[%s177 + $0x3e40] sm:$0xff] %v4342
        %4567 = vst [vmem:[%s177 + $0x3e48] sm:$0xff] %v4343
        %4568 = vst [vmem:[%s177 + $0x3e50] sm:$0xff] %v4344
        %4569 = vst [vmem:[%s177 + $0x3e58] sm:$0xff] %v4345
        %4570 = vst [vmem:[%s177 + $0x3e60] sm:$0xff] %v4346
        %4571 = vst [vmem:[%s177 + $0x3e68] sm:$0xff] %v4347
        %4572 = vst [vmem:[%s177 + $0x3e70] sm:$0xff] %v4348
        %4573 = vst [vmem:[%s177 + $0x3e78] sm:$0xff] %v4349
        %4574 = vst [vmem:[%s177 + $0x3e80] sm:$0xff] %v4350
        %4575 = vst [vmem:[%s177 + $0x3e88] sm:$0xff] %v4351
        %4576 = vst [vmem:[%s177 + $0x3e90] sm:$0xff] %v4352
        %4577 = vst [vmem:[%s177 + $0x3e98] sm:$0xff] %v4353
        %4578 = vst [vmem:[%s177 + $0x3ea0] sm:$0xff] %v4354
        %4579 = vst [vmem:[%s177 + $0x3ea8] sm:$0xff] %v4355
        %4580 = vst [vmem:[%s177 + $0x3eb0] sm:$0xff] %v4356
        %4581 = vst [vmem:[%s177 + $0x3eb8] sm:$0xff] %v4357
        %4582 = vst [vmem:[%s177 + $0x3ec0] sm:$0xff] %v4358
        %4583 = vst [vmem:[%s177 + $0x3ec8] sm:$0xff] %v4359
        %4584 = vst [vmem:[%s177 + $0x3ed0] sm:$0xff] %v4360
        %4585 = vst [vmem:[%s177 + $0x3ed8] sm:$0xff] %v4361
        %4586 = vst [vmem:[%s177 + $0x3ee0] sm:$0xff] %v4362
        %4587 = vst [vmem:[%s177 + $0x3ee8] sm:$0xff] %v4363
        %4588 = vst [vmem:[%s177 + $0x3ef0] sm:$0xff] %v4364
        %4589 = vst [vmem:[%s177 + $0x3ef8] sm:$0xff] %v4365
        %4590 = vst [vmem:[%s177 + $0x3f00] sm:$0xff] %v4334
        %4591 = vst [vmem:[%s177 + $0x3f08] sm:$0xff] %v4335
        %4592 = vst [vmem:[%s177 + $0x3f10] sm:$0xff] %v4336
        %4593 = vst [vmem:[%s177 + $0x3f18] sm:$0xff] %v4337
        %4594 = vst [vmem:[%s177 + $0x3f20] sm:$0xff] %v4338
        %4595 = vst [vmem:[%s177 + $0x3f28] sm:$0xff] %v4339
        %4596 = vst [vmem:[%s177 + $0x3f30] sm:$0xff] %v4340
        %4597 = vst [vmem:[%s177 + $0x3f38] sm:$0xff] %v4341
        %4598 = vst [vmem:[%s177 + $0x3f40] sm:$0xff] %v4342
        %4599 = vst [vmem:[%s177 + $0x3f48] sm:$0xff] %v4343
        %4600 = vst [vmem:[%s177 + $0x3f50] sm:$0xff] %v4344
        %4601 = vst [vmem:[%s177 + $0x3f58] sm:$0xff] %v4345
        %4602 = vst [vmem:[%s177 + $0x3f60] sm:$0xff] %v4346
        %4603 = vst [vmem:[%s177 + $0x3f68] sm:$0xff] %v4347
        %4604 = vst [vmem:[%s177 + $0x3f70] sm:$0xff] %v4348
        %4605 = vst [vmem:[%s177 + $0x3f78] sm:$0xff] %v4349
        %4606 = vst [vmem:[%s177 + $0x3f80] sm:$0xff] %v4350
        %4607 = vst [vmem:[%s177 + $0x3f88] sm:$0xff] %v4351
        %4608 = vst [vmem:[%s177 + $0x3f90] sm:$0xff] %v4352
        %4609 = vst [vmem:[%s177 + $0x3f98] sm:$0xff] %v4353
        %4610 = vst [vmem:[%s177 + $0x3fa0] sm:$0xff] %v4354
        %4611 = vst [vmem:[%s177 + $0x3fa8] sm:$0xff] %v4355
        %4612 = vst [vmem:[%s177 + $0x3fb0] sm:$0xff] %v4356
        %4613 = vst [vmem:[%s177 + $0x3fb8] sm:$0xff] %v4357
        %4614 = vst [vmem:[%s177 + $0x3fc0] sm:$0xff] %v4358
        %4615 = vst [vmem:[%s177 + $0x3fc8] sm:$0xff] %v4359
        %4616 = vst [vmem:[%s177 + $0x3fd0] sm:$0xff] %v4360
        %4617 = vst [vmem:[%s177 + $0x3fd8] sm:$0xff] %v4361
        %4618 = vst [vmem:[%s177 + $0x3fe0] sm:$0xff] %v4362
        %4619 = vst [vmem:[%s177 + $0x3fe8] sm:$0xff] %v4363
        %4620 = vst [vmem:[%s177 + $0x3ff0] sm:$0xff] %v4364
        %4621 = vst [vmem:[%s177 + $0x3ff8] sm:$0xff] %v4365
        %s4622 = sand.u32 %s107, 1
        %s4623 = scalar_lea.sflag [#allocation4], %s4622
        %s4624 = sand.u32 %s107, 1
        %s4625 = smul.addr %s4624, 16384
        %s4626 = scalar_lea.vmem [#allocation3], %s4625
        // Predicated region
        $region37: #{mratt_forward.1} parent=31 // pred_check
          %p4627 = pneg %p117
        $region38: #{mratt_forward.1} parent=31 // pred_check_branch
          %4629 = sbr.rel (%p4627) target = $region40
        $region39: #{mratt_forward.1} parent=31 // pred_region
          %s4630 = smul.u32 64, %s22
          %4632 = vsyncadd %s4623, 0
          %s4633 = smul.addr %s4630, 32
          %s4634 = smul.addr %s21, 16384
          %s4635 = sadd.s32 %s4633, %s4634
          %s4636 = smul.addr %s4635, 8
          %s4637 = scalar_lea.hbm %s3, %s4636
          %s4638 = sshll.u32 %s4626, 4
          %s4639 = int_to_ptr.vmem [resolvable:$true] %s4638
          %s4640 = sshll.u32 %s4637, 4
          %s4641 = int_to_ptr.hbm [resolvable:$true] %s4640
          %4646 = dma.vmem_to_hbm [thread:$0]  %s4639, 262144, %s4641, %s4623, 4096, 4096, 256
        $region40: #{mratt_forward.1} parent=31 // pred_fallthru
          _
      $region32: #{mratt_forward.1} parent=5 // pred_fallthru
        _
      %p4647 = scmp.le.s32.totalorder 2, %s12
      // Predicated region
      $region41: #{mratt_forward.1} parent=5 // pred_check
        %p4648 = pneg %p4647
      $region42: #{mratt_forward.1} parent=5 // pred_check_branch
        %4650 = sbr.rel (%p4648) target = $region44
      $region43: #{mratt_forward.1} parent=5 // pred_region
        %s4651 = ssub.s32 %s12, 2
        // Predicated region
        $region45: #{mratt_forward.1} parent=43 // pred_check
          %p4652 = pneg %p123
        $region46: #{mratt_forward.1} parent=43 // pred_check_branch
          %4654 = sbr.rel (%p4652) target = $region48
        $region47: #{mratt_forward.1} parent=43 // pred_region
          %s4655 = sand.u32 %s108, 1
          %s4656 = scalar_lea.sflag [#allocation4], %s4655
          %s4657 = sand.u32 %s108, 1
          %s4658 = smul.addr %s4657, 16384
          %s4659 = scalar_lea.vmem [#allocation3], %s4658
          %4661 = dma.done %s4656, 262144
        $region48: #{mratt_forward.1} parent=43 // pred_fallthru
          _
      $region44: #{mratt_forward.1} parent=5 // pred_fallthru
        _
    $region6: #{mratt_forward.1} parent=1 // loop_footer
      %s16 = sadd.s32 1, %s12
    $region7: #{mratt_forward.1} parent=1 // loop_footer_branch
      %11 = sbr.rel target = $region3
    $region8: #{mratt_forward.1} parent=1 // loop_exit
      _
    %4662 = vsyncpa [#allocation4], 1
    %s4663 = scalar_lea.sflag [#allocation4], 1
    %4664 = vsyncpa %s4663, 1

</llo_original>
